<compile_context>
chip_gen: v6e
topology: v6e:2x2x1
jax: 0.10.0
libtpu: 0.0.40
codegen_flags: <defaults>
</compile_context>

<pallas_src>
import math
from functools import partial

import jax
import jax.numpy as jnp
from jax.experimental import pallas as pl
from jax.experimental.pallas import tpu as pltpu


# ---------------------------------------------------------------------------
# small static helpers
# ---------------------------------------------------------------------------
def _round_up(n, m):
    return ((n + m - 1) // m) * m


def _time_plan(T):
    """(padded T, time tile) for the 1x1 convs; tile is a 128-multiple or full T."""
    for cand in (512, 256, 128):
        if T % cand == 0:
            return T, cand
    if T <= 1024:
        return T, T
    return _round_up(T, 256), 256


def _vmem_budget():
    """Per-generation (tile budget, vmem_limit_bytes) - conservative fallbacks."""
    try:
        phys = int(pltpu.get_tpu_info().vmem_capacity_bytes)
    except Exception:
        phys = 64 << 20                     # conservative: v7x per-TensorCore VMEM
    budget = min(max(phys // 3, 8 << 20), 32 << 20)
    limit = min(max((phys * 3) // 4, 32 << 20), 64 << 20)
    return budget, limit


def _fused_plan(nfr, C, n_fft, fpad):
    """(padded frame count, frame tile t2, vmem_limit) for the fused spectral kernel.

    t2 is a multiple of 8 (keeps every in-kernel reshape tile-aligned) and sized so
    the double-buffered blocks + intermediates fit the per-generation VMEM budget.
    """
    budget, limit = _vmem_budget()
    # constants, counted double-buffered to stay safe even if Buffered(1) is ignored
    const_bytes = 2 * 4 * (n_fft * 2 * fpad        # packed STFT basis
                           + 2 * fpad * n_fft      # ISTFT bases (re + im)
                           + 4 * C * C             # mix weights
                           + 2 * C * 2 * fpad)     # gamma + beta blocks
    # per-frame f32 bytes: in/out blocks (2x buffered) + spectral intermediates
    per_frame = 4 * C * (6 * n_fft + 10 * fpad)
    avail = max(budget - const_bytes, 8 * per_frame)
    t2_cap = max(8, (avail // per_frame) // 8 * 8)
    t2 = int(min(t2_cap, 256, _round_up(nfr, 8)))
    nfr_p = _round_up(nfr, t2)
    # TODO(synk): for very large C (C*t2*fpad blocks beyond the budget even at t2=8)
    # fall back to a split (unfused) spectral path.
    return nfr_p, t2, limit


def _const_spec(block_shape, index_map):
    """BlockSpec for constant-index blocks; single-buffer big ones to save VMEM."""
    nbytes = 4 * int(math.prod(block_shape))
    if nbytes >= (1 << 20):
        try:
            return pl.BlockSpec(block_shape, index_map, pipeline_mode=pl.Buffered(1))
        except Exception:
            pass
    return pl.BlockSpec(block_shape, index_map)


# ---------------------------------------------------------------------------
# Pallas kernels
# ---------------------------------------------------------------------------
def _cmix_silu_kernel(x_ref, w_ref, o_ref):
    # conv1: y = silu(W @ x)   x:(Cin,Tt)  W:(Cout,Cin)  -> (Cout,Tt)
    y = jnp.dot(w_ref[...], x_ref[0], preferred_element_type=jnp.float32)
    o_ref[0] = y * jax.nn.sigmoid(y)


def _cmix_res_kernel(x_ref, r_ref, w_ref, o_ref):
    # conv2 with fused residual: y = W @ (h + fu_out)
    o_ref[0] = jnp.dot(w_ref[...], x_ref[0] + r_ref[0],
                       preferred_element_type=jnp.float32)


def _fourier_fused_kernel(f_ref, sb_ref, g_ref, b_ref, wm_ref, ia_ref, ib_ref, o_ref):
    # Fused spectral path for one (frame tile, batch) grid point:
    #   STFT matmul -> BSFT modulate + ReLU -> 1x1 Conv2d over 2C spectral channels
    #   -> ISTFT synthesis matmul.  The spectrum never leaves VMEM.
    C = f_ref.shape[1]
    t2 = f_ref.shape[2]
    n_fft = f_ref.shape[3]
    fpad = ia_ref.shape[0]
    two_f = 2 * fpad

    # --- STFT: (C*t2, n_fft) @ (n_fft, 2*fpad) -> packed spectrum [re | im] ---
    frames2 = f_ref[0].reshape(C * t2, n_fft)
    spec = jnp.dot(frames2, sb_ref[...], preferred_element_type=jnp.float32)

    # --- BSFT modulation + ReLU (gamma/beta are per (channel, freq), bcast over t) ---
    spec3 = spec.reshape(C, t2, two_f)
    g = g_ref[0][:, None, :]
    b = b_ref[0][:, None, :]
    xm = jnp.maximum(spec3 * (1.0 + g) + b, 0.0)

    # --- 1x1 Conv2d over the 2C spectral channels: 4 real (C,C) matmuls ---
    x_re = xm[:, :, :fpad].reshape(C, t2 * fpad)
    x_im = xm[:, :, fpad:].reshape(C, t2 * fpad)
    y_re = (jnp.dot(wm_ref[0], x_re, preferred_element_type=jnp.float32)
            + jnp.dot(wm_ref[1], x_im, preferred_element_type=jnp.float32))
    y_im = (jnp.dot(wm_ref[2], x_re, preferred_element_type=jnp.float32)
            + jnp.dot(wm_ref[3], x_im, preferred_element_type=jnp.float32))

    # --- ISTFT synthesis (windowed time frames) ---
    y_re2 = y_re.reshape(C, t2, fpad).reshape(C * t2, fpad)
    y_im2 = y_im.reshape(C, t2, fpad).reshape(C * t2, fpad)
    ft = (jnp.dot(y_re2, ia_ref[...], preferred_element_type=jnp.float32)
          + jnp.dot(y_im2, ib_ref[...], preferred_element_type=jnp.float32))
    o_ref[0] = ft.reshape(C, t2, n_fft)


# ---------------------------------------------------------------------------
# Pallas wrappers
# ---------------------------------------------------------------------------
def conv1x1_silu(x, w, t_plan, vmem_limit):
    B, Cin, T = x.shape
    Tp, Tt = t_plan
    if Tp != T:
        x = jnp.pad(x, ((0, 0), (0, 0), (0, Tp - T)))
    Cout = w.shape[0]
    out = pl.pallas_call(
        _cmix_silu_kernel,
        out_shape=jax.ShapeDtypeStruct((B, Cout, Tp), jnp.float32),
        grid=(Tp // Tt, B),
        in_specs=[
            pl.BlockSpec((1, Cin, Tt), lambda t, b: (b, 0, t)),
            _const_spec((Cout, Cin), lambda t, b: (0, 0)),
        ],
        out_specs=pl.BlockSpec((1, Cout, Tt), lambda t, b: (b, 0, t)),
        compiler_params=pltpu.CompilerParams(
            dimension_semantics=("parallel", "parallel"),
            vmem_limit_bytes=vmem_limit),
    )(x, w)
    return out[:, :, :T] if Tp != T else out


def conv1x1_residual(h, r, w, t_plan, vmem_limit):
    B, C, T = h.shape
    Tp, Tt = t_plan
    if Tp != T:
        h = jnp.pad(h, ((0, 0), (0, 0), (0, Tp - T)))
        r = jnp.pad(r, ((0, 0), (0, 0), (0, Tp - T)))
    Cout = w.shape[0]
    out = pl.pallas_call(
        _cmix_res_kernel,
        out_shape=jax.ShapeDtypeStruct((B, Cout, Tp), jnp.float32),
        grid=(Tp // Tt, B),
        in_specs=[
            pl.BlockSpec((1, C, Tt), lambda t, b: (b, 0, t)),
            pl.BlockSpec((1, C, Tt), lambda t, b: (b, 0, t)),
            _const_spec((Cout, C), lambda t, b: (0, 0)),
        ],
        out_specs=pl.BlockSpec((1, Cout, Tt), lambda t, b: (b, 0, t)),
        compiler_params=pltpu.CompilerParams(
            dimension_semantics=("parallel", "parallel"),
            vmem_limit_bytes=vmem_limit),
    )(h, r, w)
    return out[:, :, :T] if Tp != T else out


def fourier_spectral(frames, stft_basis, gamma_p, beta_p, w4, ia, ib, t2, vmem_limit):
    """Fused STFT -> BSFT -> 1x1 conv -> ISTFT.  frames: (B, C, nfr_p, n_fft)."""
    B, C, nfr_p, n_fft = frames.shape
    F2p = stft_basis.shape[1]
    fpad = ia.shape[0]
    nT = nfr_p // t2
    return pl.pallas_call(
        _fourier_fused_kernel,
        out_shape=jax.ShapeDtypeStruct((B, C, nfr_p, n_fft), jnp.float32),
        grid=(nT, B),                       # frame tiles outermost (megacore)
        in_specs=[
            pl.BlockSpec((1, C, t2, n_fft), lambda t, b: (b, 0, t, 0)),
            _const_spec((n_fft, F2p), lambda t, b: (0, 0)),
            pl.BlockSpec((1, C, F2p), lambda t, b: (b, 0, 0)),
            pl.BlockSpec((1, C, F2p), lambda t, b: (b, 0, 0)),
            _const_spec((4, C, C), lambda t, b: (0, 0, 0)),
            _const_spec((fpad, n_fft), lambda t, b: (0, 0)),
            _const_spec((fpad, n_fft), lambda t, b: (0, 0)),
        ],
        out_specs=pl.BlockSpec((1, C, t2, n_fft), lambda t, b: (b, 0, t, 0)),
        compiler_params=pltpu.CompilerParams(
            dimension_semantics=("parallel", "parallel"),
            vmem_limit_bytes=vmem_limit),
    )(frames, stft_basis, gamma_p, beta_p, w4, ia, ib)


# ---------------------------------------------------------------------------
# STFT / ISTFT bases (torch.stft semantics: center, reflect pad, hann(periodic),
# normalized=True, onesided=True).  Window & 1/sqrt(n_fft) folded into the bases;
# frequency axis zero-padded to a lane-aligned width (fpad, VMEM-only overhead).
# ---------------------------------------------------------------------------
def hann_window(n):
    return 0.5 - 0.5 * jnp.cos(2.0 * jnp.pi * jnp.arange(n, dtype=jnp.float32) / n)


def make_stft_basis(n_fft, window, fpad):
    F = n_fft // 2 + 1
    k = jnp.arange(n_fft, dtype=jnp.float32)[:, None]
    w = jnp.arange(F, dtype=jnp.float32)[None, :]
    ang = 2.0 * jnp.pi * k * w / n_fft
    scale = 1.0 / jnp.sqrt(jnp.float32(n_fft))               # normalized=True
    re = jnp.cos(ang) * window[:, None] * scale              # (n_fft, F)
    im = -jnp.sin(ang) * window[:, None] * scale
    basis = jnp.zeros((n_fft, 2 * fpad), jnp.float32)
    basis = basis.at[:, :F].set(re)
    basis = basis.at[:, fpad:fpad + F].set(im)
    return basis


def make_istft_bases(n_fft, window, fpad):
    F = n_fft // 2 + 1
    w = jnp.arange(F, dtype=jnp.float32)[:, None]
    k = jnp.arange(n_fft, dtype=jnp.float32)[None, :]
    ang = 2.0 * jnp.pi * w * k / n_fft
    edge = (jnp.arange(F) == 0) | (jnp.arange(F) == n_fft // 2)
    c = jnp.where(edge, 1.0, 2.0)[:, None]
    scale = jnp.sqrt(jnp.float32(n_fft))                      # undo normalized=True
    A = c * jnp.cos(ang) / n_fft * window[None, :] * scale
    Bm = (jnp.where(edge, 0.0, 1.0)[:, None] * (-c * jnp.sin(ang) / n_fft)
          * window[None, :] * scale)
    Af = jnp.zeros((fpad, n_fft), jnp.float32).at[:F].set(A)
    Bf = jnp.zeros((fpad, n_fft), jnp.float32).at[:F].set(Bm)
    return Af, Bf


# ---------------------------------------------------------------------------
# tiny BSFT band convs (left to XLA per perf review) and gamma/beta packing
# ---------------------------------------------------------------------------
def _conv1d_k3(x, w, b, act=None):
    # TODO(synk): these (B,2,F)-sized k=3 convs are too tiny to amortize a
    # pallas_call launch; intentionally left to XLA per the performance review.
    Fdim = x.shape[-1]
    xp = jnp.pad(x, ((0, 0), (0, 0), (1, 1)))
    y = b[None, :, None].astype(jnp.float32)
    for k in range(3):
        y = y + jnp.einsum("oc,bcf->bof", w[:, :, k], xp[:, :, k:k + Fdim])
    if act == "silu":
        y = y * jax.nn.sigmoid(y)
    return y


def _pack_reim(g, Fdim, fpad):
    # (B, 2C, F) interleaved re/im channels -> (B, C, 2*fpad) padded feature rows
    B, C2, _ = g.shape
    C = C2 // 2
    z = jnp.zeros((B, C, fpad - Fdim), jnp.float32)
    return jnp.concatenate([g[:, 0::2, :], z, g[:, 1::2, :], z], axis=-1)


def _split_mix_weight(W):
    # Conv2d(2C->2C, k=1) weight, interleaved re/im channels -> 4 (C,C) blocks.
    wrr = W[0::2, 0::2]
    wri = W[0::2, 1::2]
    wir = W[1::2, 0::2]
    wii = W[1::2, 1::2]
    return jnp.stack([wrr, wri, wir, wii], axis=0)


# ---------------------------------------------------------------------------
# FourierUnit / SpectralTransform forward
# ---------------------------------------------------------------------------
def fourier_unit(params, h, band, n_fft, hop):
    B, C, T = h.shape
    F = n_fft // 2 + 1
    fpad = _round_up(F, 128)
    window = params["window"]
    pad = n_fft // 2

    # ---- BSFT gamma/beta from the band conditioning ----
    actv = _conv1d_k3(band, params["mlp_shared_w"], params["mlp_shared_b"], act="silu")
    gamma = _conv1d_k3(actv, params["mlp_gamma_w"], params["mlp_gamma_b"])
    beta = _conv1d_k3(actv, params["mlp_beta_w"], params["mlp_beta_b"])
    gamma_p = _pack_reim(gamma, F, fpad)      # (B, C, 2*fpad)
    beta_p = _pack_reim(beta, F, fpad)

    # ---- STFT framing (reflect pad + overlapping-window gather stays in JAX) ----
    # TODO(synk): the overlapping frame gather / overlap-add scatter have no clean
    # BlockSpec form; a manual-DMA version would cut the ~n_fft/hop write
    # amplification but is left to XLA here per the review's priority.
    hp = jnp.pad(h, ((0, 0), (0, 0), (pad, pad)), mode="reflect")
    nfr = 1 + (hp.shape[-1] - n_fft) // hop
    pos = jnp.arange(nfr)[:, None] * hop + jnp.arange(n_fft)[None, :]
    frames = hp[:, :, pos]                    # (B, C, nfr, n_fft)

    nfr_p, t2, vmem_limit = _fused_plan(nfr, C, n_fft, fpad)
    if nfr_p != nfr:
        frames = jnp.pad(frames, ((0, 0), (0, 0), (0, nfr_p - nfr), (0, 0)))

    # ---- fused STFT + BSFT + ReLU + 1x1 Conv2d + ISTFT (spectrum stays in VMEM) ----
    w4 = _split_mix_weight(params["fu_conv_w"])
    ft = fourier_spectral(frames, params["stft_basis"], gamma_p, beta_p, w4,
                          params["istft_basis_re"], params["istft_basis_im"],
                          t2, vmem_limit)

    # ---- overlap-add + window-envelope normalization (plain JAX) ----
    ft = ft[:, :, :nfr, :].reshape(B * C, nfr, n_fft)
    t_total = (nfr - 1) * hop + n_fft
    ola = jnp.zeros((B * C, t_total), jnp.float32).at[:, pos].add(ft)
    wss = jnp.zeros((t_total,), jnp.float32).at[pos].add(
        jnp.broadcast_to(window ** 2, (nfr, n_fft)))
    wss = jnp.maximum(wss, 1e-12)             # guard NOLA edge cases
    sig = ola[:, pad:t_total - pad] / wss[pad:t_total - pad][None, :]
    return sig.reshape(B, C, T)


def spectral_transform(params, x, band, n_fft, hop):
    B, Cin, T = x.shape
    tplan = _time_plan(T)
    _, vmem_limit = _vmem_budget()
    h = conv1x1_silu(x, params["conv1_w"], tplan, vmem_limit)          # silu(conv1(x))
    fu_out = fourier_unit(params, h, band, n_fft, hop)                 # FourierUnit
    out = conv1x1_residual(h, fu_out, params["conv2_w"], tplan, vmem_limit)
    return out


# ---------------------------------------------------------------------------
# Deterministic parameter init (shapes match the PyTorch module __init__)
# ---------------------------------------------------------------------------
def init_params(key, in_channels, out_channels, bsft_channels, n_fft):
    C = out_channels // 2
    C2 = 2 * C
    nh = bsft_channels
    F = n_fft // 2 + 1
    fpad = _round_up(F, 128)
    ks = jax.random.split(key, 9)

    def kaiming(k, shape, fan_in):
        return jax.random.normal(k, shape, jnp.float32) * jnp.sqrt(2.0 / fan_in)

    def unif(k, shape, fan_in):
        bound = 1.0 / jnp.sqrt(jnp.float32(fan_in))
        return jax.random.uniform(k, shape, jnp.float32, -bound, bound)

    window = hann_window(n_fft)
    ia, ib = make_istft_bases(n_fft, window, fpad)
    return {
        "conv1_w": kaiming(ks[0], (C, in_channels), in_channels),   # Conv1d k=1, no bias
        "conv2_w": kaiming(ks[1], (out_channels, C), C),            # Conv1d k=1, no bias
        "fu_conv_w": kaiming(ks[2], (C2, C2), C2),                  # Conv2d k=1, no bias
        "mlp_shared_w": kaiming(ks[3], (nh, 2, 3), 2 * 3),          # Conv1d(2, nh, 3)
        "mlp_shared_b": unif(ks[4], (nh,), 2 * 3),
        "mlp_gamma_w": kaiming(ks[5], (C2, nh, 3), nh * 3),         # Conv1d(nh, 2C, 3)
        "mlp_gamma_b": unif(ks[6], (C2,), nh * 3),
        "mlp_beta_w": kaiming(ks[7], (C2, nh, 3), nh * 3),
        "mlp_beta_b": unif(ks[8], (C2,), nh * 3),
        "window": window,
        "stft_basis": make_stft_basis(n_fft, window, fpad),
        "istft_basis_re": ia,
        "istft_basis_im": ib,
    }


if __name__ == "__main__":
    B, IN_CH, OUT_CH, BSFT_CH = 2, 4, 8, 8
    N_FFT, HOP = 32, 8                  # small audio_kwargs: filter/win=32, hop=8
    T = 128                             # multiple of HOP (istft returns same length)
    F = N_FFT // 2 + 1

    key = jax.random.PRNGKey(0)
    kp, kx, kb = jax.random.split(key, 3)
    params = init_params(kp, IN_CH, OUT_CH, BSFT_CH, N_FFT)
    x = jax.random.normal(kx, (B, IN_CH, T), jnp.float32)
    band = jax.random.normal(kb, (B, 2, F), jnp.float32)    # (B, 2, n_freq)

    fwd = jax.jit(partial(spectral_transform, n_fft=N_FFT, hop=HOP))
    out = fwd(params, x, band)
    out = jax.block_until_ready(out)
    assert out.shape == (B, OUT_CH, T), out.shape
    assert bool(jnp.all(jnp.isfinite(out)))
    print("KERNEL_OK")
</pallas_src>

<mosaic_0001>
module attributes {stable_mosaic.version = 11 : i64} {
  func.func private @main(%arg0: i32) attributes {dimension_semantics = [#tpu.dimension_semantics<core_parallel>], iteration_bounds = array<i64: 2>, tpu.core_type = #tpu.core_type<sc_scalar_subcore>, window_params = []} {
    return
  }
}

module attributes {stable_mosaic.version = 11 : i64} {
  func.func private @main(%arg0: i32) attributes {dimension_semantics = [#tpu.dimension_semantics<core_parallel>], iteration_bounds = array<i64: 2>, tpu.core_type = #tpu.core_type<sc_scalar_subcore>, window_params = []} {
    return
  }
}

module attributes {stable_mosaic.version = 11 : i64} {
  func.func @_cmix_silu_kernel(%arg0: i32, %arg1: i32, %arg2: memref<1x4x128xf32, #tpu.memory_space<vmem>>, %arg3: memref<4x4xf32, #tpu.memory_space<vmem>>, %arg4: memref<1x4x128xf32, #tpu.memory_space<vmem>>) attributes {dimension_semantics = [#tpu.dimension_semantics<parallel>, #tpu.dimension_semantics<parallel>], iteration_bounds = array<i64: 1, 2>, scalar_prefetch = 0 : i64, scratch_operands = 0 : i64, tpu.core_type = #tpu.core_type<tc>, window_params = [{transform_indices = @transform_0, window_bounds = array<i64: 1, 4, 128>}, {pipeline_mode = #tpu.pipeline_mode<synchronous>, transform_indices = @transform_1, window_bounds = array<i64: 4, 4>}, {transform_indices = @transform_2, window_bounds = array<i64: 1, 4, 128>}]} {
    %c0 = arith.constant 0 : index
    %c0_0 = arith.constant 0 : index
    %0 = vector.load %arg3[%c0, %c0_0] : memref<4x4xf32, #tpu.memory_space<vmem>>, vector<4x4xf32>
    %c0_1 = arith.constant 0 : index
    %c0_2 = arith.constant 0 : index
    %c0_3 = arith.constant 0 : index
    %1 = vector.load %arg2[%c0_1, %c0_2, %c0_3] : memref<1x4x128xf32, #tpu.memory_space<vmem>>, vector<1x4x128xf32>
    %2 = vector.shape_cast %1 : vector<1x4x128xf32> to vector<4x128xf32>
    %cst = arith.constant dense<0.000000e+00> : vector<4x128xf32>
    %3 = tpu.matmul %0, %2, %cst {dimension_numbers = #tpu.dot_dimension_numbers<[1], [0], [0], [1], [0, 0, 1, 1], [], []>} : vector<4x4xf32>, vector<4x128xf32>, vector<4x128xf32> -> vector<4x128xf32>
    %4 = arith.negf %3 : vector<4x128xf32>
    %5 = math.exp %4 : vector<4x128xf32>
    %cst_4 = arith.constant 1.000000e+00 : f32
    %6 = vector.broadcast %cst_4 : f32 to vector<4x128xf32>
    %7 = arith.addf %6, %5 : vector<4x128xf32>
    %8 = arith.divf %6, %7 : vector<4x128xf32>
    %9 = arith.mulf %3, %8 : vector<4x128xf32>
    %c0_5 = arith.constant 0 : index
    %c0_6 = arith.constant 0 : index
    %c0_7 = arith.constant 0 : index
    %10 = vector.load %arg4[%c0_5, %c0_6, %c0_7] : memref<1x4x128xf32, #tpu.memory_space<vmem>>, vector<1x4x128xf32>
    %11 = vector.shape_cast %10 : vector<1x4x128xf32> to vector<4x128xf32>
    %12 = vector.shape_cast %9 : vector<4x128xf32> to vector<1x4x128xf32>
    tpu.vector_store %arg4[%c0_5, %c0_6, %c0_7], %12 {strides = array<i32>} : memref<1x4x128xf32, #tpu.memory_space<vmem>>, vector<1x4x128xf32>,
    return
  }
  func.func @transform_0(%arg0: i32, %arg1: i32) -> (i32, i32, i32) {
    %c0_i32 = arith.constant 0 : i32
    %c0_i32_0 = arith.constant 0 : i32
    return %arg1, %c0_i32, %arg0 : i32, i32, i32
  }
  func.func @transform_1(%arg0: i32, %arg1: i32) -> (i32, i32) {
    %c0_i32 = arith.constant 0 : i32
    %c0_i32_0 = arith.constant 0 : i32
    %c0_i32_1 = arith.constant 0 : i32
    return %c0_i32, %c0_i32_0 : i32, i32
  }
  func.func @transform_2(%arg0: i32, %arg1: i32) -> (i32, i32, i32) {
    %c0_i32 = arith.constant 0 : i32
    %c0_i32_0 = arith.constant 0 : i32
    return %arg1, %c0_i32, %arg0 : i32, i32, i32
  }
}

module attributes {stable_mosaic.version = 11 : i64} {
  func.func @_fourier_fused_kernel(%arg0: i32, %arg1: i32, %arg2: memref<1x4x24x32xf32, #tpu.memory_space<vmem>>, %arg3: memref<32x256xf32, #tpu.memory_space<vmem>>, %arg4: memref<1x4x256xf32, #tpu.memory_space<vmem>>, %arg5: memref<1x4x256xf32, #tpu.memory_space<vmem>>, %arg6: memref<4x4x4xf32, #tpu.memory_space<vmem>>, %arg7: memref<128x32xf32, #tpu.memory_space<vmem>>, %arg8: memref<128x32xf32, #tpu.memory_space<vmem>>, %arg9: memref<1x4x24x32xf32, #tpu.memory_space<vmem>>) attributes {dimension_semantics = [#tpu.dimension_semantics<parallel>, #tpu.dimension_semantics<parallel>], iteration_bounds = array<i64: 1, 2>, scalar_prefetch = 0 : i64, scratch_operands = 0 : i64, tpu.core_type = #tpu.core_type<tc>, window_params = [{transform_indices = @transform_0, window_bounds = array<i64: 1, 4, 24, 32>}, {pipeline_mode = #tpu.pipeline_mode<synchronous>, transform_indices = @transform_1, window_bounds = array<i64: 32, 256>}, {transform_indices = @transform_2, window_bounds = array<i64: 1, 4, 256>}, {transform_indices = @transform_3, window_bounds = array<i64: 1, 4, 256>}, {pipeline_mode = #tpu.pipeline_mode<synchronous>, transform_indices = @transform_4, window_bounds = array<i64: 4, 4, 4>}, {pipeline_mode = #tpu.pipeline_mode<synchronous>, transform_indices = @transform_5, window_bounds = array<i64: 128, 32>}, {pipeline_mode = #tpu.pipeline_mode<synchronous>, transform_indices = @transform_6, window_bounds = array<i64: 128, 32>}, {transform_indices = @transform_7, window_bounds = array<i64: 1, 4, 24, 32>}]} {
    %c0 = arith.constant 0 : index
    %c0_0 = arith.constant 0 : index
    %c0_1 = arith.constant 0 : index
    %c0_2 = arith.constant 0 : index
    %0 = vector.load %arg2[%c0, %c0_0, %c0_1, %c0_2] : memref<1x4x24x32xf32, #tpu.memory_space<vmem>>, vector<1x4x24x32xf32>
    %1 = vector.shape_cast %0 : vector<1x4x24x32xf32> to vector<4x24x32xf32>
    %2 = vector.shape_cast %1 : vector<4x24x32xf32> to vector<96x32xf32>
    %c0_3 = arith.constant 0 : index
    %c0_4 = arith.constant 0 : index
    %3 = vector.load %arg3[%c0_3, %c0_4] : memref<32x256xf32, #tpu.memory_space<vmem>>, vector<32x256xf32>
    %cst = arith.constant dense<0.000000e+00> : vector<96x256xf32>
    %4 = tpu.matmul %2, %3, %cst {dimension_numbers = #tpu.dot_dimension_numbers<[1], [0], [0], [1], [0, 0, 1, 1], [], []>} : vector<96x32xf32>, vector<32x256xf32>, vector<96x256xf32> -> vector<96x256xf32>
    %5 = vector.shape_cast %4 : vector<96x256xf32> to vector<4x24x256xf32>
    %c0_5 = arith.constant 0 : index
    %c0_6 = arith.constant 0 : index
    %c0_7 = arith.constant 0 : index
    %6 = vector.load %arg4[%c0_5, %c0_6, %c0_7] : memref<1x4x256xf32, #tpu.memory_space<vmem>>, vector<1x4x256xf32>
    %7 = vector.shape_cast %6 : vector<1x4x256xf32> to vector<4x256xf32>
    %8 = vector.shape_cast %7 : vector<4x256xf32> to vector<4x1x256xf32>
    %c0_8 = arith.constant 0 : index
    %c0_9 = arith.constant 0 : index
    %c0_10 = arith.constant 0 : index
    %9 = vector.load %arg5[%c0_8, %c0_9, %c0_10] : memref<1x4x256xf32, #tpu.memory_space<vmem>>, vector<1x4x256xf32>
    %10 = vector.shape_cast %9 : vector<1x4x256xf32> to vector<4x256xf32>
    %11 = vector.shape_cast %10 : vector<4x256xf32> to vector<4x1x256xf32>
    %cst_11 = arith.constant 1.000000e+00 : f32
    %12 = vector.broadcast %cst_11 : f32 to vector<4x1x256xf32>
    %13 = arith.addf %12, %8 : vector<4x1x256xf32>
    %14 = vector.broadcast %13 : vector<4x1x256xf32> to vector<4x24x256xf32>
    %15 = arith.mulf %5, %14 : vector<4x24x256xf32>
    %16 = vector.broadcast %11 : vector<4x1x256xf32> to vector<4x24x256xf32>
    %17 = arith.addf %15, %16 : vector<4x24x256xf32>
    %cst_12 = arith.constant 0.000000e+00 : f32
    %18 = vector.broadcast %cst_12 : f32 to vector<4x24x256xf32>
    %19 = arith.maximumf %17, %18 : vector<4x24x256xf32>
    %20 = vector.extract_strided_slice %19 {offsets = [0, 0, 0], sizes = [4, 24, 128], strides = [1, 1, 1]} : vector<4x24x256xf32> to vector<4x24x128xf32>
    %21 = vector.shape_cast %20 : vector<4x24x128xf32> to vector<4x3072xf32>
    %22 = vector.extract_strided_slice %19 {offsets = [0, 0, 128], sizes = [4, 24, 128], strides = [1, 1, 1]} : vector<4x24x256xf32> to vector<4x24x128xf32>
    %23 = vector.shape_cast %22 : vector<4x24x128xf32> to vector<4x3072xf32>
    %c0_13 = arith.constant 0 : index
    %c0_14 = arith.constant 0 : index
    %c0_15 = arith.constant 0 : index
    %24 = vector.load %arg6[%c0_13, %c0_14, %c0_15] : memref<4x4x4xf32, #tpu.memory_space<vmem>>, vector<1x4x4xf32>
    %25 = vector.shape_cast %24 : vector<1x4x4xf32> to vector<4x4xf32>
    %cst_16 = arith.constant dense<0.000000e+00> : vector<4x3072xf32>
    %26 = tpu.matmul %25, %21, %cst_16 {dimension_numbers = #tpu.dot_dimension_numbers<[1], [0], [0], [1], [0, 0, 1, 1], [], []>} : vector<4x4xf32>, vector<4x3072xf32>, vector<4x3072xf32> -> vector<4x3072xf32>
    %c1 = arith.constant 1 : index
    %c0_17 = arith.constant 0 : index
    %c0_18 = arith.constant 0 : index
    %27 = vector.load %arg6[%c1, %c0_17, %c0_18] : memref<4x4x4xf32, #tpu.memory_space<vmem>>, vector<1x4x4xf32>
    %28 = vector.shape_cast %27 : vector<1x4x4xf32> to vector<4x4xf32>
    %cst_19 = arith.constant dense<0.000000e+00> : vector<4x3072xf32>
    %29 = tpu.matmul %28, %23, %cst_19 {dimension_numbers = #tpu.dot_dimension_numbers<[1], [0], [0], [1], [0, 0, 1, 1], [], []>} : vector<4x4xf32>, vector<4x3072xf32>, vector<4x3072xf32> -> vector<4x3072xf32>
    %30 = arith.addf %26, %29 : vector<4x3072xf32>
    %c2 = arith.constant 2 : index
    %c0_20 = arith.constant 0 : index
    %c0_21 = arith.constant 0 : index
    %31 = vector.load %arg6[%c2, %c0_20, %c0_21] : memref<4x4x4xf32, #tpu.memory_space<vmem>>, vector<1x4x4xf32>
    %32 = vector.shape_cast %31 : vector<1x4x4xf32> to vector<4x4xf32>
    %cst_22 = arith.constant dense<0.000000e+00> : vector<4x3072xf32>
    %33 = tpu.matmul %32, %21, %cst_22 {dimension_numbers = #tpu.dot_dimension_numbers<[1], [0], [0], [1], [0, 0, 1, 1], [], []>} : vector<4x4xf32>, vector<4x3072xf32>, vector<4x3072xf32> -> vector<4x3072xf32>
    %c3 = arith.constant 3 : index
    %c0_23 = arith.constant 0 : index
    %c0_24 = arith.constant 0 : index
    %34 = vector.load %arg6[%c3, %c0_23, %c0_24] : memref<4x4x4xf32, #tpu.memory_space<vmem>>, vector<1x4x4xf32>
    %35 = vector.shape_cast %34 : vector<1x4x4xf32> to vector<4x4xf32>
    %cst_25 = arith.constant dense<0.000000e+00> : vector<4x3072xf32>
    %36 = tpu.matmul %35, %23, %cst_25 {dimension_numbers = #tpu.dot_dimension_numbers<[1], [0], [0], [1], [0, 0, 1, 1], [], []>} : vector<4x4xf32>, vector<4x3072xf32>, vector<4x3072xf32> -> vector<4x3072xf32>
    %37 = arith.addf %33, %36 : vector<4x3072xf32>
    %38 = vector.shape_cast %30 : vector<4x3072xf32> to vector<4x24x128xf32>
    %39 = vector.shape_cast %38 : vector<4x24x128xf32> to vector<96x128xf32>
    %40 = vector.shape_cast %37 : vector<4x3072xf32> to vector<4x24x128xf32>
    %41 = vector.shape_cast %40 : vector<4x24x128xf32> to vector<96x128xf32>
    %c0_26 = arith.constant 0 : index
    %c0_27 = arith.constant 0 : index
    %42 = vector.load %arg7[%c0_26, %c0_27] : memref<128x32xf32, #tpu.memory_space<vmem>>, vector<128x32xf32>
    %cst_28 = arith.constant dense<0.000000e+00> : vector<96x32xf32>
    %43 = tpu.matmul %39, %42, %cst_28 {dimension_numbers = #tpu.dot_dimension_numbers<[1], [0], [0], [1], [0, 0, 1, 1], [], []>} : vector<96x128xf32>, vector<128x32xf32>, vector<96x32xf32> -> vector<96x32xf32>
    %c0_29 = arith.constant 0 : index
    %c0_30 = arith.constant 0 : index
    %44 = vector.load %arg8[%c0_29, %c0_30] : memref<128x32xf32, #tpu.memory_space<vmem>>, vector<128x32xf32>
    %cst_31 = arith.constant dense<0.000000e+00> : vector<96x32xf32>
    %45 = tpu.matmul %41, %44, %cst_31 {dimension_numbers = #tpu.dot_dimension_numbers<[1], [0], [0], [1], [0, 0, 1, 1], [], []>} : vector<96x128xf32>, vector<128x32xf32>, vector<96x32xf32> -> vector<96x32xf32>
    %46 = arith.addf %43, %45 : vector<96x32xf32>
    %47 = vector.shape_cast %46 : vector<96x32xf32> to vector<4x24x32xf32>
    %c0_32 = arith.constant 0 : index
    %c0_33 = arith.constant 0 : index
    %c0_34 = arith.constant 0 : index
    %c0_35 = arith.constant 0 : index
    %48 = vector.load %arg9[%c0_32, %c0_33, %c0_34, %c0_35] : memref<1x4x24x32xf32, #tpu.memory_space<vmem>>, vector<1x4x24x32xf32>
    %49 = vector.shape_cast %48 : vector<1x4x24x32xf32> to vector<4x24x32xf32>
    %50 = vector.shape_cast %47 : vector<4x24x32xf32> to vector<1x4x24x32xf32>
    tpu.vector_store %arg9[%c0_32, %c0_33, %c0_34, %c0_35], %50 {strides = array<i32>} : memref<1x4x24x32xf32, #tpu.memory_space<vmem>>, vector<1x4x24x32xf32>,
    return
  }
  func.func @transform_0(%arg0: i32, %arg1: i32) -> (i32, i32, i32, i32) {
    %c0_i32 = arith.constant 0 : i32
    %c0_i32_0 = arith.constant 0 : i32
    %c0_i32_1 = arith.constant 0 : i32
    return %arg1, %c0_i32, %arg0, %c0_i32_0 : i32, i32, i32, i32
  }
  func.func @transform_1(%arg0: i32, %arg1: i32) -> (i32, i32) {
    %c0_i32 = arith.constant 0 : i32
    %c0_i32_0 = arith.constant 0 : i32
    %c0_i32_1 = arith.constant 0 : i32
    return %c0_i32, %c0_i32_0 : i32, i32
  }
  func.func @transform_2(%arg0: i32, %arg1: i32) -> (i32, i32, i32) {
    %c0_i32 = arith.constant 0 : i32
    %c0_i32_0 = arith.constant 0 : i32
    %c0_i32_1 = arith.constant 0 : i32
    return %arg1, %c0_i32, %c0_i32_0 : i32, i32, i32
  }
  func.func @transform_3(%arg0: i32, %arg1: i32) -> (i32, i32, i32) {
    %c0_i32 = arith.constant 0 : i32
    %c0_i32_0 = arith.constant 0 : i32
    %c0_i32_1 = arith.constant 0 : i32
    return %arg1, %c0_i32, %c0_i32_0 : i32, i32, i32
  }
  func.func @transform_4(%arg0: i32, %arg1: i32) -> (i32, i32, i32) {
    %c0_i32 = arith.constant 0 : i32
    %c0_i32_0 = arith.constant 0 : i32
    %c0_i32_1 = arith.constant 0 : i32
    %c0_i32_2 = arith.constant 0 : i32
    return %c0_i32, %c0_i32_0, %c0_i32_1 : i32, i32, i32
  }
  func.func @transform_5(%arg0: i32, %arg1: i32) -> (i32, i32) {
    %c0_i32 = arith.constant 0 : i32
    %c0_i32_0 = arith.constant 0 : i32
    %c0_i32_1 = arith.constant 0 : i32
    return %c0_i32, %c0_i32_0 : i32, i32
  }
  func.func @transform_6(%arg0: i32, %arg1: i32) -> (i32, i32) {
    %c0_i32 = arith.constant 0 : i32
    %c0_i32_0 = arith.constant 0 : i32
    %c0_i32_1 = arith.constant 0 : i32
    return %c0_i32, %c0_i32_0 : i32, i32
  }
  func.func @transform_7(%arg0: i32, %arg1: i32) -> (i32, i32, i32, i32) {
    %c0_i32 = arith.constant 0 : i32
    %c0_i32_0 = arith.constant 0 : i32
    %c0_i32_1 = arith.constant 0 : i32
    return %arg1, %c0_i32, %arg0, %c0_i32_0 : i32, i32, i32, i32
  }
}

module attributes {stable_mosaic.version = 11 : i64} {
  func.func @_cmix_res_kernel(%arg0: i32, %arg1: i32, %arg2: memref<1x4x128xf32, #tpu.memory_space<vmem>>, %arg3: memref<1x4x128xf32, #tpu.memory_space<vmem>>, %arg4: memref<8x4xf32, #tpu.memory_space<vmem>>, %arg5: memref<1x8x128xf32, #tpu.memory_space<vmem>>) attributes {dimension_semantics = [#tpu.dimension_semantics<parallel>, #tpu.dimension_semantics<parallel>], iteration_bounds = array<i64: 1, 2>, scalar_prefetch = 0 : i64, scratch_operands = 0 : i64, tpu.core_type = #tpu.core_type<tc>, window_params = [{transform_indices = @transform_0, window_bounds = array<i64: 1, 4, 128>}, {transform_indices = @transform_1, window_bounds = array<i64: 1, 4, 128>}, {pipeline_mode = #tpu.pipeline_mode<synchronous>, transform_indices = @transform_2, window_bounds = array<i64: 8, 4>}, {transform_indices = @transform_3, window_bounds = array<i64: 1, 8, 128>}]} {
    %c0 = arith.constant 0 : index
    %c0_0 = arith.constant 0 : index
    %0 = vector.load %arg4[%c0, %c0_0] : memref<8x4xf32, #tpu.memory_space<vmem>>, vector<8x4xf32>
    %c0_1 = arith.constant 0 : index
    %c0_2 = arith.constant 0 : index
    %c0_3 = arith.constant 0 : index
    %1 = vector.load %arg2[%c0_1, %c0_2, %c0_3] : memref<1x4x128xf32, #tpu.memory_space<vmem>>, vector<1x4x128xf32>
    %2 = vector.shape_cast %1 : vector<1x4x128xf32> to vector<4x128xf32>
    %c0_4 = arith.constant 0 : index
    %c0_5 = arith.constant 0 : index
    %c0_6 = arith.constant 0 : index
    %3 = vector.load %arg3[%c0_4, %c0_5, %c0_6] : memref<1x4x128xf32, #tpu.memory_space<vmem>>, vector<1x4x128xf32>
    %4 = vector.shape_cast %3 : vector<1x4x128xf32> to vector<4x128xf32>
    %5 = arith.addf %2, %4 : vector<4x128xf32>
    %cst = arith.constant dense<0.000000e+00> : vector<8x128xf32>
    %6 = tpu.matmul %0, %5, %cst {dimension_numbers = #tpu.dot_dimension_numbers<[1], [0], [0], [1], [0, 0, 1, 1], [], []>} : vector<8x4xf32>, vector<4x128xf32>, vector<8x128xf32> -> vector<8x128xf32>
    %c0_7 = arith.constant 0 : index
    %c0_8 = arith.constant 0 : index
    %c0_9 = arith.constant 0 : index
    %7 = vector.load %arg5[%c0_7, %c0_8, %c0_9] : memref<1x8x128xf32, #tpu.memory_space<vmem>>, vector<1x8x128xf32>
    %8 = vector.shape_cast %7 : vector<1x8x128xf32> to vector<8x128xf32>
    %9 = vector.shape_cast %6 : vector<8x128xf32> to vector<1x8x128xf32>
    tpu.vector_store %arg5[%c0_7, %c0_8, %c0_9], %9 {strides = array<i32>} : memref<1x8x128xf32, #tpu.memory_space<vmem>>, vector<1x8x128xf32>,
    return
  }
  func.func @transform_0(%arg0: i32, %arg1: i32) -> (i32, i32, i32) {
    %c0_i32 = arith.constant 0 : i32
    %c0_i32_0 = arith.constant 0 : i32
    return %arg1, %c0_i32, %arg0 : i32, i32, i32
  }
  func.func @transform_1(%arg0: i32, %arg1: i32) -> (i32, i32, i32) {
    %c0_i32 = arith.constant 0 : i32
    %c0_i32_0 = arith.constant 0 : i32
    return %arg1, %c0_i32, %arg0 : i32, i32, i32
  }
  func.func @transform_2(%arg0: i32, %arg1: i32) -> (i32, i32) {
    %c0_i32 = arith.constant 0 : i32
    %c0_i32_0 = arith.constant 0 : i32
    %c0_i32_1 = arith.constant 0 : i32
    return %c0_i32, %c0_i32_0 : i32, i32
  }
  func.func @transform_3(%arg0: i32, %arg1: i32) -> (i32, i32, i32) {
    %c0_i32 = arith.constant 0 : i32
    %c0_i32_0 = arith.constant 0 : i32
    return %arg1, %c0_i32, %arg0 : i32, i32, i32
  }
}

</mosaic_0001>

<llo_original>
// kernel: spectral_transform.3
$region0: #{spectral_transform.3}
  #allocation0 [shape = 'u32[]', space=smem, size = 0x4, offset = 0x4, fixed_abs, tag = 'smem constant byte address 0x4 - core index']
  #allocation1 [shape = 'u32[144,128]{1,0:T(1,128)}', space=vmem, size = 0x12000, scoped, tag = 'internal scratch']
  %s0 = inlined_call_operand.vmem [shape: f32[2,4,128], index: 0, kind: input, shape index: {}]
  %s1 = inlined_call_operand.vmem [shape: f32[4,4], index: 1, kind: input, shape index: {}]
  %s2 = inlined_call_operand.vmem [shape: f32[2,4,128], index: 2, kind: output, shape index: {}]
  %s3 = sld [smem:[#allocation0]]
  $region41: #{spectral_transform.3} parent=0
    _
  %s5 = ssub.s32 1, %s3
  %s6 = scalar_select 0, %s5, %s3
  loop: start=0, step=1, limit=4
  $region2: #{spectral_transform.3} parent=0 // loop_pre_header
    _
  $region3: #{spectral_transform.3} parent=0 // loop_header
    %s8 = sphi 0, %s12
    %p9 = scmp.ge.s32.totalorder %s8, 4
    %s15 = sphi 0, %s27
    %s16 = sphi 0, %s23
    %s17 = sphi 0, %s15
    %s18 = sphi 0, %s16
    %s19 = sphi 0, %s17
    %s20 = sphi 0, %s18
    %s32 = sphi 0, %s34
    %s35 = sphi 0, %s32
    %s36 = sphi 0, %s35
    %s52 = sphi 0, %s36
    %s56 = sphi 0, %s56
    %s58 = sphi 0, %s56
    %s59 = sphi 0, %s58
    %s73 = sphi 0, %s59
    %s81 = sphi 0, %s83
    %s84 = sphi 0, %s81
    %s85 = sphi 0, %s84
    %s101 = sphi 0, %s85
  $region4: #{spectral_transform.3} parent=0 // loop_header_branch
    %11 = sbr.rel (%p9) target = $region8
  $region5: #{spectral_transform.3} parent=0 // loop_body
    %s13 = ssub.s32 %s8, 1
    %s14 = ssub.s32 %s8, 2
    %s21 = sadd.s32 1, %s16
    %p22 = scmp.ge.s32.totalorder %s21, 2
    %s23 = scalar_select %p22, 0, %s21
    %s24 = sadd.s32 1, %s15
    %s25 = scalar_select %p22, %s24, %s15
    %p26 = scmp.ge.s32.totalorder %s25, 1
    %s27 = scalar_select %p26, 0, %s25
    %s28 = ssub.s32 %s16, %s23
    %s29 = ssub.s32 %s15, %s27
    %s30 = sor.u32 %s28, %s29
    %p31 = scmp.eq.s32.totalorder %s30, 0
    %s33 = sadd.s32 %s32, 1
    %s34 = scalar_select %p31, %s32, %s33
    %p37 = pneg %p31
    %p38 = scmp.eq.s32.totalorder %s8, 1
    %p39 = por %p37, %p38
    %p40 = scmp.ne.s32.totalorder %s32, %s35
    %p41 = scmp.eq.s32.totalorder %s8, 0
    %p42 = por %p40, %p41
    %p43 = scmp.ne.s32.totalorder %s32, %s35
    %p44 = scmp.eq.s32.totalorder %s13, 1
    %p45 = por %p43, %p44
    %p46 = scmp.ne.s32.totalorder %s35, %s36
    %p47 = scmp.eq.s32.totalorder %s13, 0
    %p48 = por %p46, %p47
    %p49 = scmp.ne.s32.totalorder %s35, %s36
    %p50 = scmp.eq.s32.totalorder %s14, 1
    %p51 = por %p49, %p50
    %p53 = scmp.ne.s32.totalorder %s36, %s52
    %p54 = scmp.eq.s32.totalorder %s14, 0
    %p55 = por %p53, %p54
    %s57 = sadd.s32 %s56, 1
    %p60 = scmp.eq.s32.totalorder %s8, 1
    %p61 = scmp.ne.s32.totalorder %s56, %s58
    %p62 = scmp.eq.s32.totalorder %s8, 0
    %p63 = por %p61, %p62
    %p64 = scmp.ne.s32.totalorder %s56, %s58
    %p65 = scmp.eq.s32.totalorder %s13, 1
    %p66 = por %p64, %p65
    %p67 = scmp.ne.s32.totalorder %s58, %s59
    %p68 = scmp.eq.s32.totalorder %s13, 0
    %p69 = por %p67, %p68
    %p70 = scmp.ne.s32.totalorder %s58, %s59
    %p71 = scmp.eq.s32.totalorder %s14, 1
    %p72 = por %p70, %p71
    %p74 = scmp.ne.s32.totalorder %s59, %s73
    %p75 = scmp.eq.s32.totalorder %s14, 0
    %p76 = por %p74, %p75
    %s77 = ssub.s32 %s16, %s23
    %s78 = ssub.s32 %s15, %s27
    %s79 = sor.u32 %s77, %s78
    %p80 = scmp.eq.s32.totalorder %s79, 0
    %s82 = sadd.s32 %s81, 1
    %s83 = scalar_select %p80, %s81, %s82
    %p86 = pneg %p80
    %p87 = scmp.eq.s32.totalorder %s8, 1
    %p88 = por %p86, %p87
    %p89 = scmp.ne.s32.totalorder %s81, %s84
    %p90 = scmp.eq.s32.totalorder %s8, 0
    %p91 = por %p89, %p90
    %p92 = scmp.ne.s32.totalorder %s81, %s84
    %p93 = scmp.eq.s32.totalorder %s13, 1
    %p94 = por %p92, %p93
    %p95 = scmp.ne.s32.totalorder %s84, %s85
    %p96 = scmp.eq.s32.totalorder %s13, 0
    %p97 = por %p95, %p96
    %p98 = scmp.ne.s32.totalorder %s84, %s85
    %p99 = scmp.eq.s32.totalorder %s14, 1
    %p100 = por %p98, %p99
    %p102 = scmp.ne.s32.totalorder %s85, %s101
    %p103 = scmp.eq.s32.totalorder %s14, 0
    %p104 = por %p102, %p103
    %p105 = scmp.le.s32.totalorder 1, %s8
    %p106 = scmp.lt.s32.totalorder %s8, 3
    %p107 = pnand %p105, %p106
    %p108 = pneg %p107
    // Predicated region
    $region9: #{spectral_transform.3} parent=5 // pred_check
      _
    $region10: #{spectral_transform.3} parent=5 // pred_check_branch
      %110 = sbr.rel (%p107) target = $region12
    $region11: #{spectral_transform.3} parent=5 // pred_region
      %s111 = ssub.s32 %s8, 1
      // Predicated region
      $region13: #{spectral_transform.3} parent=11 // pred_check
        %p112 = pneg %p69
      $region14: #{spectral_transform.3} parent=11 // pred_check_branch
        %114 = sbr.rel (%p112) target = $region16
      $region15: #{spectral_transform.3} parent=11 // pred_region
        _
      $region16: #{spectral_transform.3} parent=11 // pred_fallthru
        _
    $region12: #{spectral_transform.3} parent=5 // pred_fallthru
      _
    %p115 = scmp.lt.s32.totalorder %s8, 2
    // Predicated region
    $region17: #{spectral_transform.3} parent=5 // pred_check
      %p116 = pneg %p115
    $region18: #{spectral_transform.3} parent=5 // pred_check_branch
      %118 = sbr.rel (%p116) target = $region20
    $region19: #{spectral_transform.3} parent=5 // pred_region
      // Predicated region
      $region21: #{spectral_transform.3} parent=19 // pred_check
        %p119 = pneg %p42
      $region22: #{spectral_transform.3} parent=19 // pred_check_branch
        %121 = sbr.rel (%p119) target = $region24
      $region23: #{spectral_transform.3} parent=19 // pred_region
        %p122 = scmp.lt.s32.totalorder %s16, 1
        %s123 = scalar_select %p122, %s16, 1
        %p124 = scmp.lt.s32.totalorder %s15, 0
        %s125 = scalar_select %p124, %s15, 0
        %s126 = sadd.s32 %s125, %s123
        %s127 = smul.addr %s126, 4
        %s128 = scalar_lea.vmem %s0, %s127
      $region24: #{spectral_transform.3} parent=19 // pred_fallthru
        _
    $region20: #{spectral_transform.3} parent=5 // pred_fallthru
      _
    %p129 = scmp.le.s32.totalorder 1, %s8
    %p130 = scmp.lt.s32.totalorder %s8, 3
    %p131 = pnand %p129, %p130
    %p132 = pneg %p131
    // Predicated region
    $region25: #{spectral_transform.3} parent=5 // pred_check
      _
    $region26: #{spectral_transform.3} parent=5 // pred_check_branch
      %134 = sbr.rel (%p131) target = $region28
    $region27: #{spectral_transform.3} parent=5 // pred_region
      %s135 = ssub.s32 %s8, 1
      %p136 = scmp.lt.s32.totalorder %s18, 1
      %s137 = scalar_select %p136, %s18, 1
      %p138 = scmp.lt.s32.totalorder %s17, 0
      %s139 = scalar_select %p138, %s17, 0
      %s140 = sadd.s32 %s139, %s137
      %s141 = smul.addr %s140, 4
      %s142 = scalar_lea.vmem %s0, %s141
      %p143 = pneg %p48
      %p144 = pneg %p45
      %p145 = pneg %p69
      %p146 = pneg %p66
      %p147 = pneg %p97
      %p148 = pneg %p94
      %p149 = scmp.lt.s32.totalorder %s18, 1
      %s150 = scalar_select %p149, %s18, 1
      %p151 = scmp.lt.s32.totalorder %s17, 0
      %s152 = scalar_select %p151, %s17, 0
      %s153 = sadd.s32 %s152, %s150
      %s154 = smul.addr %s153, 4
      %s155 = scalar_lea.vmem %s2, %s154
      %p156 = scmp.lt.s32.totalorder %s18, 1
      %s157 = scalar_select %p156, %s18, 1
      %p158 = scmp.lt.s32.totalorder %s17, 0
      %s159 = scalar_select %p158, %s17, 0
      %s160 = sadd.s32 %s159, %s157
      %s161 = smul.addr %s160, 4
      %s162 = scalar_lea.vmem %s0, %s161
      %p163 = scmp.lt.s32.totalorder %s18, 1
      %s164 = scalar_select %p163, %s18, 1
      %p165 = scmp.lt.s32.totalorder %s17, 0
      %s166 = scalar_select %p165, %s17, 0
      %s167 = sadd.s32 %s166, %s164
      %s168 = smul.addr %s167, 4
      %s169 = scalar_lea.vmem %s2, %s168
      %v170 = vld [vmem:[%s1] sm:$0xf]
      %v171 = vld [vmem:[%s162] sm:$0xf]
      %vm172 = vcmask 31744
      %v174 = vsel %vm172, %v170, 0
      %vm176 = vcmask 1043456
      %v178 = vsel %vm176, %v171, 0
      %180 = vmatprep.subr.mxu0 0.0
      %181 = vmatpush1.msra.mxu0 0.0
      %182 = vmatprep.subr.mxu0 0.0
      %183 = vmatpush1.msra.mxu0 0.0
      %184 = vmatprep.subr.mxu0 0.0
      %185 = vmatpush1.msra.mxu0 0.0
      %186 = vmatprep.subr.mxu0 0.0
      %187 = vmatpush1.msra.mxu0 0.0
      %188 = vmatprep.subr.mxu0 0.0
      %189 = vmatpush1.msra.mxu0 0.0
      %190 = vmatprep.subr.mxu0 0.0
      %191 = vmatpush1.msra.mxu0 0.0
      %192 = vmatprep.subr.mxu0 0.0
      %193 = vmatpush1.msra.mxu0 0.0
      %194 = vmatprep.subr.mxu0 0.0
      %195 = vmatpush1.msra.mxu0 0.0
      %196 = vmatprep.subr.mxu0 0.0
      %197 = vmatpush1.msra.mxu0 0.0
      %198 = vmatprep.subr.mxu0 0.0
      %199 = vmatpush1.msra.mxu0 0.0
      %200 = vmatprep.subr.mxu0 0.0
      %201 = vmatpush1.msra.mxu0 0.0
      %202 = vmatprep.subr.mxu0 0.0
      %203 = vmatpush1.msra.mxu0 0.0
      %204 = vmatprep.subr.mxu0 0.0
      %205 = vmatpush1.msra.mxu0 0.0
      %206 = vmatprep.subr.mxu0 0.0
      %207 = vmatpush1.msra.mxu0 0.0
      %208 = vmatprep.subr.mxu0 0.0
      %209 = vmatpush1.msra.mxu0 0.0
      %210 = vmatprep.subr.mxu0 0.0
      %211 = vmatpush1.msra.mxu0 %v178
      %212 = vmatprep.subr.mxu0 0.0
      %213 = vmatpush2.msra.mxu0 0.0
      %214 = vmatprep.subr.mxu0 0.0
      %215 = vmatpush2.msra.mxu0 0.0
      %216 = vmatprep.subr.mxu0 0.0
      %217 = vmatpush2.msra.mxu0 0.0
      %218 = vmatprep.subr.mxu0 0.0
      %219 = vmatpush2.msra.mxu0 0.0
      %220 = vmatprep.subr.mxu0 0.0
      %221 = vmatpush2.msra.mxu0 0.0
      %222 = vmatprep.subr.mxu0 0.0
      %223 = vmatpush2.msra.mxu0 0.0
      %224 = vmatprep.subr.mxu0 0.0
      %225 = vmatpush2.msra.mxu0 0.0
      %226 = vmatprep.subr.mxu0 0.0
      %227 = vmatpush2.msra.mxu0 0.0
      %228 = vmatprep.subr.mxu0 0.0
      %229 = vmatpush2.msra.mxu0 0.0
      %230 = vmatprep.subr.mxu0 0.0
      %231 = vmatpush2.msra.mxu0 0.0
      %232 = vmatprep.subr.mxu0 0.0
      %233 = vmatpush2.msra.mxu0 0.0
      %234 = vmatprep.subr.mxu0 0.0
      %235 = vmatpush2.msra.mxu0 0.0
      %236 = vmatprep.subr.mxu0 0.0
      %237 = vmatpush2.msra.mxu0 0.0
      %238 = vmatprep.subr.mxu0 0.0
      %239 = vmatpush2.msra.mxu0 0.0
      %240 = vmatprep.subr.mxu0 0.0
      %241 = vmatpush2.msra.mxu0 0.0
      %242 = vmatprep.subr.mxu0 0.0
      %243 = vmatpush2.msra.mxu0 0.0
      %244 = vmatprep.mubr.f32.mxu0 0.0
      %245 = vmatmul.mubr.f32.gmra.mxu0 %v174
      %v246 = vpop.f32.mrf.mxu0
      %v247 = vadd.f32 0.0, %v246
      %v248 = vpop.f32.mrf.mxu0
      %249 = vdwg.mxu0
      %v250 = vxor.u32 %v247, 2147483648
      %v251 = vmul.f32 %v250, 1.442695
      %v252 = vpow.pop %v251
      %v253 = vadd.f32 %v252, 1.0
      %v254 = vrcp.pop %v253
      %v255 = vmul.f32 1.0, %v254
      %v256 = vmul.f32 %v247, %v255
      %257 = vst [vmem:[%s169] sm:$0xf] %v256
      %p258 = scmp.lt.s32.totalorder %s18, 1
      %s259 = scalar_select %p258, %s18, 1
      %p260 = scmp.lt.s32.totalorder %s17, 0
      %s261 = scalar_select %p260, %s17, 0
      %s262 = sadd.s32 %s261, %s259
      %s263 = smul.addr %s262, 4
      %s264 = scalar_lea.vmem %s2, %s263
      // Predicated region
      $region29: #{spectral_transform.3} parent=27 // pred_check
        %p265 = pneg %p94
      $region30: #{spectral_transform.3} parent=27 // pred_check_branch
        %267 = sbr.rel (%p265) target = $region32
      $region31: #{spectral_transform.3} parent=27 // pred_region
        _
      $region32: #{spectral_transform.3} parent=27 // pred_fallthru
        _
    $region28: #{spectral_transform.3} parent=5 // pred_fallthru
      _
    %p268 = scmp.le.s32.totalorder 2, %s8
    // Predicated region
    $region33: #{spectral_transform.3} parent=5 // pred_check
      %p269 = pneg %p268
    $region34: #{spectral_transform.3} parent=5 // pred_check_branch
      %271 = sbr.rel (%p269) target = $region36
    $region35: #{spectral_transform.3} parent=5 // pred_region
      %s272 = ssub.s32 %s8, 2
      // Predicated region
      $region37: #{spectral_transform.3} parent=35 // pred_check
        %p273 = pneg %p100
      $region38: #{spectral_transform.3} parent=35 // pred_check_branch
        %275 = sbr.rel (%p273) target = $region40
      $region39: #{spectral_transform.3} parent=35 // pred_region
        %p276 = scmp.lt.s32.totalorder %s20, 1
        %s277 = scalar_select %p276, %s20, 1
        %p278 = scmp.lt.s32.totalorder %s19, 0
        %s279 = scalar_select %p278, %s19, 0
        %s280 = sadd.s32 %s279, %s277
        %s281 = smul.addr %s280, 4
        %s282 = scalar_lea.vmem %s2, %s281
      $region40: #{spectral_transform.3} parent=35 // pred_fallthru
        _
    $region36: #{spectral_transform.3} parent=5 // pred_fallthru
      _
  $region6: #{spectral_transform.3} parent=0 // loop_footer
    %s12 = sadd.s32 1, %s8
  $region7: #{spectral_transform.3} parent=0 // loop_footer_branch
    %7 = sbr.rel target = $region3
  $region8: #{spectral_transform.3} parent=0 // loop_exit
    _

// kernel: integer_pow.1
$region0: #{integer_pow.1}
  #allocation0 [shape = 's32[1]{0}', space=sflag, size = 0x4, scoped, tag = 'scoped memory for integer_pow.1']
  %s0 = inlined_call_operand.vmem [shape: f32[32], index: 0, kind: input, shape index: {}, may-alias: {0,1}]
  %s1 = inlined_call_operand.vmem [shape: f32[32], index: 1, kind: input, shape index: {}, may-alias: {0,1}]
  %s2 = inlined_call_operand.vmem [shape: f32[32], index: 2, kind: output, shape index: {}]
  %v3 = vld [vmem:[%s0] sm:$0x1]
  %v4 = vld [vmem:[%s1] sm:$0x1]
  %5 = xla_tuple %v3, %v4
  %6 = xla_tuple %5
  %v7 = vmul.f32 %v3, %v4
  %8 = xla_tuple %v7
  %9 = vst [vmem:[%s2] sm:$0x1] %v7

// kernel: spectral_transform.4
$region0: #{spectral_transform.4}
  #allocation0 [shape = 'u32[]', space=smem, size = 0x4, offset = 0x4, fixed_abs, tag = 'smem constant byte address 0x4 - core index']
  #allocation1 [shape = 'u32[144,128]{1,0:T(1,128)}', space=vmem, size = 0x12000, scoped, tag = 'internal scratch']
  %s0 = inlined_call_operand.vmem [shape: f32[2,4,24,32], index: 0, kind: input, shape index: {}]
  %s1 = inlined_call_operand.vmem [shape: f32[32,256], index: 1, kind: input, shape index: {}]
  %s2 = inlined_call_operand.vmem [shape: f32[2,4,256], index: 2, kind: input, shape index: {}]
  %s3 = inlined_call_operand.vmem [shape: f32[2,4,256], index: 3, kind: input, shape index: {}]
  %s4 = inlined_call_operand.vmem [shape: f32[4,4,4], index: 4, kind: input, shape index: {}]
  %s5 = inlined_call_operand.vmem [shape: f32[128,32], index: 5, kind: input, shape index: {}]
  %s6 = inlined_call_operand.vmem [shape: f32[128,32], index: 6, kind: input, shape index: {}]
  %s7 = inlined_call_operand.vmem [shape: f32[2,4,24,32], index: 7, kind: output, shape index: {}]
  %s8 = sld [smem:[#allocation0]]
  $region61: #{spectral_transform.4} parent=0
    _
  %s10 = ssub.s32 1, %s8
  %s11 = scalar_select 0, %s10, %s8
  loop: start=0, step=1, limit=4
  $region2: #{spectral_transform.4} parent=0 // loop_pre_header
    _
  $region3: #{spectral_transform.4} parent=0 // loop_header
    %s13 = sphi 0, %s17
    %p14 = scmp.ge.s32.totalorder %s13, 4
    %s20 = sphi 0, %s32
    %s21 = sphi 0, %s28
    %s22 = sphi 0, %s20
    %s23 = sphi 0, %s21
    %s24 = sphi 0, %s22
    %s25 = sphi 0, %s23
    %s37 = sphi 0, %s39
    %s40 = sphi 0, %s37
    %s41 = sphi 0, %s40
    %s57 = sphi 0, %s41
    %s61 = sphi 0, %s61
    %s63 = sphi 0, %s61
    %s64 = sphi 0, %s63
    %s78 = sphi 0, %s64
    %s84 = sphi 0, %s86
    %s87 = sphi 0, %s84
    %s88 = sphi 0, %s87
    %s104 = sphi 0, %s88
    %s110 = sphi 0, %s112
    %s113 = sphi 0, %s110
    %s114 = sphi 0, %s113
    %s130 = sphi 0, %s114
    %s134 = sphi 0, %s134
    %s136 = sphi 0, %s134
    %s137 = sphi 0, %s136
    %s151 = sphi 0, %s137
    %s155 = sphi 0, %s155
    %s157 = sphi 0, %s155
    %s158 = sphi 0, %s157
    %s172 = sphi 0, %s158
    %s176 = sphi 0, %s176
    %s178 = sphi 0, %s176
    %s179 = sphi 0, %s178
    %s193 = sphi 0, %s179
    %s201 = sphi 0, %s203
    %s204 = sphi 0, %s201
    %s205 = sphi 0, %s204
    %s221 = sphi 0, %s205
  $region4: #{spectral_transform.4} parent=0 // loop_header_branch
    %16 = sbr.rel (%p14) target = $region8
  $region5: #{spectral_transform.4} parent=0 // loop_body
    %s18 = ssub.s32 %s13, 1
    %s19 = ssub.s32 %s13, 2
    %s26 = sadd.s32 1, %s21
    %p27 = scmp.ge.s32.totalorder %s26, 2
    %s28 = scalar_select %p27, 0, %s26
    %s29 = sadd.s32 1, %s20
    %s30 = scalar_select %p27, %s29, %s20
    %p31 = scmp.ge.s32.totalorder %s30, 1
    %s32 = scalar_select %p31, 0, %s30
    %s33 = ssub.s32 %s21, %s28
    %s34 = ssub.s32 %s20, %s32
    %s35 = sor.u32 %s33, %s34
    %p36 = scmp.eq.s32.totalorder %s35, 0
    %s38 = sadd.s32 %s37, 1
    %s39 = scalar_select %p36, %s37, %s38
    %p42 = pneg %p36
    %p43 = scmp.eq.s32.totalorder %s13, 1
    %p44 = por %p42, %p43
    %p45 = scmp.ne.s32.totalorder %s37, %s40
    %p46 = scmp.eq.s32.totalorder %s13, 0
    %p47 = por %p45, %p46
    %p48 = scmp.ne.s32.totalorder %s37, %s40
    %p49 = scmp.eq.s32.totalorder %s18, 1
    %p50 = por %p48, %p49
    %p51 = scmp.ne.s32.totalorder %s40, %s41
    %p52 = scmp.eq.s32.totalorder %s18, 0
    %p53 = por %p51, %p52
    %p54 = scmp.ne.s32.totalorder %s40, %s41
    %p55 = scmp.eq.s32.totalorder %s19, 1
    %p56 = por %p54, %p55
    %p58 = scmp.ne.s32.totalorder %s41, %s57
    %p59 = scmp.eq.s32.totalorder %s19, 0
    %p60 = por %p58, %p59
    %s62 = sadd.s32 %s61, 1
    %p65 = scmp.eq.s32.totalorder %s13, 1
    %p66 = scmp.ne.s32.totalorder %s61, %s63
    %p67 = scmp.eq.s32.totalorder %s13, 0
    %p68 = por %p66, %p67
    %p69 = scmp.ne.s32.totalorder %s61, %s63
    %p70 = scmp.eq.s32.totalorder %s18, 1
    %p71 = por %p69, %p70
    %p72 = scmp.ne.s32.totalorder %s63, %s64
    %p73 = scmp.eq.s32.totalorder %s18, 0
    %p74 = por %p72, %p73
    %p75 = scmp.ne.s32.totalorder %s63, %s64
    %p76 = scmp.eq.s32.totalorder %s19, 1
    %p77 = por %p75, %p76
    %p79 = scmp.ne.s32.totalorder %s64, %s78
    %p80 = scmp.eq.s32.totalorder %s19, 0
    %p81 = por %p79, %p80
    %s82 = ssub.s32 %s21, %s28
    %p83 = scmp.eq.s32.totalorder %s82, 0
    %s85 = sadd.s32 %s84, 1
    %s86 = scalar_select %p83, %s84, %s85
    %p89 = pneg %p83
    %p90 = scmp.eq.s32.totalorder %s13, 1
    %p91 = por %p89, %p90
    %p92 = scmp.ne.s32.totalorder %s84, %s87
    %p93 = scmp.eq.s32.totalorder %s13, 0
    %p94 = por %p92, %p93
    %p95 = scmp.ne.s32.totalorder %s84, %s87
    %p96 = scmp.eq.s32.totalorder %s18, 1
    %p97 = por %p95, %p96
    %p98 = scmp.ne.s32.totalorder %s87, %s88
    %p99 = scmp.eq.s32.totalorder %s18, 0
    %p100 = por %p98, %p99
    %p101 = scmp.ne.s32.totalorder %s87, %s88
    %p102 = scmp.eq.s32.totalorder %s19, 1
    %p103 = por %p101, %p102
    %p105 = scmp.ne.s32.totalorder %s88, %s104
    %p106 = scmp.eq.s32.totalorder %s19, 0
    %p107 = por %p105, %p106
    %s108 = ssub.s32 %s21, %s28
    %p109 = scmp.eq.s32.totalorder %s108, 0
    %s111 = sadd.s32 %s110, 1
    %s112 = scalar_select %p109, %s110, %s111
    %p115 = pneg %p109
    %p116 = scmp.eq.s32.totalorder %s13, 1
    %p117 = por %p115, %p116
    %p118 = scmp.ne.s32.totalorder %s110, %s113
    %p119 = scmp.eq.s32.totalorder %s13, 0
    %p120 = por %p118, %p119
    %p121 = scmp.ne.s32.totalorder %s110, %s113
    %p122 = scmp.eq.s32.totalorder %s18, 1
    %p123 = por %p121, %p122
    %p124 = scmp.ne.s32.totalorder %s113, %s114
    %p125 = scmp.eq.s32.totalorder %s18, 0
    %p126 = por %p124, %p125
    %p127 = scmp.ne.s32.totalorder %s113, %s114
    %p128 = scmp.eq.s32.totalorder %s19, 1
    %p129 = por %p127, %p128
    %p131 = scmp.ne.s32.totalorder %s114, %s130
    %p132 = scmp.eq.s32.totalorder %s19, 0
    %p133 = por %p131, %p132
    %s135 = sadd.s32 %s134, 1
    %p138 = scmp.eq.s32.totalorder %s13, 1
    %p139 = scmp.ne.s32.totalorder %s134, %s136
    %p140 = scmp.eq.s32.totalorder %s13, 0
    %p141 = por %p139, %p140
    %p142 = scmp.ne.s32.totalorder %s134, %s136
    %p143 = scmp.eq.s32.totalorder %s18, 1
    %p144 = por %p142, %p143
    %p145 = scmp.ne.s32.totalorder %s136, %s137
    %p146 = scmp.eq.s32.totalorder %s18, 0
    %p147 = por %p145, %p146
    %p148 = scmp.ne.s32.totalorder %s136, %s137
    %p149 = scmp.eq.s32.totalorder %s19, 1
    %p150 = por %p148, %p149
    %p152 = scmp.ne.s32.totalorder %s137, %s151
    %p153 = scmp.eq.s32.totalorder %s19, 0
    %p154 = por %p152, %p153
    %s156 = sadd.s32 %s155, 1
    %p159 = scmp.eq.s32.totalorder %s13, 1
    %p160 = scmp.ne.s32.totalorder %s155, %s157
    %p161 = scmp.eq.s32.totalorder %s13, 0
    %p162 = por %p160, %p161
    %p163 = scmp.ne.s32.totalorder %s155, %s157
    %p164 = scmp.eq.s32.totalorder %s18, 1
    %p165 = por %p163, %p164
    %p166 = scmp.ne.s32.totalorder %s157, %s158
    %p167 = scmp.eq.s32.totalorder %s18, 0
    %p168 = por %p166, %p167
    %p169 = scmp.ne.s32.totalorder %s157, %s158
    %p170 = scmp.eq.s32.totalorder %s19, 1
    %p171 = por %p169, %p170
    %p173 = scmp.ne.s32.totalorder %s158, %s172
    %p174 = scmp.eq.s32.totalorder %s19, 0
    %p175 = por %p173, %p174
    %s177 = sadd.s32 %s176, 1
    %p180 = scmp.eq.s32.totalorder %s13, 1
    %p181 = scmp.ne.s32.totalorder %s176, %s178
    %p182 = scmp.eq.s32.totalorder %s13, 0
    %p183 = por %p181, %p182
    %p184 = scmp.ne.s32.totalorder %s176, %s178
    %p185 = scmp.eq.s32.totalorder %s18, 1
    %p186 = por %p184, %p185
    %p187 = scmp.ne.s32.totalorder %s178, %s179
    %p188 = scmp.eq.s32.totalorder %s18, 0
    %p189 = por %p187, %p188
    %p190 = scmp.ne.s32.totalorder %s178, %s179
    %p191 = scmp.eq.s32.totalorder %s19, 1
    %p192 = por %p190, %p191
    %p194 = scmp.ne.s32.totalorder %s179, %s193
    %p195 = scmp.eq.s32.totalorder %s19, 0
    %p196 = por %p194, %p195
    %s197 = ssub.s32 %s21, %s28
    %s198 = ssub.s32 %s20, %s32
    %s199 = sor.u32 %s197, %s198
    %p200 = scmp.eq.s32.totalorder %s199, 0
    %s202 = sadd.s32 %s201, 1
    %s203 = scalar_select %p200, %s201, %s202
    %p206 = pneg %p200
    %p207 = scmp.eq.s32.totalorder %s13, 1
    %p208 = por %p206, %p207
    %p209 = scmp.ne.s32.totalorder %s201, %s204
    %p210 = scmp.eq.s32.totalorder %s13, 0
    %p211 = por %p209, %p210
    %p212 = scmp.ne.s32.totalorder %s201, %s204
    %p213 = scmp.eq.s32.totalorder %s18, 1
    %p214 = por %p212, %p213
    %p215 = scmp.ne.s32.totalorder %s204, %s205
    %p216 = scmp.eq.s32.totalorder %s18, 0
    %p217 = por %p215, %p216
    %p218 = scmp.ne.s32.totalorder %s204, %s205
    %p219 = scmp.eq.s32.totalorder %s19, 1
    %p220 = por %p218, %p219
    %p222 = scmp.ne.s32.totalorder %s205, %s221
    %p223 = scmp.eq.s32.totalorder %s19, 0
    %p224 = por %p222, %p223
    %p225 = scmp.le.s32.totalorder 1, %s13
    %p226 = scmp.lt.s32.totalorder %s13, 3
    %p227 = pnand %p225, %p226
    %p228 = pneg %p227
    // Predicated region
    $region9: #{spectral_transform.4} parent=5 // pred_check
      _
    $region10: #{spectral_transform.4} parent=5 // pred_check_branch
      %230 = sbr.rel (%p227) target = $region12
    $region11: #{spectral_transform.4} parent=5 // pred_region
      %s231 = ssub.s32 %s13, 1
      // Predicated region
      $region13: #{spectral_transform.4} parent=11 // pred_check
        %p232 = pneg %p74
      $region14: #{spectral_transform.4} parent=11 // pred_check_branch
        %234 = sbr.rel (%p232) target = $region16
      $region15: #{spectral_transform.4} parent=11 // pred_region
        _
      $region16: #{spectral_transform.4} parent=11 // pred_fallthru
        _
      // Predicated region
      $region17: #{spectral_transform.4} parent=11 // pred_check
        %p235 = pneg %p147
      $region18: #{spectral_transform.4} parent=11 // pred_check_branch
        %237 = sbr.rel (%p235) target = $region20
      $region19: #{spectral_transform.4} parent=11 // pred_region
        _
      $region20: #{spectral_transform.4} parent=11 // pred_fallthru
        _
      // Predicated region
      $region21: #{spectral_transform.4} parent=11 // pred_check
        %p238 = pneg %p168
      $region22: #{spectral_transform.4} parent=11 // pred_check_branch
        %240 = sbr.rel (%p238) target = $region24
      $region23: #{spectral_transform.4} parent=11 // pred_region
        _
      $region24: #{spectral_transform.4} parent=11 // pred_fallthru
        _
      // Predicated region
      $region25: #{spectral_transform.4} parent=11 // pred_check
        %p241 = pneg %p189
      $region26: #{spectral_transform.4} parent=11 // pred_check_branch
        %243 = sbr.rel (%p241) target = $region28
      $region27: #{spectral_transform.4} parent=11 // pred_region
        _
      $region28: #{spectral_transform.4} parent=11 // pred_fallthru
        _
    $region12: #{spectral_transform.4} parent=5 // pred_fallthru
      _
    %p244 = scmp.lt.s32.totalorder %s13, 2
    // Predicated region
    $region29: #{spectral_transform.4} parent=5 // pred_check
      %p245 = pneg %p244
    $region30: #{spectral_transform.4} parent=5 // pred_check_branch
      %247 = sbr.rel (%p245) target = $region32
    $region31: #{spectral_transform.4} parent=5 // pred_region
      // Predicated region
      $region33: #{spectral_transform.4} parent=31 // pred_check
        %p248 = pneg %p47
      $region34: #{spectral_transform.4} parent=31 // pred_check_branch
        %250 = sbr.rel (%p248) target = $region36
      $region35: #{spectral_transform.4} parent=31 // pred_region
        %s251 = smul.u32 3, %s20
        %p252 = scmp.lt.s32.totalorder %s21, 1
        %s253 = scalar_select %p252, %s21, 1
        %p254 = scmp.lt.s32.totalorder %s251, 2
        %s255 = scalar_select %p254, %s251, 2
        %s256 = smul.addr %s253, 12
        %s257 = sadd.s32 %s255, %s256
        %s258 = smul.addr %s257, 8
        %s259 = scalar_lea.vmem %s0, %s258
        %s260 = smul.u32 3, %s20
      $region36: #{spectral_transform.4} parent=31 // pred_fallthru
        _
      // Predicated region
      $region37: #{spectral_transform.4} parent=31 // pred_check
        %p261 = pneg %p94
      $region38: #{spectral_transform.4} parent=31 // pred_check_branch
        %263 = sbr.rel (%p261) target = $region40
      $region39: #{spectral_transform.4} parent=31 // pred_region
        %p264 = scmp.lt.s32.totalorder %s21, 1
        %s265 = scalar_select %p264, %s21, 1
        %s266 = smul.addr %s265, 2
        %s267 = smul.addr %s266, 4
        %s268 = scalar_lea.vmem %s2, %s267
      $region40: #{spectral_transform.4} parent=31 // pred_fallthru
        _
      // Predicated region
      $region41: #{spectral_transform.4} parent=31 // pred_check
        %p269 = pneg %p120
      $region42: #{spectral_transform.4} parent=31 // pred_check_branch
        %271 = sbr.rel (%p269) target = $region44
      $region43: #{spectral_transform.4} parent=31 // pred_region
        %p272 = scmp.lt.s32.totalorder %s21, 1
        %s273 = scalar_select %p272, %s21, 1
        %s274 = smul.addr %s273, 2
        %s275 = smul.addr %s274, 4
        %s276 = scalar_lea.vmem %s3, %s275
      $region44: #{spectral_transform.4} parent=31 // pred_fallthru
        _
    $region32: #{spectral_transform.4} parent=5 // pred_fallthru
      _
    %p277 = scmp.le.s32.totalorder 1, %s13
    %p278 = scmp.lt.s32.totalorder %s13, 3
    %p279 = pnand %p277, %p278
    %p280 = pneg %p279
    // Predicated region
    $region45: #{spectral_transform.4} parent=5 // pred_check
      _
    $region46: #{spectral_transform.4} parent=5 // pred_check_branch
      %282 = sbr.rel (%p279) target = $region48
    $region47: #{spectral_transform.4} parent=5 // pred_region
      %s283 = ssub.s32 %s13, 1
      %s284 = smul.u32 3, %s22
      %p285 = scmp.lt.s32.totalorder %s23, 1
      %s286 = scalar_select %p285, %s23, 1
      %p287 = scmp.lt.s32.totalorder %s284, 2
      %s288 = scalar_select %p287, %s284, 2
      %s289 = smul.addr %s286, 12
      %s290 = sadd.s32 %s288, %s289
      %s291 = smul.addr %s290, 8
      %s292 = scalar_lea.vmem %s0, %s291
      %p293 = pneg %p53
      %p294 = pneg %p50
      %p295 = pneg %p74
      %p296 = pneg %p71
      %p297 = scmp.lt.s32.totalorder %s23, 1
      %s298 = scalar_select %p297, %s23, 1
      %s299 = smul.addr %s298, 2
      %s300 = smul.addr %s299, 4
      %s301 = scalar_lea.vmem %s2, %s300
      %p302 = pneg %p100
      %p303 = pneg %p97
      %p304 = scmp.lt.s32.totalorder %s23, 1
      %s305 = scalar_select %p304, %s23, 1
      %s306 = smul.addr %s305, 2
      %s307 = smul.addr %s306, 4
      %s308 = scalar_lea.vmem %s3, %s307
      %p309 = pneg %p126
      %p310 = pneg %p123
      %p311 = pneg %p147
      %p312 = pneg %p144
      %p313 = pneg %p168
      %p314 = pneg %p165
      %p315 = pneg %p189
      %p316 = pneg %p186
      %p317 = pneg %p217
      %p318 = pneg %p214
      %s319 = smul.u32 3, %s22
      %p320 = scmp.lt.s32.totalorder %s23, 1
      %s321 = scalar_select %p320, %s23, 1
      %p322 = scmp.lt.s32.totalorder %s319, 2
      %s323 = scalar_select %p322, %s319, 2
      %s324 = smul.addr %s321, 12
      %s325 = sadd.s32 %s323, %s324
      %s326 = smul.addr %s325, 8
      %s327 = scalar_lea.vmem %s7, %s326
      %s328 = smul.u32 3, %s22
      %p329 = scmp.lt.s32.totalorder %s23, 1
      %s330 = scalar_select %p329, %s23, 1
      %p331 = scmp.lt.s32.totalorder %s328, 2
      %s332 = scalar_select %p331, %s328, 2
      %s333 = smul.addr %s330, 12
      %s334 = sadd.s32 %s332, %s333
      %s335 = smul.addr %s334, 8
      %s336 = scalar_lea.vmem %s0, %s335
      %s337 = smul.u32 3, %s22
      %p338 = scmp.lt.s32.totalorder %s23, 1
      %s339 = scalar_select %p338, %s23, 1
      %s340 = smul.addr %s339, 2
      %s341 = smul.addr %s340, 4
      %s342 = scalar_lea.vmem %s2, %s341
      %p343 = scmp.lt.s32.totalorder %s23, 1
      %s344 = scalar_select %p343, %s23, 1
      %s345 = smul.addr %s344, 2
      %s346 = smul.addr %s345, 4
      %s347 = scalar_lea.vmem %s3, %s346
      %s348 = smul.u32 3, %s22
      %p349 = scmp.lt.s32.totalorder %s23, 1
      %s350 = scalar_select %p349, %s23, 1
      %p351 = scmp.lt.s32.totalorder %s348, 2
      %s352 = scalar_select %p351, %s348, 2
      %s353 = smul.addr %s350, 12
      %s354 = sadd.s32 %s352, %s353
      %s355 = smul.addr %s354, 8
      %s356 = scalar_lea.vmem %s7, %s355
      %s357 = smul.u32 3, %s22
      %v358 = vld [vmem:[%s336] sm:$0xff]
      %v359 = vld [vmem:[%s336 + $0x8] sm:$0xff]
      %v360 = vld [vmem:[%s336 + $0x10] sm:$0xff]
      %v361 = vld [vmem:[%s336 + $0x18] sm:$0xff]
      %v362 = vld [vmem:[%s336 + $0x20] sm:$0xff]
      %v363 = vld [vmem:[%s336 + $0x28] sm:$0xff]
      %v364 = vld [vmem:[%s336 + $0x30] sm:$0xff]
      %v365 = vld [vmem:[%s336 + $0x38] sm:$0xff]
      %v366 = vld [vmem:[%s336 + $0x40] sm:$0xff]
      %v367 = vld [vmem:[%s336 + $0x48] sm:$0xff]
      %v368 = vld [vmem:[%s336 + $0x50] sm:$0xff]
      %v369 = vld [vmem:[%s336 + $0x58] sm:$0xff]
      %v370 = vld [vmem:[%s1] sm:$0xff]
      %v371 = vld [vmem:[%s1 + $0x8] sm:$0xff]
      %v372 = vld [vmem:[%s1 + $0x10] sm:$0xff]
      %v373 = vld [vmem:[%s1 + $0x18] sm:$0xff]
      %v374 = vld [vmem:[%s1 + $0x20] sm:$0xff]
      %v375 = vld [vmem:[%s1 + $0x28] sm:$0xff]
      %v376 = vld [vmem:[%s1 + $0x30] sm:$0xff]
      %v377 = vld [vmem:[%s1 + $0x38] sm:$0xff]
      %vm378 = vcmask 261120
      %v380 = vsel %vm378, %v358, 0
      %v383 = vsel %vm378, %v359, 0
      %v386 = vsel %vm378, %v360, 0
      %v389 = vsel %vm378, %v361, 0
      %v392 = vsel %vm378, %v362, 0
      %v395 = vsel %vm378, %v363, 0
      %v398 = vsel %vm378, %v364, 0
      %v401 = vsel %vm378, %v365, 0
      %v404 = vsel %vm378, %v366, 0
      %v407 = vsel %vm378, %v367, 0
      %v410 = vsel %vm378, %v368, 0
      %v413 = vsel %vm378, %v369, 0
      %415 = vmatprep.subr.mxu0 0.0
      %416 = vmatpush1.msra.mxu0 0.0
      %417 = vmatprep.subr.mxu0 0.0
      %418 = vmatpush1.msra.mxu0 0.0
      %419 = vmatprep.subr.mxu0 0.0
      %420 = vmatpush1.msra.mxu0 0.0
      %421 = vmatprep.subr.mxu0 0.0
      %422 = vmatpush1.msra.mxu0 0.0
      %423 = vmatprep.subr.mxu0 0.0
      %424 = vmatpush1.msra.mxu0 0.0
      %425 = vmatprep.subr.mxu0 0.0
      %426 = vmatpush1.msra.mxu0 0.0
      %427 = vmatprep.subr.mxu0 0.0
      %428 = vmatpush1.msra.mxu0 0.0
      %429 = vmatprep.subr.mxu0 0.0
      %430 = vmatpush1.msra.mxu0 0.0
      %431 = vmatprep.subr.mxu0 0.0
      %432 = vmatpush1.msra.mxu0 0.0
      %433 = vmatprep.subr.mxu0 0.0
      %434 = vmatpush1.msra.mxu0 0.0
      %435 = vmatprep.subr.mxu0 0.0
      %436 = vmatpush1.msra.mxu0 0.0
      %437 = vmatprep.subr.mxu0 0.0
      %438 = vmatpush1.msra.mxu0 0.0
      %439 = vmatprep.subr.mxu0 %v377
      %440 = vmatpush1.msra.mxu0 %v376
      %441 = vmatprep.subr.mxu0 %v375
      %442 = vmatpush1.msra.mxu0 %v374
      %443 = vmatprep.subr.mxu0 %v373
      %444 = vmatpush1.msra.mxu0 %v372
      %445 = vmatprep.subr.mxu0 %v371
      %446 = vmatpush1.msra.mxu0 %v370
      %447 = vmatprep.subr.mxu0 0.0
      %448 = vmatpush2.msra.mxu0 0.0
      %449 = vmatprep.subr.mxu0 0.0
      %450 = vmatpush2.msra.mxu0 0.0
      %451 = vmatprep.subr.mxu0 0.0
      %452 = vmatpush2.msra.mxu0 0.0
      %453 = vmatprep.subr.mxu0 0.0
      %454 = vmatpush2.msra.mxu0 0.0
      %455 = vmatprep.subr.mxu0 0.0
      %456 = vmatpush2.msra.mxu0 0.0
      %457 = vmatprep.subr.mxu0 0.0
      %458 = vmatpush2.msra.mxu0 0.0
      %459 = vmatprep.subr.mxu0 0.0
      %460 = vmatpush2.msra.mxu0 0.0
      %461 = vmatprep.subr.mxu0 0.0
      %462 = vmatpush2.msra.mxu0 0.0
      %463 = vmatprep.subr.mxu0 0.0
      %464 = vmatpush2.msra.mxu0 0.0
      %465 = vmatprep.subr.mxu0 0.0
      %466 = vmatpush2.msra.mxu0 0.0
      %467 = vmatprep.subr.mxu0 0.0
      %468 = vmatpush2.msra.mxu0 0.0
      %469 = vmatprep.subr.mxu0 0.0
      %470 = vmatpush2.msra.mxu0 0.0
      %471 = vmatprep.subr.mxu0 0.0
      %472 = vmatpush2.msra.mxu0 0.0
      %473 = vmatprep.subr.mxu0 0.0
      %474 = vmatpush2.msra.mxu0 0.0
      %475 = vmatprep.subr.mxu0 0.0
      %476 = vmatpush2.msra.mxu0 0.0
      %477 = vmatprep.subr.mxu0 0.0
      %478 = vmatpush2.msra.mxu0 0.0
      %479 = vmatprep.mubr.f32.mxu0 0.0
      %480 = vmatmul.mubr.f32.gmra.mxu0 %v380
      %v481 = vpop.f32.mrf.mxu0
      %v482 = vadd.f32 0.0, %v481
      %v483 = vpop.f32.mrf.mxu0
      %v484 = vadd.f32 0.0, %v483
      %485 = vmatprep.mubr.f32.mxu0 0.0
      %486 = vmatmul.mubr.f32.gmra.mxu0 %v383
      %v487 = vpop.f32.mrf.mxu0
      %v488 = vadd.f32 0.0, %v487
      %v489 = vpop.f32.mrf.mxu0
      %v490 = vadd.f32 0.0, %v489
      %491 = vmatprep.mubr.f32.mxu0 0.0
      %492 = vmatmul.mubr.f32.gmra.mxu0 %v386
      %v493 = vpop.f32.mrf.mxu0
      %v494 = vadd.f32 0.0, %v493
      %v495 = vpop.f32.mrf.mxu0
      %v496 = vadd.f32 0.0, %v495
      %497 = vmatprep.mubr.f32.mxu0 0.0
      %498 = vmatmul.mubr.f32.gmra.mxu0 %v389
      %v499 = vpop.f32.mrf.mxu0
      %v500 = vadd.f32 0.0, %v499
      %v501 = vpop.f32.mrf.mxu0
      %v502 = vadd.f32 0.0, %v501
      %503 = vmatprep.mubr.f32.mxu0 0.0
      %504 = vmatmul.mubr.f32.gmra.mxu0 %v392
      %v505 = vpop.f32.mrf.mxu0
      %v506 = vadd.f32 0.0, %v505
      %v507 = vpop.f32.mrf.mxu0
      %v508 = vadd.f32 0.0, %v507
      %509 = vmatprep.mubr.f32.mxu0 0.0
      %510 = vmatmul.mubr.f32.gmra.mxu0 %v395
      %v511 = vpop.f32.mrf.mxu0
      %v512 = vadd.f32 0.0, %v511
      %v513 = vpop.f32.mrf.mxu0
      %v514 = vadd.f32 0.0, %v513
      %515 = vmatprep.mubr.f32.mxu0 0.0
      %516 = vmatmul.mubr.f32.gmra.mxu0 %v398
      %v517 = vpop.f32.mrf.mxu0
      %v518 = vadd.f32 0.0, %v517
      %v519 = vpop.f32.mrf.mxu0
      %v520 = vadd.f32 0.0, %v519
      %521 = vmatprep.mubr.f32.mxu0 0.0
      %522 = vmatmul.mubr.f32.gmra.mxu0 %v401
      %v523 = vpop.f32.mrf.mxu0
      %v524 = vadd.f32 0.0, %v523
      %v525 = vpop.f32.mrf.mxu0
      %v526 = vadd.f32 0.0, %v525
      %527 = vmatprep.mubr.f32.mxu0 0.0
      %528 = vmatmul.mubr.f32.gmra.mxu0 %v404
      %v529 = vpop.f32.mrf.mxu0
      %v530 = vadd.f32 0.0, %v529
      %v531 = vpop.f32.mrf.mxu0
      %v532 = vadd.f32 0.0, %v531
      %533 = vmatprep.mubr.f32.mxu0 0.0
      %534 = vmatmul.mubr.f32.gmra.mxu0 %v407
      %v535 = vpop.f32.mrf.mxu0
      %v536 = vadd.f32 0.0, %v535
      %v537 = vpop.f32.mrf.mxu0
      %v538 = vadd.f32 0.0, %v537
      %539 = vmatprep.mubr.f32.mxu0 0.0
      %540 = vmatmul.mubr.f32.gmra.mxu0 %v410
      %v541 = vpop.f32.mrf.mxu0
      %v542 = vadd.f32 0.0, %v541
      %v543 = vpop.f32.mrf.mxu0
      %v544 = vadd.f32 0.0, %v543
      %545 = vmatprep.mubr.f32.mxu0 0.0
      %546 = vmatmul.mubr.f32.gmra.mxu0 %v413
      %v547 = vpop.f32.mrf.mxu0
      %v548 = vadd.f32 0.0, %v547
      %v549 = vpop.f32.mrf.mxu0
      %v550 = vadd.f32 0.0, %v549
      %551 = vdwg.mxu0
      %v552 = vld [vmem:[%s342] sm:$0xff]
      %v555 = vunpack.c.l.s4 1966171168
      %v556 = vunpack.c.0.s8 %v555
      %v557 = vlaneseq
      %v558 = vshrl.u32 %v557, 7
      %v559 = vsub.s32 %v556, %v558
      %v560 = vrot.slane %v552, %v559
      %v561 = vcombine.high %v560, %v560
      %v563 = vunpack.c.l.s4 1966171168
      %v564 = vunpack.c.0.s8 %v563
      %v565 = vlaneseq
      %v566 = vshrl.u32 %v565, 7
      %v567 = vsub.s32 %v564, %v566
      %v568 = vrot.slane %v560, %v567
      %v570 = vunpack.c.l.s4 1966171168
      %v571 = vunpack.c.0.s8 %v570
      %v572 = vlaneseq
      %v573 = vshrl.u32 %v572, 7
      %v574 = vsub.s32 %v571, %v573
      %v575 = vrot.slane %v561, %v574
      %v576 = vcombine.high %v568, %v568
      %v577 = vcombine.high %v575, %v575
      %v582 = vld [vmem:[%s347] sm:$0xff]
      %v585 = vunpack.c.l.s4 1966171168
      %v586 = vunpack.c.0.s8 %v585
      %v587 = vlaneseq
      %v588 = vshrl.u32 %v587, 7
      %v589 = vsub.s32 %v586, %v588
      %v590 = vrot.slane %v582, %v589
      %v591 = vcombine.high %v590, %v590
      %v593 = vunpack.c.l.s4 1966171168
      %v594 = vunpack.c.0.s8 %v593
      %v595 = vlaneseq
      %v596 = vshrl.u32 %v595, 7
      %v597 = vsub.s32 %v594, %v596
      %v598 = vrot.slane %v590, %v597
      %v600 = vunpack.c.l.s4 1966171168
      %v601 = vunpack.c.0.s8 %v600
      %v602 = vlaneseq
      %v603 = vshrl.u32 %v602, 7
      %v604 = vsub.s32 %v601, %v603
      %v605 = vrot.slane %v591, %v604
      %v606 = vcombine.high %v598, %v598
      %v607 = vcombine.high %v605, %v605
      %v608 = vadd.f32 %v568, 1.0
      %v609 = vadd.f32 %v575, 1.0
      %v610 = vadd.f32 %v576, 1.0
      %v611 = vadd.f32 %v577, 1.0
      %v616 = vlaneseq
      %v617 = vshrl.u32 %v616, 7
      %v618 = vsub.s32 0, %v617
      %v619 = vrot.slane %v608, %v618
      %v620 = vlaneseq
      %v621 = vshrl.u32 %v620, 7
      %v622 = vsub.s32 1, %v621
      %v623 = vrot.slane %v608, %v622
      %v624 = vlaneseq
      %v625 = vshrl.u32 %v624, 7
      %v626 = vsub.s32 0, %v625
      %v627 = vrot.slane %v609, %v626
      %v628 = vlaneseq
      %v629 = vshrl.u32 %v628, 7
      %v630 = vsub.s32 1, %v629
      %v631 = vrot.slane %v609, %v630
      %v632 = vlaneseq
      %v633 = vshrl.u32 %v632, 7
      %v634 = vsub.s32 0, %v633
      %v635 = vrot.slane %v610, %v634
      %v636 = vlaneseq
      %v637 = vshrl.u32 %v636, 7
      %v638 = vsub.s32 1, %v637
      %v639 = vrot.slane %v610, %v638
      %v640 = vlaneseq
      %v641 = vshrl.u32 %v640, 7
      %v642 = vsub.s32 0, %v641
      %v643 = vrot.slane %v611, %v642
      %v644 = vlaneseq
      %v645 = vshrl.u32 %v644, 7
      %v646 = vsub.s32 1, %v645
      %v647 = vrot.slane %v611, %v646
      %v656 = vmul.f32 %v482, %v619
      %v657 = vmul.f32 %v484, %v623
      %v658 = vmul.f32 %v488, %v619
      %v659 = vmul.f32 %v490, %v623
      %v660 = vmul.f32 %v494, %v619
      %v661 = vmul.f32 %v496, %v623
      %v662 = vmul.f32 %v500, %v627
      %v663 = vmul.f32 %v502, %v631
      %v664 = vmul.f32 %v506, %v627
      %v665 = vmul.f32 %v508, %v631
      %v666 = vmul.f32 %v512, %v627
      %v667 = vmul.f32 %v514, %v631
      %v668 = vmul.f32 %v518, %v635
      %v669 = vmul.f32 %v520, %v639
      %v670 = vmul.f32 %v524, %v635
      %v671 = vmul.f32 %v526, %v639
      %v672 = vmul.f32 %v530, %v635
      %v673 = vmul.f32 %v532, %v639
      %v674 = vmul.f32 %v536, %v643
      %v675 = vmul.f32 %v538, %v647
      %v676 = vmul.f32 %v542, %v643
      %v677 = vmul.f32 %v544, %v647
      %v678 = vmul.f32 %v548, %v643
      %v679 = vmul.f32 %v550, %v647
      %v680 = vlaneseq
      %v681 = vshrl.u32 %v680, 7
      %v682 = vsub.s32 0, %v681
      %v683 = vrot.slane %v598, %v682
      %v684 = vlaneseq
      %v685 = vshrl.u32 %v684, 7
      %v686 = vsub.s32 1, %v685
      %v687 = vrot.slane %v598, %v686
      %v688 = vlaneseq
      %v689 = vshrl.u32 %v688, 7
      %v690 = vsub.s32 0, %v689
      %v691 = vrot.slane %v605, %v690
      %v692 = vlaneseq
      %v693 = vshrl.u32 %v692, 7
      %v694 = vsub.s32 1, %v693
      %v695 = vrot.slane %v605, %v694
      %v696 = vlaneseq
      %v697 = vshrl.u32 %v696, 7
      %v698 = vsub.s32 0, %v697
      %v699 = vrot.slane %v606, %v698
      %v700 = vlaneseq
      %v701 = vshrl.u32 %v700, 7
      %v702 = vsub.s32 1, %v701
      %v703 = vrot.slane %v606, %v702
      %v704 = vlaneseq
      %v705 = vshrl.u32 %v704, 7
      %v706 = vsub.s32 0, %v705
      %v707 = vrot.slane %v607, %v706
      %v708 = vlaneseq
      %v709 = vshrl.u32 %v708, 7
      %v710 = vsub.s32 1, %v709
      %v711 = vrot.slane %v607, %v710
      %v720 = vadd.f32 %v656, %v683
      %v721 = vadd.f32 %v657, %v687
      %v722 = vadd.f32 %v658, %v683
      %v723 = vadd.f32 %v659, %v687
      %v724 = vadd.f32 %v660, %v683
      %v725 = vadd.f32 %v661, %v687
      %v726 = vadd.f32 %v662, %v691
      %v727 = vadd.f32 %v663, %v695
      %v728 = vadd.f32 %v664, %v691
      %v729 = vadd.f32 %v665, %v695
      %v730 = vadd.f32 %v666, %v691
      %v731 = vadd.f32 %v667, %v695
      %v732 = vadd.f32 %v668, %v699
      %v733 = vadd.f32 %v669, %v703
      %v734 = vadd.f32 %v670, %v699
      %v735 = vadd.f32 %v671, %v703
      %v736 = vadd.f32 %v672, %v699
      %v737 = vadd.f32 %v673, %v703
      %v738 = vadd.f32 %v674, %v707
      %v739 = vadd.f32 %v675, %v711
      %v740 = vadd.f32 %v676, %v707
      %v741 = vadd.f32 %v677, %v711
      %v742 = vadd.f32 %v678, %v707
      %v743 = vadd.f32 %v679, %v711
      %v744 = vmax.f32 %v720, 0.0
      %v745 = vmax.f32 %v721, 0.0
      %v746 = vmax.f32 %v722, 0.0
      %v747 = vmax.f32 %v723, 0.0
      %v748 = vmax.f32 %v724, 0.0
      %v749 = vmax.f32 %v725, 0.0
      %v750 = vmax.f32 %v726, 0.0
      %v751 = vmax.f32 %v727, 0.0
      %v752 = vmax.f32 %v728, 0.0
      %v753 = vmax.f32 %v729, 0.0
      %v754 = vmax.f32 %v730, 0.0
      %v755 = vmax.f32 %v731, 0.0
      %v756 = vmax.f32 %v732, 0.0
      %v757 = vmax.f32 %v733, 0.0
      %v758 = vmax.f32 %v734, 0.0
      %v759 = vmax.f32 %v735, 0.0
      %v760 = vmax.f32 %v736, 0.0
      %v761 = vmax.f32 %v737, 0.0
      %v762 = vmax.f32 %v738, 0.0
      %v763 = vmax.f32 %v739, 0.0
      %v764 = vmax.f32 %v740, 0.0
      %v765 = vmax.f32 %v741, 0.0
      %v766 = vmax.f32 %v742, 0.0
      %v767 = vmax.f32 %v743, 0.0
      %v768 = vcombine.low %v744, %v756
      %v769 = vcombine.high %v744, %v756
      %v771 = vunpack.c.l.s4 1983009808
      %v772 = vunpack.c.0.s8 %v771
      %v773 = vlaneseq
      %v774 = vshrl.u32 %v773, 7
      %v775 = vsub.s32 %v772, %v774
      %v776 = vrot.slane %v768, %v775
      %v778 = vunpack.c.l.s4 1983009808
      %v779 = vunpack.c.0.s8 %v778
      %v780 = vlaneseq
      %v781 = vshrl.u32 %v780, 7
      %v782 = vsub.s32 %v779, %v781
      %v783 = vrot.slane %v769, %v782
      %v784 = vcombine.low %v750, %v762
      %v785 = vcombine.high %v750, %v762
      %v787 = vunpack.c.l.s4 1983009808
      %v788 = vunpack.c.0.s8 %v787
      %v789 = vlaneseq
      %v790 = vshrl.u32 %v789, 7
      %v791 = vsub.s32 %v788, %v790
      %v792 = vrot.slane %v784, %v791
      %v794 = vunpack.c.l.s4 1983009808
      %v795 = vunpack.c.0.s8 %v794
      %v796 = vlaneseq
      %v797 = vshrl.u32 %v796, 7
      %v798 = vsub.s32 %v795, %v797
      %v799 = vrot.slane %v785, %v798
      %v800 = vcombine.low %v776, %v792
      %v801 = vcombine.high %v776, %v792
      %v803 = vunpack.c.l.s4 1934713408
      %v804 = vunpack.c.0.s8 %v803
      %v805 = vlaneseq
      %v806 = vshrl.u32 %v805, 7
      %v807 = vsub.s32 %v804, %v806
      %v808 = vrot.slane %v800, %v807
      %v810 = vunpack.c.l.s4 1934713408
      %v811 = vunpack.c.0.s8 %v810
      %v812 = vlaneseq
      %v813 = vshrl.u32 %v812, 7
      %v814 = vsub.s32 %v811, %v813
      %v815 = vrot.slane %v801, %v814
      %v816 = vcombine.low %v783, %v799
      %v817 = vcombine.high %v783, %v799
      %v819 = vunpack.c.l.s4 1934713408
      %v820 = vunpack.c.0.s8 %v819
      %v821 = vlaneseq
      %v822 = vshrl.u32 %v821, 7
      %v823 = vsub.s32 %v820, %v822
      %v824 = vrot.slane %v816, %v823
      %v826 = vunpack.c.l.s4 1934713408
      %v827 = vunpack.c.0.s8 %v826
      %v828 = vlaneseq
      %v829 = vshrl.u32 %v828, 7
      %v830 = vsub.s32 %v827, %v829
      %v831 = vrot.slane %v817, %v830
      %v832 = vcombine.high %v808, 0.0
      %v833 = vcombine.high %v815, 0.0
      %v834 = vcombine.high %v824, 0.0
      %v835 = vcombine.high %v831, 0.0
      %v836 = vcombine.low %v746, %v758
      %v837 = vcombine.high %v746, %v758
      %v839 = vunpack.c.l.s4 1983009808
      %v840 = vunpack.c.0.s8 %v839
      %v841 = vlaneseq
      %v842 = vshrl.u32 %v841, 7
      %v843 = vsub.s32 %v840, %v842
      %v844 = vrot.slane %v836, %v843
      %v846 = vunpack.c.l.s4 1983009808
      %v847 = vunpack.c.0.s8 %v846
      %v848 = vlaneseq
      %v849 = vshrl.u32 %v848, 7
      %v850 = vsub.s32 %v847, %v849
      %v851 = vrot.slane %v837, %v850
      %v852 = vcombine.low %v752, %v764
      %v853 = vcombine.high %v752, %v764
      %v855 = vunpack.c.l.s4 1983009808
      %v856 = vunpack.c.0.s8 %v855
      %v857 = vlaneseq
      %v858 = vshrl.u32 %v857, 7
      %v859 = vsub.s32 %v856, %v858
      %v860 = vrot.slane %v852, %v859
      %v862 = vunpack.c.l.s4 1983009808
      %v863 = vunpack.c.0.s8 %v862
      %v864 = vlaneseq
      %v865 = vshrl.u32 %v864, 7
      %v866 = vsub.s32 %v863, %v865
      %v867 = vrot.slane %v853, %v866
      %v868 = vcombine.low %v844, %v860
      %v869 = vcombine.high %v844, %v860
      %v871 = vunpack.c.l.s4 1934713408
      %v872 = vunpack.c.0.s8 %v871
      %v873 = vlaneseq
      %v874 = vshrl.u32 %v873, 7
      %v875 = vsub.s32 %v872, %v874
      %v876 = vrot.slane %v868, %v875
      %v878 = vunpack.c.l.s4 1934713408
      %v879 = vunpack.c.0.s8 %v878
      %v880 = vlaneseq
      %v881 = vshrl.u32 %v880, 7
      %v882 = vsub.s32 %v879, %v881
      %v883 = vrot.slane %v869, %v882
      %v884 = vcombine.low %v851, %v867
      %v885 = vcombine.high %v851, %v867
      %v887 = vunpack.c.l.s4 1934713408
      %v888 = vunpack.c.0.s8 %v887
      %v889 = vlaneseq
      %v890 = vshrl.u32 %v889, 7
      %v891 = vsub.s32 %v888, %v890
      %v892 = vrot.slane %v884, %v891
      %v894 = vunpack.c.l.s4 1934713408
      %v895 = vunpack.c.0.s8 %v894
      %v896 = vlaneseq
      %v897 = vshrl.u32 %v896, 7
      %v898 = vsub.s32 %v895, %v897
      %v899 = vrot.slane %v885, %v898
      %v900 = vcombine.high %v876, 0.0
      %v901 = vcombine.high %v883, 0.0
      %v902 = vcombine.high %v892, 0.0
      %v903 = vcombine.high %v899, 0.0
      %v904 = vcombine.low %v748, %v760
      %v905 = vcombine.high %v748, %v760
      %v907 = vunpack.c.l.s4 1983009808
      %v908 = vunpack.c.0.s8 %v907
      %v909 = vlaneseq
      %v910 = vshrl.u32 %v909, 7
      %v911 = vsub.s32 %v908, %v910
      %v912 = vrot.slane %v904, %v911
      %v914 = vunpack.c.l.s4 1983009808
      %v915 = vunpack.c.0.s8 %v914
      %v916 = vlaneseq
      %v917 = vshrl.u32 %v916, 7
      %v918 = vsub.s32 %v915, %v917
      %v919 = vrot.slane %v905, %v918
      %v920 = vcombine.low %v754, %v766
      %v921 = vcombine.high %v754, %v766
      %v923 = vunpack.c.l.s4 1983009808
      %v924 = vunpack.c.0.s8 %v923
      %v925 = vlaneseq
      %v926 = vshrl.u32 %v925, 7
      %v927 = vsub.s32 %v924, %v926
      %v928 = vrot.slane %v920, %v927
      %v930 = vunpack.c.l.s4 1983009808
      %v931 = vunpack.c.0.s8 %v930
      %v932 = vlaneseq
      %v933 = vshrl.u32 %v932, 7
      %v934 = vsub.s32 %v931, %v933
      %v935 = vrot.slane %v921, %v934
      %v936 = vcombine.low %v912, %v928
      %v937 = vcombine.high %v912, %v928
      %v939 = vunpack.c.l.s4 1934713408
      %v940 = vunpack.c.0.s8 %v939
      %v941 = vlaneseq
      %v942 = vshrl.u32 %v941, 7
      %v943 = vsub.s32 %v940, %v942
      %v944 = vrot.slane %v936, %v943
      %v946 = vunpack.c.l.s4 1934713408
      %v947 = vunpack.c.0.s8 %v946
      %v948 = vlaneseq
      %v949 = vshrl.u32 %v948, 7
      %v950 = vsub.s32 %v947, %v949
      %v951 = vrot.slane %v937, %v950
      %v952 = vcombine.low %v919, %v935
      %v953 = vcombine.high %v919, %v935
      %v955 = vunpack.c.l.s4 1934713408
      %v956 = vunpack.c.0.s8 %v955
      %v957 = vlaneseq
      %v958 = vshrl.u32 %v957, 7
      %v959 = vsub.s32 %v956, %v958
      %v960 = vrot.slane %v952, %v959
      %v962 = vunpack.c.l.s4 1934713408
      %v963 = vunpack.c.0.s8 %v962
      %v964 = vlaneseq
      %v965 = vshrl.u32 %v964, 7
      %v966 = vsub.s32 %v963, %v965
      %v967 = vrot.slane %v953, %v966
      %v968 = vcombine.high %v944, 0.0
      %v969 = vcombine.high %v951, 0.0
      %v970 = vcombine.high %v960, 0.0
      %v971 = vcombine.high %v967, 0.0
      %v972 = vcombine.low %v745, %v757
      %v973 = vcombine.high %v745, %v757
      %v975 = vunpack.c.l.s4 1983009808
      %v976 = vunpack.c.0.s8 %v975
      %v977 = vlaneseq
      %v978 = vshrl.u32 %v977, 7
      %v979 = vsub.s32 %v976, %v978
      %v980 = vrot.slane %v972, %v979
      %v982 = vunpack.c.l.s4 1983009808
      %v983 = vunpack.c.0.s8 %v982
      %v984 = vlaneseq
      %v985 = vshrl.u32 %v984, 7
      %v986 = vsub.s32 %v983, %v985
      %v987 = vrot.slane %v973, %v986
      %v988 = vcombine.low %v751, %v763
      %v989 = vcombine.high %v751, %v763
      %v991 = vunpack.c.l.s4 1983009808
      %v992 = vunpack.c.0.s8 %v991
      %v993 = vlaneseq
      %v994 = vshrl.u32 %v993, 7
      %v995 = vsub.s32 %v992, %v994
      %v996 = vrot.slane %v988, %v995
      %v998 = vunpack.c.l.s4 1983009808
      %v999 = vunpack.c.0.s8 %v998
      %v1000 = vlaneseq
      %v1001 = vshrl.u32 %v1000, 7
      %v1002 = vsub.s32 %v999, %v1001
      %v1003 = vrot.slane %v989, %v1002
      %v1004 = vcombine.low %v980, %v996
      %v1005 = vcombine.high %v980, %v996
      %v1007 = vunpack.c.l.s4 1934713408
      %v1008 = vunpack.c.0.s8 %v1007
      %v1009 = vlaneseq
      %v1010 = vshrl.u32 %v1009, 7
      %v1011 = vsub.s32 %v1008, %v1010
      %v1012 = vrot.slane %v1004, %v1011
      %v1014 = vunpack.c.l.s4 1934713408
      %v1015 = vunpack.c.0.s8 %v1014
      %v1016 = vlaneseq
      %v1017 = vshrl.u32 %v1016, 7
      %v1018 = vsub.s32 %v1015, %v1017
      %v1019 = vrot.slane %v1005, %v1018
      %v1020 = vcombine.low %v987, %v1003
      %v1021 = vcombine.high %v987, %v1003
      %v1023 = vunpack.c.l.s4 1934713408
      %v1024 = vunpack.c.0.s8 %v1023
      %v1025 = vlaneseq
      %v1026 = vshrl.u32 %v1025, 7
      %v1027 = vsub.s32 %v1024, %v1026
      %v1028 = vrot.slane %v1020, %v1027
      %v1030 = vunpack.c.l.s4 1934713408
      %v1031 = vunpack.c.0.s8 %v1030
      %v1032 = vlaneseq
      %v1033 = vshrl.u32 %v1032, 7
      %v1034 = vsub.s32 %v1031, %v1033
      %v1035 = vrot.slane %v1021, %v1034
      %v1036 = vcombine.high %v1012, 0.0
      %v1037 = vcombine.high %v1019, 0.0
      %v1038 = vcombine.high %v1028, 0.0
      %v1039 = vcombine.high %v1035, 0.0
      %v1040 = vcombine.low %v747, %v759
      %v1041 = vcombine.high %v747, %v759
      %v1043 = vunpack.c.l.s4 1983009808
      %v1044 = vunpack.c.0.s8 %v1043
      %v1045 = vlaneseq
      %v1046 = vshrl.u32 %v1045, 7
      %v1047 = vsub.s32 %v1044, %v1046
      %v1048 = vrot.slane %v1040, %v1047
      %v1050 = vunpack.c.l.s4 1983009808
      %v1051 = vunpack.c.0.s8 %v1050
      %v1052 = vlaneseq
      %v1053 = vshrl.u32 %v1052, 7
      %v1054 = vsub.s32 %v1051, %v1053
      %v1055 = vrot.slane %v1041, %v1054
      %v1056 = vcombine.low %v753, %v765
      %v1057 = vcombine.high %v753, %v765
      %v1059 = vunpack.c.l.s4 1983009808
      %v1060 = vunpack.c.0.s8 %v1059
      %v1061 = vlaneseq
      %v1062 = vshrl.u32 %v1061, 7
      %v1063 = vsub.s32 %v1060, %v1062
      %v1064 = vrot.slane %v1056, %v1063
      %v1066 = vunpack.c.l.s4 1983009808
      %v1067 = vunpack.c.0.s8 %v1066
      %v1068 = vlaneseq
      %v1069 = vshrl.u32 %v1068, 7
      %v1070 = vsub.s32 %v1067, %v1069
      %v1071 = vrot.slane %v1057, %v1070
      %v1072 = vcombine.low %v1048, %v1064
      %v1073 = vcombine.high %v1048, %v1064
      %v1075 = vunpack.c.l.s4 1934713408
      %v1076 = vunpack.c.0.s8 %v1075
      %v1077 = vlaneseq
      %v1078 = vshrl.u32 %v1077, 7
      %v1079 = vsub.s32 %v1076, %v1078
      %v1080 = vrot.slane %v1072, %v1079
      %v1082 = vunpack.c.l.s4 1934713408
      %v1083 = vunpack.c.0.s8 %v1082
      %v1084 = vlaneseq
      %v1085 = vshrl.u32 %v1084, 7
      %v1086 = vsub.s32 %v1083, %v1085
      %v1087 = vrot.slane %v1073, %v1086
      %v1088 = vcombine.low %v1055, %v1071
      %v1089 = vcombine.high %v1055, %v1071
      %v1091 = vunpack.c.l.s4 1934713408
      %v1092 = vunpack.c.0.s8 %v1091
      %v1093 = vlaneseq
      %v1094 = vshrl.u32 %v1093, 7
      %v1095 = vsub.s32 %v1092, %v1094
      %v1096 = vrot.slane %v1088, %v1095
      %v1098 = vunpack.c.l.s4 1934713408
      %v1099 = vunpack.c.0.s8 %v1098
      %v1100 = vlaneseq
      %v1101 = vshrl.u32 %v1100, 7
      %v1102 = vsub.s32 %v1099, %v1101
      %v1103 = vrot.slane %v1089, %v1102
      %v1104 = vcombine.high %v1080, 0.0
      %v1105 = vcombine.high %v1087, 0.0
      %v1106 = vcombine.high %v1096, 0.0
      %v1107 = vcombine.high %v1103, 0.0
      %v1108 = vcombine.low %v749, %v761
      %v1109 = vcombine.high %v749, %v761
      %v1111 = vunpack.c.l.s4 1983009808
      %v1112 = vunpack.c.0.s8 %v1111
      %v1113 = vlaneseq
      %v1114 = vshrl.u32 %v1113, 7
      %v1115 = vsub.s32 %v1112, %v1114
      %v1116 = vrot.slane %v1108, %v1115
      %v1118 = vunpack.c.l.s4 1983009808
      %v1119 = vunpack.c.0.s8 %v1118
      %v1120 = vlaneseq
      %v1121 = vshrl.u32 %v1120, 7
      %v1122 = vsub.s32 %v1119, %v1121
      %v1123 = vrot.slane %v1109, %v1122
      %v1124 = vcombine.low %v755, %v767
      %v1125 = vcombine.high %v755, %v767
      %v1127 = vunpack.c.l.s4 1983009808
      %v1128 = vunpack.c.0.s8 %v1127
      %v1129 = vlaneseq
      %v1130 = vshrl.u32 %v1129, 7
      %v1131 = vsub.s32 %v1128, %v1130
      %v1132 = vrot.slane %v1124, %v1131
      %v1134 = vunpack.c.l.s4 1983009808
      %v1135 = vunpack.c.0.s8 %v1134
      %v1136 = vlaneseq
      %v1137 = vshrl.u32 %v1136, 7
      %v1138 = vsub.s32 %v1135, %v1137
      %v1139 = vrot.slane %v1125, %v1138
      %v1140 = vcombine.low %v1116, %v1132
      %v1141 = vcombine.high %v1116, %v1132
      %v1143 = vunpack.c.l.s4 1934713408
      %v1144 = vunpack.c.0.s8 %v1143
      %v1145 = vlaneseq
      %v1146 = vshrl.u32 %v1145, 7
      %v1147 = vsub.s32 %v1144, %v1146
      %v1148 = vrot.slane %v1140, %v1147
      %v1150 = vunpack.c.l.s4 1934713408
      %v1151 = vunpack.c.0.s8 %v1150
      %v1152 = vlaneseq
      %v1153 = vshrl.u32 %v1152, 7
      %v1154 = vsub.s32 %v1151, %v1153
      %v1155 = vrot.slane %v1141, %v1154
      %v1156 = vcombine.low %v1123, %v1139
      %v1157 = vcombine.high %v1123, %v1139
      %v1159 = vunpack.c.l.s4 1934713408
      %v1160 = vunpack.c.0.s8 %v1159
      %v1161 = vlaneseq
      %v1162 = vshrl.u32 %v1161, 7
      %v1163 = vsub.s32 %v1160, %v1162
      %v1164 = vrot.slane %v1156, %v1163
      %v1166 = vunpack.c.l.s4 1934713408
      %v1167 = vunpack.c.0.s8 %v1166
      %v1168 = vlaneseq
      %v1169 = vshrl.u32 %v1168, 7
      %v1170 = vsub.s32 %v1167, %v1169
      %v1171 = vrot.slane %v1157, %v1170
      %v1172 = vcombine.high %v1148, 0.0
      %v1173 = vcombine.high %v1155, 0.0
      %v1174 = vcombine.high %v1164, 0.0
      %v1175 = vcombine.high %v1171, 0.0
      %v1176 = vld [vmem:[%s4] sm:$0xf]
      %s1177 = scalar_lea.vmem %s4, 4
      %v1178 = vld [vmem:[%s1177] sm:$0xf]
      %vm1179 = vcmask 31744
      %v1181 = vsel %vm1179, %v1178, 0
      %vm1183 = vcmask 1043456
      %v1185 = vsel %vm1183, %v1012, 0
      %v1188 = vsel %vm1183, %v1036, 0
      %v1191 = vsel %vm1183, %v1019, 0
      %v1194 = vsel %vm1183, %v1037, 0
      %v1197 = vsel %vm1183, %v1028, 0
      %v1200 = vsel %vm1183, %v1038, 0
      %v1203 = vsel %vm1183, %v1035, 0
      %v1206 = vsel %vm1183, %v1039, 0
      %v1209 = vsel %vm1183, %v1080, 0
      %v1212 = vsel %vm1183, %v1104, 0
      %v1215 = vsel %vm1183, %v1087, 0
      %v1218 = vsel %vm1183, %v1105, 0
      %v1221 = vsel %vm1183, %v1096, 0
      %v1224 = vsel %vm1183, %v1106, 0
      %v1227 = vsel %vm1183, %v1103, 0
      %v1230 = vsel %vm1183, %v1107, 0
      %v1233 = vsel %vm1183, %v1148, 0
      %v1236 = vsel %vm1183, %v1172, 0
      %v1239 = vsel %vm1183, %v1155, 0
      %v1242 = vsel %vm1183, %v1173, 0
      %v1245 = vsel %vm1183, %v1164, 0
      %v1248 = vsel %vm1183, %v1174, 0
      %v1251 = vsel %vm1183, %v1171, 0
      %v1254 = vsel %vm1183, %v1175, 0
      %1256 = vmatprep.subr.mxu0 0.0
      %1257 = vmatpush1.msra.mxu0 0.0
      %1258 = vmatprep.subr.mxu0 0.0
      %1259 = vmatpush1.msra.mxu0 0.0
      %1260 = vmatprep.subr.mxu0 0.0
      %1261 = vmatpush1.msra.mxu0 0.0
      %1262 = vmatprep.subr.mxu0 0.0
      %1263 = vmatpush1.msra.mxu0 0.0
      %1264 = vmatprep.subr.mxu0 0.0
      %1265 = vmatpush1.msra.mxu0 0.0
      %1266 = vmatprep.subr.mxu0 0.0
      %1267 = vmatpush1.msra.mxu0 0.0
      %1268 = vmatprep.subr.mxu0 0.0
      %1269 = vmatpush1.msra.mxu0 0.0
      %1270 = vmatprep.subr.mxu0 0.0
      %1271 = vmatpush1.msra.mxu0 0.0
      %1272 = vmatprep.subr.mxu0 0.0
      %1273 = vmatpush1.msra.mxu0 0.0
      %1274 = vmatprep.subr.mxu0 0.0
      %1275 = vmatpush1.msra.mxu0 0.0
      %1276 = vmatprep.subr.mxu0 0.0
      %1277 = vmatpush1.msra.mxu0 0.0
      %1278 = vmatprep.subr.mxu0 0.0
      %1279 = vmatpush1.msra.mxu0 0.0
      %1280 = vmatprep.subr.mxu0 0.0
      %1281 = vmatpush1.msra.mxu0 0.0
      %1282 = vmatprep.subr.mxu0 0.0
      %1283 = vmatpush1.msra.mxu0 0.0
      %1284 = vmatprep.subr.mxu0 0.0
      %1285 = vmatpush1.msra.mxu0 0.0
      %1286 = vmatprep.subr.mxu0 %v1188
      %1287 = vmatpush1.msra.mxu0 %v1185
      %1288 = vmatprep.subr.mxu0 0.0
      %1289 = vmatpush2.msra.mxu0 0.0
      %1290 = vmatprep.subr.mxu0 0.0
      %1291 = vmatpush2.msra.mxu0 0.0
      %1292 = vmatprep.subr.mxu0 0.0
      %1293 = vmatpush2.msra.mxu0 0.0
      %1294 = vmatprep.subr.mxu0 0.0
      %1295 = vmatpush2.msra.mxu0 0.0
      %1296 = vmatprep.subr.mxu0 0.0
      %1297 = vmatpush2.msra.mxu0 0.0
      %1298 = vmatprep.subr.mxu0 0.0
      %1299 = vmatpush2.msra.mxu0 0.0
      %1300 = vmatprep.subr.mxu0 0.0
      %1301 = vmatpush2.msra.mxu0 0.0
      %1302 = vmatprep.subr.mxu0 0.0
      %1303 = vmatpush2.msra.mxu0 0.0
      %1304 = vmatprep.subr.mxu0 0.0
      %1305 = vmatpush2.msra.mxu0 0.0
      %1306 = vmatprep.subr.mxu0 0.0
      %1307 = vmatpush2.msra.mxu0 0.0
      %1308 = vmatprep.subr.mxu0 0.0
      %1309 = vmatpush2.msra.mxu0 0.0
      %1310 = vmatprep.subr.mxu0 0.0
      %1311 = vmatpush2.msra.mxu0 0.0
      %1312 = vmatprep.subr.mxu0 0.0
      %1313 = vmatpush2.msra.mxu0 0.0
      %1314 = vmatprep.subr.mxu0 0.0
      %1315 = vmatpush2.msra.mxu0 0.0
      %1316 = vmatprep.subr.mxu0 0.0
      %1317 = vmatpush2.msra.mxu0 0.0
      %1318 = vmatprep.subr.mxu0 0.0
      %1319 = vmatpush2.msra.mxu0 0.0
      %1320 = vmatprep.mubr.f32.mxu0 0.0
      %1321 = vmatmul.mubr.f32.gmra.mxu0 %v1181
      %v1322 = vpop.f32.mrf.mxu0
      %v1323 = vadd.f32 0.0, %v1322
      %v1324 = vpop.f32.mrf.mxu0
      %v1325 = vadd.f32 0.0, %v1324
      %1326 = vdwg.mxu0
      %1327 = vmatprep.subr.mxu0 0.0
      %1328 = vmatpush1.msra.mxu0 0.0
      %1329 = vmatprep.subr.mxu0 0.0
      %1330 = vmatpush1.msra.mxu0 0.0
      %1331 = vmatprep.subr.mxu0 0.0
      %1332 = vmatpush1.msra.mxu0 0.0
      %1333 = vmatprep.subr.mxu0 0.0
      %1334 = vmatpush1.msra.mxu0 0.0
      %1335 = vmatprep.subr.mxu0 0.0
      %1336 = vmatpush1.msra.mxu0 0.0
      %1337 = vmatprep.subr.mxu0 0.0
      %1338 = vmatpush1.msra.mxu0 0.0
      %1339 = vmatprep.subr.mxu0 0.0
      %1340 = vmatpush1.msra.mxu0 0.0
      %1341 = vmatprep.subr.mxu0 0.0
      %1342 = vmatpush1.msra.mxu0 0.0
      %1343 = vmatprep.subr.mxu0 0.0
      %1344 = vmatpush1.msra.mxu0 0.0
      %1345 = vmatprep.subr.mxu0 0.0
      %1346 = vmatpush1.msra.mxu0 0.0
      %1347 = vmatprep.subr.mxu0 0.0
      %1348 = vmatpush1.msra.mxu0 0.0
      %1349 = vmatprep.subr.mxu0 0.0
      %1350 = vmatpush1.msra.mxu0 0.0
      %1351 = vmatprep.subr.mxu0 0.0
      %1352 = vmatpush1.msra.mxu0 0.0
      %1353 = vmatprep.subr.mxu0 0.0
      %1354 = vmatpush1.msra.mxu0 0.0
      %1355 = vmatprep.subr.mxu0 0.0
      %1356 = vmatpush1.msra.mxu0 0.0
      %1357 = vmatprep.subr.mxu0 %v1194
      %1358 = vmatpush1.msra.mxu0 %v1191
      %1359 = vmatprep.subr.mxu0 0.0
      %1360 = vmatpush2.msra.mxu0 0.0
      %1361 = vmatprep.subr.mxu0 0.0
      %1362 = vmatpush2.msra.mxu0 0.0
      %1363 = vmatprep.subr.mxu0 0.0
      %1364 = vmatpush2.msra.mxu0 0.0
      %1365 = vmatprep.subr.mxu0 0.0
      %1366 = vmatpush2.msra.mxu0 0.0
      %1367 = vmatprep.subr.mxu0 0.0
      %1368 = vmatpush2.msra.mxu0 0.0
      %1369 = vmatprep.subr.mxu0 0.0
      %1370 = vmatpush2.msra.mxu0 0.0
      %1371 = vmatprep.subr.mxu0 0.0
      %1372 = vmatpush2.msra.mxu0 0.0
      %1373 = vmatprep.subr.mxu0 0.0
      %1374 = vmatpush2.msra.mxu0 0.0
      %1375 = vmatprep.subr.mxu0 0.0
      %1376 = vmatpush2.msra.mxu0 0.0
      %1377 = vmatprep.subr.mxu0 0.0
      %1378 = vmatpush2.msra.mxu0 0.0
      %1379 = vmatprep.subr.mxu0 0.0
      %1380 = vmatpush2.msra.mxu0 0.0
      %1381 = vmatprep.subr.mxu0 0.0
      %1382 = vmatpush2.msra.mxu0 0.0
      %1383 = vmatprep.subr.mxu0 0.0
      %1384 = vmatpush2.msra.mxu0 0.0
      %1385 = vmatprep.subr.mxu0 0.0
      %1386 = vmatpush2.msra.mxu0 0.0
      %1387 = vmatprep.subr.mxu0 0.0
      %1388 = vmatpush2.msra.mxu0 0.0
      %1389 = vmatprep.subr.mxu0 0.0
      %1390 = vmatpush2.msra.mxu0 0.0
      %1391 = vmatprep.mubr.f32.mxu0 0.0
      %1392 = vmatmul.mubr.f32.gmra.mxu0 %v1181
      %v1393 = vpop.f32.mrf.mxu0
      %v1394 = vadd.f32 0.0, %v1393
      %v1395 = vpop.f32.mrf.mxu0
      %v1396 = vadd.f32 0.0, %v1395
      %1397 = vdwg.mxu0
      %1398 = vmatprep.subr.mxu0 0.0
      %1399 = vmatpush1.msra.mxu0 0.0
      %1400 = vmatprep.subr.mxu0 0.0
      %1401 = vmatpush1.msra.mxu0 0.0
      %1402 = vmatprep.subr.mxu0 0.0
      %1403 = vmatpush1.msra.mxu0 0.0
      %1404 = vmatprep.subr.mxu0 0.0
      %1405 = vmatpush1.msra.mxu0 0.0
      %1406 = vmatprep.subr.mxu0 0.0
      %1407 = vmatpush1.msra.mxu0 0.0
      %1408 = vmatprep.subr.mxu0 0.0
      %1409 = vmatpush1.msra.mxu0 0.0
      %1410 = vmatprep.subr.mxu0 0.0
      %1411 = vmatpush1.msra.mxu0 0.0
      %1412 = vmatprep.subr.mxu0 0.0
      %1413 = vmatpush1.msra.mxu0 0.0
      %1414 = vmatprep.subr.mxu0 0.0
      %1415 = vmatpush1.msra.mxu0 0.0
      %1416 = vmatprep.subr.mxu0 0.0
      %1417 = vmatpush1.msra.mxu0 0.0
      %1418 = vmatprep.subr.mxu0 0.0
      %1419 = vmatpush1.msra.mxu0 0.0
      %1420 = vmatprep.subr.mxu0 0.0
      %1421 = vmatpush1.msra.mxu0 0.0
      %1422 = vmatprep.subr.mxu0 0.0
      %1423 = vmatpush1.msra.mxu0 0.0
      %1424 = vmatprep.subr.mxu0 0.0
      %1425 = vmatpush1.msra.mxu0 0.0
      %1426 = vmatprep.subr.mxu0 0.0
      %1427 = vmatpush1.msra.mxu0 0.0
      %1428 = vmatprep.subr.mxu0 %v1200
      %1429 = vmatpush1.msra.mxu0 %v1197
      %1430 = vmatprep.subr.mxu0 0.0
      %1431 = vmatpush2.msra.mxu0 0.0
      %1432 = vmatprep.subr.mxu0 0.0
      %1433 = vmatpush2.msra.mxu0 0.0
      %1434 = vmatprep.subr.mxu0 0.0
      %1435 = vmatpush2.msra.mxu0 0.0
      %1436 = vmatprep.subr.mxu0 0.0
      %1437 = vmatpush2.msra.mxu0 0.0
      %1438 = vmatprep.subr.mxu0 0.0
      %1439 = vmatpush2.msra.mxu0 0.0
      %1440 = vmatprep.subr.mxu0 0.0
      %1441 = vmatpush2.msra.mxu0 0.0
      %1442 = vmatprep.subr.mxu0 0.0
      %1443 = vmatpush2.msra.mxu0 0.0
      %1444 = vmatprep.subr.mxu0 0.0
      %1445 = vmatpush2.msra.mxu0 0.0
      %1446 = vmatprep.subr.mxu0 0.0
      %1447 = vmatpush2.msra.mxu0 0.0
      %1448 = vmatprep.subr.mxu0 0.0
      %1449 = vmatpush2.msra.mxu0 0.0
      %1450 = vmatprep.subr.mxu0 0.0
      %1451 = vmatpush2.msra.mxu0 0.0
      %1452 = vmatprep.subr.mxu0 0.0
      %1453 = vmatpush2.msra.mxu0 0.0
      %1454 = vmatprep.subr.mxu0 0.0
      %1455 = vmatpush2.msra.mxu0 0.0
      %1456 = vmatprep.subr.mxu0 0.0
      %1457 = vmatpush2.msra.mxu0 0.0
      %1458 = vmatprep.subr.mxu0 0.0
      %1459 = vmatpush2.msra.mxu0 0.0
      %1460 = vmatprep.subr.mxu0 0.0
      %1461 = vmatpush2.msra.mxu0 0.0
      %1462 = vmatprep.mubr.f32.mxu0 0.0
      %1463 = vmatmul.mubr.f32.gmra.mxu0 %v1181
      %v1464 = vpop.f32.mrf.mxu0
      %v1465 = vadd.f32 0.0, %v1464
      %v1466 = vpop.f32.mrf.mxu0
      %v1467 = vadd.f32 0.0, %v1466
      %1468 = vdwg.mxu0
      %1469 = vmatprep.subr.mxu0 0.0
      %1470 = vmatpush1.msra.mxu0 0.0
      %1471 = vmatprep.subr.mxu0 0.0
      %1472 = vmatpush1.msra.mxu0 0.0
      %1473 = vmatprep.subr.mxu0 0.0
      %1474 = vmatpush1.msra.mxu0 0.0
      %1475 = vmatprep.subr.mxu0 0.0
      %1476 = vmatpush1.msra.mxu0 0.0
      %1477 = vmatprep.subr.mxu0 0.0
      %1478 = vmatpush1.msra.mxu0 0.0
      %1479 = vmatprep.subr.mxu0 0.0
      %1480 = vmatpush1.msra.mxu0 0.0
      %1481 = vmatprep.subr.mxu0 0.0
      %1482 = vmatpush1.msra.mxu0 0.0
      %1483 = vmatprep.subr.mxu0 0.0
      %1484 = vmatpush1.msra.mxu0 0.0
      %1485 = vmatprep.subr.mxu0 0.0
      %1486 = vmatpush1.msra.mxu0 0.0
      %1487 = vmatprep.subr.mxu0 0.0
      %1488 = vmatpush1.msra.mxu0 0.0
      %1489 = vmatprep.subr.mxu0 0.0
      %1490 = vmatpush1.msra.mxu0 0.0
      %1491 = vmatprep.subr.mxu0 0.0
      %1492 = vmatpush1.msra.mxu0 0.0
      %1493 = vmatprep.subr.mxu0 0.0
      %1494 = vmatpush1.msra.mxu0 0.0
      %1495 = vmatprep.subr.mxu0 0.0
      %1496 = vmatpush1.msra.mxu0 0.0
      %1497 = vmatprep.subr.mxu0 0.0
      %1498 = vmatpush1.msra.mxu0 0.0
      %1499 = vmatprep.subr.mxu0 %v1206
      %1500 = vmatpush1.msra.mxu0 %v1203
      %1501 = vmatprep.subr.mxu0 0.0
      %1502 = vmatpush2.msra.mxu0 0.0
      %1503 = vmatprep.subr.mxu0 0.0
      %1504 = vmatpush2.msra.mxu0 0.0
      %1505 = vmatprep.subr.mxu0 0.0
      %1506 = vmatpush2.msra.mxu0 0.0
      %1507 = vmatprep.subr.mxu0 0.0
      %1508 = vmatpush2.msra.mxu0 0.0
      %1509 = vmatprep.subr.mxu0 0.0
      %1510 = vmatpush2.msra.mxu0 0.0
      %1511 = vmatprep.subr.mxu0 0.0
      %1512 = vmatpush2.msra.mxu0 0.0
      %1513 = vmatprep.subr.mxu0 0.0
      %1514 = vmatpush2.msra.mxu0 0.0
      %1515 = vmatprep.subr.mxu0 0.0
      %1516 = vmatpush2.msra.mxu0 0.0
      %1517 = vmatprep.subr.mxu0 0.0
      %1518 = vmatpush2.msra.mxu0 0.0
      %1519 = vmatprep.subr.mxu0 0.0
      %1520 = vmatpush2.msra.mxu0 0.0
      %1521 = vmatprep.subr.mxu0 0.0
      %1522 = vmatpush2.msra.mxu0 0.0
      %1523 = vmatprep.subr.mxu0 0.0
      %1524 = vmatpush2.msra.mxu0 0.0
      %1525 = vmatprep.subr.mxu0 0.0
      %1526 = vmatpush2.msra.mxu0 0.0
      %1527 = vmatprep.subr.mxu0 0.0
      %1528 = vmatpush2.msra.mxu0 0.0
      %1529 = vmatprep.subr.mxu0 0.0
      %1530 = vmatpush2.msra.mxu0 0.0
      %1531 = vmatprep.subr.mxu0 0.0
      %1532 = vmatpush2.msra.mxu0 0.0
      %1533 = vmatprep.mubr.f32.mxu0 0.0
      %1534 = vmatmul.mubr.f32.gmra.mxu0 %v1181
      %v1535 = vpop.f32.mrf.mxu0
      %v1536 = vadd.f32 0.0, %v1535
      %v1537 = vpop.f32.mrf.mxu0
      %v1538 = vadd.f32 0.0, %v1537
      %1539 = vdwg.mxu0
      %1540 = vmatprep.subr.mxu0 0.0
      %1541 = vmatpush1.msra.mxu0 0.0
      %1542 = vmatprep.subr.mxu0 0.0
      %1543 = vmatpush1.msra.mxu0 0.0
      %1544 = vmatprep.subr.mxu0 0.0
      %1545 = vmatpush1.msra.mxu0 0.0
      %1546 = vmatprep.subr.mxu0 0.0
      %1547 = vmatpush1.msra.mxu0 0.0
      %1548 = vmatprep.subr.mxu0 0.0
      %1549 = vmatpush1.msra.mxu0 0.0
      %1550 = vmatprep.subr.mxu0 0.0
      %1551 = vmatpush1.msra.mxu0 0.0
      %1552 = vmatprep.subr.mxu0 0.0
      %1553 = vmatpush1.msra.mxu0 0.0
      %1554 = vmatprep.subr.mxu0 0.0
      %1555 = vmatpush1.msra.mxu0 0.0
      %1556 = vmatprep.subr.mxu0 0.0
      %1557 = vmatpush1.msra.mxu0 0.0
      %1558 = vmatprep.subr.mxu0 0.0
      %1559 = vmatpush1.msra.mxu0 0.0
      %1560 = vmatprep.subr.mxu0 0.0
      %1561 = vmatpush1.msra.mxu0 0.0
      %1562 = vmatprep.subr.mxu0 0.0
      %1563 = vmatpush1.msra.mxu0 0.0
      %1564 = vmatprep.subr.mxu0 0.0
      %1565 = vmatpush1.msra.mxu0 0.0
      %1566 = vmatprep.subr.mxu0 0.0
      %1567 = vmatpush1.msra.mxu0 0.0
      %1568 = vmatprep.subr.mxu0 0.0
      %1569 = vmatpush1.msra.mxu0 0.0
      %1570 = vmatprep.subr.mxu0 %v1212
      %1571 = vmatpush1.msra.mxu0 %v1209
      %1572 = vmatprep.subr.mxu0 0.0
      %1573 = vmatpush2.msra.mxu0 0.0
      %1574 = vmatprep.subr.mxu0 0.0
      %1575 = vmatpush2.msra.mxu0 0.0
      %1576 = vmatprep.subr.mxu0 0.0
      %1577 = vmatpush2.msra.mxu0 0.0
      %1578 = vmatprep.subr.mxu0 0.0
      %1579 = vmatpush2.msra.mxu0 0.0
      %1580 = vmatprep.subr.mxu0 0.0
      %1581 = vmatpush2.msra.mxu0 0.0
      %1582 = vmatprep.subr.mxu0 0.0
      %1583 = vmatpush2.msra.mxu0 0.0
      %1584 = vmatprep.subr.mxu0 0.0
      %1585 = vmatpush2.msra.mxu0 0.0
      %1586 = vmatprep.subr.mxu0 0.0
      %1587 = vmatpush2.msra.mxu0 0.0
      %1588 = vmatprep.subr.mxu0 0.0
      %1589 = vmatpush2.msra.mxu0 0.0
      %1590 = vmatprep.subr.mxu0 0.0
      %1591 = vmatpush2.msra.mxu0 0.0
      %1592 = vmatprep.subr.mxu0 0.0
      %1593 = vmatpush2.msra.mxu0 0.0
      %1594 = vmatprep.subr.mxu0 0.0
      %1595 = vmatpush2.msra.mxu0 0.0
      %1596 = vmatprep.subr.mxu0 0.0
      %1597 = vmatpush2.msra.mxu0 0.0
      %1598 = vmatprep.subr.mxu0 0.0
      %1599 = vmatpush2.msra.mxu0 0.0
      %1600 = vmatprep.subr.mxu0 0.0
      %1601 = vmatpush2.msra.mxu0 0.0
      %1602 = vmatprep.subr.mxu0 0.0
      %1603 = vmatpush2.msra.mxu0 0.0
      %1604 = vmatprep.mubr.f32.mxu0 0.0
      %1605 = vmatmul.mubr.f32.gmra.mxu0 %v1181
      %v1606 = vpop.f32.mrf.mxu0
      %v1607 = vadd.f32 0.0, %v1606
      %v1608 = vpop.f32.mrf.mxu0
      %v1609 = vadd.f32 0.0, %v1608
      %1610 = vdwg.mxu0
      %1611 = vmatprep.subr.mxu0 0.0
      %1612 = vmatpush1.msra.mxu0 0.0
      %1613 = vmatprep.subr.mxu0 0.0
      %1614 = vmatpush1.msra.mxu0 0.0
      %1615 = vmatprep.subr.mxu0 0.0
      %1616 = vmatpush1.msra.mxu0 0.0
      %1617 = vmatprep.subr.mxu0 0.0
      %1618 = vmatpush1.msra.mxu0 0.0
      %1619 = vmatprep.subr.mxu0 0.0
      %1620 = vmatpush1.msra.mxu0 0.0
      %1621 = vmatprep.subr.mxu0 0.0
      %1622 = vmatpush1.msra.mxu0 0.0
      %1623 = vmatprep.subr.mxu0 0.0
      %1624 = vmatpush1.msra.mxu0 0.0
      %1625 = vmatprep.subr.mxu0 0.0
      %1626 = vmatpush1.msra.mxu0 0.0
      %1627 = vmatprep.subr.mxu0 0.0
      %1628 = vmatpush1.msra.mxu0 0.0
      %1629 = vmatprep.subr.mxu0 0.0
      %1630 = vmatpush1.msra.mxu0 0.0
      %1631 = vmatprep.subr.mxu0 0.0
      %1632 = vmatpush1.msra.mxu0 0.0
      %1633 = vmatprep.subr.mxu0 0.0
      %1634 = vmatpush1.msra.mxu0 0.0
      %1635 = vmatprep.subr.mxu0 0.0
      %1636 = vmatpush1.msra.mxu0 0.0
      %1637 = vmatprep.subr.mxu0 0.0
      %1638 = vmatpush1.msra.mxu0 0.0
      %1639 = vmatprep.subr.mxu0 0.0
      %1640 = vmatpush1.msra.mxu0 0.0
      %1641 = vmatprep.subr.mxu0 %v1218
      %1642 = vmatpush1.msra.mxu0 %v1215
      %1643 = vmatprep.subr.mxu0 0.0
      %1644 = vmatpush2.msra.mxu0 0.0
      %1645 = vmatprep.subr.mxu0 0.0
      %1646 = vmatpush2.msra.mxu0 0.0
      %1647 = vmatprep.subr.mxu0 0.0
      %1648 = vmatpush2.msra.mxu0 0.0
      %1649 = vmatprep.subr.mxu0 0.0
      %1650 = vmatpush2.msra.mxu0 0.0
      %1651 = vmatprep.subr.mxu0 0.0
      %1652 = vmatpush2.msra.mxu0 0.0
      %1653 = vmatprep.subr.mxu0 0.0
      %1654 = vmatpush2.msra.mxu0 0.0
      %1655 = vmatprep.subr.mxu0 0.0
      %1656 = vmatpush2.msra.mxu0 0.0
      %1657 = vmatprep.subr.mxu0 0.0
      %1658 = vmatpush2.msra.mxu0 0.0
      %1659 = vmatprep.subr.mxu0 0.0
      %1660 = vmatpush2.msra.mxu0 0.0
      %1661 = vmatprep.subr.mxu0 0.0
      %1662 = vmatpush2.msra.mxu0 0.0
      %1663 = vmatprep.subr.mxu0 0.0
      %1664 = vmatpush2.msra.mxu0 0.0
      %1665 = vmatprep.subr.mxu0 0.0
      %1666 = vmatpush2.msra.mxu0 0.0
      %1667 = vmatprep.subr.mxu0 0.0
      %1668 = vmatpush2.msra.mxu0 0.0
      %1669 = vmatprep.subr.mxu0 0.0
      %1670 = vmatpush2.msra.mxu0 0.0
      %1671 = vmatprep.subr.mxu0 0.0
      %1672 = vmatpush2.msra.mxu0 0.0
      %1673 = vmatprep.subr.mxu0 0.0
      %1674 = vmatpush2.msra.mxu0 0.0
      %1675 = vmatprep.mubr.f32.mxu0 0.0
      %1676 = vmatmul.mubr.f32.gmra.mxu0 %v1181
      %v1677 = vpop.f32.mrf.mxu0
      %v1678 = vadd.f32 0.0, %v1677
      %v1679 = vpop.f32.mrf.mxu0
      %v1680 = vadd.f32 0.0, %v1679
      %1681 = vdwg.mxu0
      %1682 = vmatprep.subr.mxu0 0.0
      %1683 = vmatpush1.msra.mxu0 0.0
      %1684 = vmatprep.subr.mxu0 0.0
      %1685 = vmatpush1.msra.mxu0 0.0
      %1686 = vmatprep.subr.mxu0 0.0
      %1687 = vmatpush1.msra.mxu0 0.0
      %1688 = vmatprep.subr.mxu0 0.0
      %1689 = vmatpush1.msra.mxu0 0.0
      %1690 = vmatprep.subr.mxu0 0.0
      %1691 = vmatpush1.msra.mxu0 0.0
      %1692 = vmatprep.subr.mxu0 0.0
      %1693 = vmatpush1.msra.mxu0 0.0
      %1694 = vmatprep.subr.mxu0 0.0
      %1695 = vmatpush1.msra.mxu0 0.0
      %1696 = vmatprep.subr.mxu0 0.0
      %1697 = vmatpush1.msra.mxu0 0.0
      %1698 = vmatprep.subr.mxu0 0.0
      %1699 = vmatpush1.msra.mxu0 0.0
      %1700 = vmatprep.subr.mxu0 0.0
      %1701 = vmatpush1.msra.mxu0 0.0
      %1702 = vmatprep.subr.mxu0 0.0
      %1703 = vmatpush1.msra.mxu0 0.0
      %1704 = vmatprep.subr.mxu0 0.0
      %1705 = vmatpush1.msra.mxu0 0.0
      %1706 = vmatprep.subr.mxu0 0.0
      %1707 = vmatpush1.msra.mxu0 0.0
      %1708 = vmatprep.subr.mxu0 0.0
      %1709 = vmatpush1.msra.mxu0 0.0
      %1710 = vmatprep.subr.mxu0 0.0
      %1711 = vmatpush1.msra.mxu0 0.0
      %1712 = vmatprep.subr.mxu0 %v1224
      %1713 = vmatpush1.msra.mxu0 %v1221
      %1714 = vmatprep.subr.mxu0 0.0
      %1715 = vmatpush2.msra.mxu0 0.0
      %1716 = vmatprep.subr.mxu0 0.0
      %1717 = vmatpush2.msra.mxu0 0.0
      %1718 = vmatprep.subr.mxu0 0.0
      %1719 = vmatpush2.msra.mxu0 0.0
      %1720 = vmatprep.subr.mxu0 0.0
      %1721 = vmatpush2.msra.mxu0 0.0
      %1722 = vmatprep.subr.mxu0 0.0
      %1723 = vmatpush2.msra.mxu0 0.0
      %1724 = vmatprep.subr.mxu0 0.0
      %1725 = vmatpush2.msra.mxu0 0.0
      %1726 = vmatprep.subr.mxu0 0.0
      %1727 = vmatpush2.msra.mxu0 0.0
      %1728 = vmatprep.subr.mxu0 0.0
      %1729 = vmatpush2.msra.mxu0 0.0
      %1730 = vmatprep.subr.mxu0 0.0
      %1731 = vmatpush2.msra.mxu0 0.0
      %1732 = vmatprep.subr.mxu0 0.0
      %1733 = vmatpush2.msra.mxu0 0.0
      %1734 = vmatprep.subr.mxu0 0.0
      %1735 = vmatpush2.msra.mxu0 0.0
      %1736 = vmatprep.subr.mxu0 0.0
      %1737 = vmatpush2.msra.mxu0 0.0
      %1738 = vmatprep.subr.mxu0 0.0
      %1739 = vmatpush2.msra.mxu0 0.0
      %1740 = vmatprep.subr.mxu0 0.0
      %1741 = vmatpush2.msra.mxu0 0.0
      %1742 = vmatprep.subr.mxu0 0.0
      %1743 = vmatpush2.msra.mxu0 0.0
      %1744 = vmatprep.subr.mxu0 0.0
      %1745 = vmatpush2.msra.mxu0 0.0
      %1746 = vmatprep.mubr.f32.mxu0 0.0
      %1747 = vmatmul.mubr.f32.gmra.mxu0 %v1181
      %v1748 = vpop.f32.mrf.mxu0
      %v1749 = vadd.f32 0.0, %v1748
      %v1750 = vpop.f32.mrf.mxu0
      %v1751 = vadd.f32 0.0, %v1750
      %1752 = vdwg.mxu0
      %1753 = vmatprep.subr.mxu0 0.0
      %1754 = vmatpush1.msra.mxu0 0.0
      %1755 = vmatprep.subr.mxu0 0.0
      %1756 = vmatpush1.msra.mxu0 0.0
      %1757 = vmatprep.subr.mxu0 0.0
      %1758 = vmatpush1.msra.mxu0 0.0
      %1759 = vmatprep.subr.mxu0 0.0
      %1760 = vmatpush1.msra.mxu0 0.0
      %1761 = vmatprep.subr.mxu0 0.0
      %1762 = vmatpush1.msra.mxu0 0.0
      %1763 = vmatprep.subr.mxu0 0.0
      %1764 = vmatpush1.msra.mxu0 0.0
      %1765 = vmatprep.subr.mxu0 0.0
      %1766 = vmatpush1.msra.mxu0 0.0
      %1767 = vmatprep.subr.mxu0 0.0
      %1768 = vmatpush1.msra.mxu0 0.0
      %1769 = vmatprep.subr.mxu0 0.0
      %1770 = vmatpush1.msra.mxu0 0.0
      %1771 = vmatprep.subr.mxu0 0.0
      %1772 = vmatpush1.msra.mxu0 0.0
      %1773 = vmatprep.subr.mxu0 0.0
      %1774 = vmatpush1.msra.mxu0 0.0
      %1775 = vmatprep.subr.mxu0 0.0
      %1776 = vmatpush1.msra.mxu0 0.0
      %1777 = vmatprep.subr.mxu0 0.0
      %1778 = vmatpush1.msra.mxu0 0.0
      %1779 = vmatprep.subr.mxu0 0.0
      %1780 = vmatpush1.msra.mxu0 0.0
      %1781 = vmatprep.subr.mxu0 0.0
      %1782 = vmatpush1.msra.mxu0 0.0
      %1783 = vmatprep.subr.mxu0 %v1230
      %1784 = vmatpush1.msra.mxu0 %v1227
      %1785 = vmatprep.subr.mxu0 0.0
      %1786 = vmatpush2.msra.mxu0 0.0
      %1787 = vmatprep.subr.mxu0 0.0
      %1788 = vmatpush2.msra.mxu0 0.0
      %1789 = vmatprep.subr.mxu0 0.0
      %1790 = vmatpush2.msra.mxu0 0.0
      %1791 = vmatprep.subr.mxu0 0.0
      %1792 = vmatpush2.msra.mxu0 0.0
      %1793 = vmatprep.subr.mxu0 0.0
      %1794 = vmatpush2.msra.mxu0 0.0
      %1795 = vmatprep.subr.mxu0 0.0
      %1796 = vmatpush2.msra.mxu0 0.0
      %1797 = vmatprep.subr.mxu0 0.0
      %1798 = vmatpush2.msra.mxu0 0.0
      %1799 = vmatprep.subr.mxu0 0.0
      %1800 = vmatpush2.msra.mxu0 0.0
      %1801 = vmatprep.subr.mxu0 0.0
      %1802 = vmatpush2.msra.mxu0 0.0
      %1803 = vmatprep.subr.mxu0 0.0
      %1804 = vmatpush2.msra.mxu0 0.0
      %1805 = vmatprep.subr.mxu0 0.0
      %1806 = vmatpush2.msra.mxu0 0.0
      %1807 = vmatprep.subr.mxu0 0.0
      %1808 = vmatpush2.msra.mxu0 0.0
      %1809 = vmatprep.subr.mxu0 0.0
      %1810 = vmatpush2.msra.mxu0 0.0
      %1811 = vmatprep.subr.mxu0 0.0
      %1812 = vmatpush2.msra.mxu0 0.0
      %1813 = vmatprep.subr.mxu0 0.0
      %1814 = vmatpush2.msra.mxu0 0.0
      %1815 = vmatprep.subr.mxu0 0.0
      %1816 = vmatpush2.msra.mxu0 0.0
      %1817 = vmatprep.mubr.f32.mxu0 0.0
      %1818 = vmatmul.mubr.f32.gmra.mxu0 %v1181
      %v1819 = vpop.f32.mrf.mxu0
      %v1820 = vadd.f32 0.0, %v1819
      %v1821 = vpop.f32.mrf.mxu0
      %v1822 = vadd.f32 0.0, %v1821
      %1823 = vdwg.mxu0
      %1824 = vmatprep.subr.mxu0 0.0
      %1825 = vmatpush1.msra.mxu0 0.0
      %1826 = vmatprep.subr.mxu0 0.0
      %1827 = vmatpush1.msra.mxu0 0.0
      %1828 = vmatprep.subr.mxu0 0.0
      %1829 = vmatpush1.msra.mxu0 0.0
      %1830 = vmatprep.subr.mxu0 0.0
      %1831 = vmatpush1.msra.mxu0 0.0
      %1832 = vmatprep.subr.mxu0 0.0
      %1833 = vmatpush1.msra.mxu0 0.0
      %1834 = vmatprep.subr.mxu0 0.0
      %1835 = vmatpush1.msra.mxu0 0.0
      %1836 = vmatprep.subr.mxu0 0.0
      %1837 = vmatpush1.msra.mxu0 0.0
      %1838 = vmatprep.subr.mxu0 0.0
      %1839 = vmatpush1.msra.mxu0 0.0
      %1840 = vmatprep.subr.mxu0 0.0
      %1841 = vmatpush1.msra.mxu0 0.0
      %1842 = vmatprep.subr.mxu0 0.0
      %1843 = vmatpush1.msra.mxu0 0.0
      %1844 = vmatprep.subr.mxu0 0.0
      %1845 = vmatpush1.msra.mxu0 0.0
      %1846 = vmatprep.subr.mxu0 0.0
      %1847 = vmatpush1.msra.mxu0 0.0
      %1848 = vmatprep.subr.mxu0 0.0
      %1849 = vmatpush1.msra.mxu0 0.0
      %1850 = vmatprep.subr.mxu0 0.0
      %1851 = vmatpush1.msra.mxu0 0.0
      %1852 = vmatprep.subr.mxu0 0.0
      %1853 = vmatpush1.msra.mxu0 0.0
      %1854 = vmatprep.subr.mxu0 %v1236
      %1855 = vmatpush1.msra.mxu0 %v1233
      %1856 = vmatprep.subr.mxu0 0.0
      %1857 = vmatpush2.msra.mxu0 0.0
      %1858 = vmatprep.subr.mxu0 0.0
      %1859 = vmatpush2.msra.mxu0 0.0
      %1860 = vmatprep.subr.mxu0 0.0
      %1861 = vmatpush2.msra.mxu0 0.0
      %1862 = vmatprep.subr.mxu0 0.0
      %1863 = vmatpush2.msra.mxu0 0.0
      %1864 = vmatprep.subr.mxu0 0.0
      %1865 = vmatpush2.msra.mxu0 0.0
      %1866 = vmatprep.subr.mxu0 0.0
      %1867 = vmatpush2.msra.mxu0 0.0
      %1868 = vmatprep.subr.mxu0 0.0
      %1869 = vmatpush2.msra.mxu0 0.0
      %1870 = vmatprep.subr.mxu0 0.0
      %1871 = vmatpush2.msra.mxu0 0.0
      %1872 = vmatprep.subr.mxu0 0.0
      %1873 = vmatpush2.msra.mxu0 0.0
      %1874 = vmatprep.subr.mxu0 0.0
      %1875 = vmatpush2.msra.mxu0 0.0
      %1876 = vmatprep.subr.mxu0 0.0
      %1877 = vmatpush2.msra.mxu0 0.0
      %1878 = vmatprep.subr.mxu0 0.0
      %1879 = vmatpush2.msra.mxu0 0.0
      %1880 = vmatprep.subr.mxu0 0.0
      %1881 = vmatpush2.msra.mxu0 0.0
      %1882 = vmatprep.subr.mxu0 0.0
      %1883 = vmatpush2.msra.mxu0 0.0
      %1884 = vmatprep.subr.mxu0 0.0
      %1885 = vmatpush2.msra.mxu0 0.0
      %1886 = vmatprep.subr.mxu0 0.0
      %1887 = vmatpush2.msra.mxu0 0.0
      %1888 = vmatprep.mubr.f32.mxu0 0.0
      %1889 = vmatmul.mubr.f32.gmra.mxu0 %v1181
      %v1890 = vpop.f32.mrf.mxu0
      %v1891 = vadd.f32 0.0, %v1890
      %v1892 = vpop.f32.mrf.mxu0
      %v1893 = vadd.f32 0.0, %v1892
      %1894 = vdwg.mxu0
      %1895 = vmatprep.subr.mxu0 0.0
      %1896 = vmatpush1.msra.mxu0 0.0
      %1897 = vmatprep.subr.mxu0 0.0
      %1898 = vmatpush1.msra.mxu0 0.0
      %1899 = vmatprep.subr.mxu0 0.0
      %1900 = vmatpush1.msra.mxu0 0.0
      %1901 = vmatprep.subr.mxu0 0.0
      %1902 = vmatpush1.msra.mxu0 0.0
      %1903 = vmatprep.subr.mxu0 0.0
      %1904 = vmatpush1.msra.mxu0 0.0
      %1905 = vmatprep.subr.mxu0 0.0
      %1906 = vmatpush1.msra.mxu0 0.0
      %1907 = vmatprep.subr.mxu0 0.0
      %1908 = vmatpush1.msra.mxu0 0.0
      %1909 = vmatprep.subr.mxu0 0.0
      %1910 = vmatpush1.msra.mxu0 0.0
      %1911 = vmatprep.subr.mxu0 0.0
      %1912 = vmatpush1.msra.mxu0 0.0
      %1913 = vmatprep.subr.mxu0 0.0
      %1914 = vmatpush1.msra.mxu0 0.0
      %1915 = vmatprep.subr.mxu0 0.0
      %1916 = vmatpush1.msra.mxu0 0.0
      %1917 = vmatprep.subr.mxu0 0.0
      %1918 = vmatpush1.msra.mxu0 0.0
      %1919 = vmatprep.subr.mxu0 0.0
      %1920 = vmatpush1.msra.mxu0 0.0
      %1921 = vmatprep.subr.mxu0 0.0
      %1922 = vmatpush1.msra.mxu0 0.0
      %1923 = vmatprep.subr.mxu0 0.0
      %1924 = vmatpush1.msra.mxu0 0.0
      %1925 = vmatprep.subr.mxu0 %v1242
      %1926 = vmatpush1.msra.mxu0 %v1239
      %1927 = vmatprep.subr.mxu0 0.0
      %1928 = vmatpush2.msra.mxu0 0.0
      %1929 = vmatprep.subr.mxu0 0.0
      %1930 = vmatpush2.msra.mxu0 0.0
      %1931 = vmatprep.subr.mxu0 0.0
      %1932 = vmatpush2.msra.mxu0 0.0
      %1933 = vmatprep.subr.mxu0 0.0
      %1934 = vmatpush2.msra.mxu0 0.0
      %1935 = vmatprep.subr.mxu0 0.0
      %1936 = vmatpush2.msra.mxu0 0.0
      %1937 = vmatprep.subr.mxu0 0.0
      %1938 = vmatpush2.msra.mxu0 0.0
      %1939 = vmatprep.subr.mxu0 0.0
      %1940 = vmatpush2.msra.mxu0 0.0
      %1941 = vmatprep.subr.mxu0 0.0
      %1942 = vmatpush2.msra.mxu0 0.0
      %1943 = vmatprep.subr.mxu0 0.0
      %1944 = vmatpush2.msra.mxu0 0.0
      %1945 = vmatprep.subr.mxu0 0.0
      %1946 = vmatpush2.msra.mxu0 0.0
      %1947 = vmatprep.subr.mxu0 0.0
      %1948 = vmatpush2.msra.mxu0 0.0
      %1949 = vmatprep.subr.mxu0 0.0
      %1950 = vmatpush2.msra.mxu0 0.0
      %1951 = vmatprep.subr.mxu0 0.0
      %1952 = vmatpush2.msra.mxu0 0.0
      %1953 = vmatprep.subr.mxu0 0.0
      %1954 = vmatpush2.msra.mxu0 0.0
      %1955 = vmatprep.subr.mxu0 0.0
      %1956 = vmatpush2.msra.mxu0 0.0
      %1957 = vmatprep.subr.mxu0 0.0
      %1958 = vmatpush2.msra.mxu0 0.0
      %1959 = vmatprep.mubr.f32.mxu0 0.0
      %1960 = vmatmul.mubr.f32.gmra.mxu0 %v1181
      %v1961 = vpop.f32.mrf.mxu0
      %v1962 = vadd.f32 0.0, %v1961
      %v1963 = vpop.f32.mrf.mxu0
      %v1964 = vadd.f32 0.0, %v1963
      %1965 = vdwg.mxu0
      %1966 = vmatprep.subr.mxu0 0.0
      %1967 = vmatpush1.msra.mxu0 0.0
      %1968 = vmatprep.subr.mxu0 0.0
      %1969 = vmatpush1.msra.mxu0 0.0
      %1970 = vmatprep.subr.mxu0 0.0
      %1971 = vmatpush1.msra.mxu0 0.0
      %1972 = vmatprep.subr.mxu0 0.0
      %1973 = vmatpush1.msra.mxu0 0.0
      %1974 = vmatprep.subr.mxu0 0.0
      %1975 = vmatpush1.msra.mxu0 0.0
      %1976 = vmatprep.subr.mxu0 0.0
      %1977 = vmatpush1.msra.mxu0 0.0
      %1978 = vmatprep.subr.mxu0 0.0
      %1979 = vmatpush1.msra.mxu0 0.0
      %1980 = vmatprep.subr.mxu0 0.0
      %1981 = vmatpush1.msra.mxu0 0.0
      %1982 = vmatprep.subr.mxu0 0.0
      %1983 = vmatpush1.msra.mxu0 0.0
      %1984 = vmatprep.subr.mxu0 0.0
      %1985 = vmatpush1.msra.mxu0 0.0
      %1986 = vmatprep.subr.mxu0 0.0
      %1987 = vmatpush1.msra.mxu0 0.0
      %1988 = vmatprep.subr.mxu0 0.0
      %1989 = vmatpush1.msra.mxu0 0.0
      %1990 = vmatprep.subr.mxu0 0.0
      %1991 = vmatpush1.msra.mxu0 0.0
      %1992 = vmatprep.subr.mxu0 0.0
      %1993 = vmatpush1.msra.mxu0 0.0
      %1994 = vmatprep.subr.mxu0 0.0
      %1995 = vmatpush1.msra.mxu0 0.0
      %1996 = vmatprep.subr.mxu0 %v1248
      %1997 = vmatpush1.msra.mxu0 %v1245
      %1998 = vmatprep.subr.mxu0 0.0
      %1999 = vmatpush2.msra.mxu0 0.0
      %2000 = vmatprep.subr.mxu0 0.0
      %2001 = vmatpush2.msra.mxu0 0.0
      %2002 = vmatprep.subr.mxu0 0.0
      %2003 = vmatpush2.msra.mxu0 0.0
      %2004 = vmatprep.subr.mxu0 0.0
      %2005 = vmatpush2.msra.mxu0 0.0
      %2006 = vmatprep.subr.mxu0 0.0
      %2007 = vmatpush2.msra.mxu0 0.0
      %2008 = vmatprep.subr.mxu0 0.0
      %2009 = vmatpush2.msra.mxu0 0.0
      %2010 = vmatprep.subr.mxu0 0.0
      %2011 = vmatpush2.msra.mxu0 0.0
      %2012 = vmatprep.subr.mxu0 0.0
      %2013 = vmatpush2.msra.mxu0 0.0
      %2014 = vmatprep.subr.mxu0 0.0
      %2015 = vmatpush2.msra.mxu0 0.0
      %2016 = vmatprep.subr.mxu0 0.0
      %2017 = vmatpush2.msra.mxu0 0.0
      %2018 = vmatprep.subr.mxu0 0.0
      %2019 = vmatpush2.msra.mxu0 0.0
      %2020 = vmatprep.subr.mxu0 0.0
      %2021 = vmatpush2.msra.mxu0 0.0
      %2022 = vmatprep.subr.mxu0 0.0
      %2023 = vmatpush2.msra.mxu0 0.0
      %2024 = vmatprep.subr.mxu0 0.0
      %2025 = vmatpush2.msra.mxu0 0.0
      %2026 = vmatprep.subr.mxu0 0.0
      %2027 = vmatpush2.msra.mxu0 0.0
      %2028 = vmatprep.subr.mxu0 0.0
      %2029 = vmatpush2.msra.mxu0 0.0
      %2030 = vmatprep.mubr.f32.mxu0 0.0
      %2031 = vmatmul.mubr.f32.gmra.mxu0 %v1181
      %v2032 = vpop.f32.mrf.mxu0
      %v2033 = vadd.f32 0.0, %v2032
      %v2034 = vpop.f32.mrf.mxu0
      %v2035 = vadd.f32 0.0, %v2034
      %2036 = vdwg.mxu0
      %2037 = vmatprep.subr.mxu0 0.0
      %2038 = vmatpush1.msra.mxu0 0.0
      %2039 = vmatprep.subr.mxu0 0.0
      %2040 = vmatpush1.msra.mxu0 0.0
      %2041 = vmatprep.subr.mxu0 0.0
      %2042 = vmatpush1.msra.mxu0 0.0
      %2043 = vmatprep.subr.mxu0 0.0
      %2044 = vmatpush1.msra.mxu0 0.0
      %2045 = vmatprep.subr.mxu0 0.0
      %2046 = vmatpush1.msra.mxu0 0.0
      %2047 = vmatprep.subr.mxu0 0.0
      %2048 = vmatpush1.msra.mxu0 0.0
      %2049 = vmatprep.subr.mxu0 0.0
      %2050 = vmatpush1.msra.mxu0 0.0
      %2051 = vmatprep.subr.mxu0 0.0
      %2052 = vmatpush1.msra.mxu0 0.0
      %2053 = vmatprep.subr.mxu0 0.0
      %2054 = vmatpush1.msra.mxu0 0.0
      %2055 = vmatprep.subr.mxu0 0.0
      %2056 = vmatpush1.msra.mxu0 0.0
      %2057 = vmatprep.subr.mxu0 0.0
      %2058 = vmatpush1.msra.mxu0 0.0
      %2059 = vmatprep.subr.mxu0 0.0
      %2060 = vmatpush1.msra.mxu0 0.0
      %2061 = vmatprep.subr.mxu0 0.0
      %2062 = vmatpush1.msra.mxu0 0.0
      %2063 = vmatprep.subr.mxu0 0.0
      %2064 = vmatpush1.msra.mxu0 0.0
      %2065 = vmatprep.subr.mxu0 0.0
      %2066 = vmatpush1.msra.mxu0 0.0
      %2067 = vmatprep.subr.mxu0 %v1254
      %2068 = vmatpush1.msra.mxu0 %v1251
      %2069 = vmatprep.subr.mxu0 0.0
      %2070 = vmatpush2.msra.mxu0 0.0
      %2071 = vmatprep.subr.mxu0 0.0
      %2072 = vmatpush2.msra.mxu0 0.0
      %2073 = vmatprep.subr.mxu0 0.0
      %2074 = vmatpush2.msra.mxu0 0.0
      %2075 = vmatprep.subr.mxu0 0.0
      %2076 = vmatpush2.msra.mxu0 0.0
      %2077 = vmatprep.subr.mxu0 0.0
      %2078 = vmatpush2.msra.mxu0 0.0
      %2079 = vmatprep.subr.mxu0 0.0
      %2080 = vmatpush2.msra.mxu0 0.0
      %2081 = vmatprep.subr.mxu0 0.0
      %2082 = vmatpush2.msra.mxu0 0.0
      %2083 = vmatprep.subr.mxu0 0.0
      %2084 = vmatpush2.msra.mxu0 0.0
      %2085 = vmatprep.subr.mxu0 0.0
      %2086 = vmatpush2.msra.mxu0 0.0
      %2087 = vmatprep.subr.mxu0 0.0
      %2088 = vmatpush2.msra.mxu0 0.0
      %2089 = vmatprep.subr.mxu0 0.0
      %2090 = vmatpush2.msra.mxu0 0.0
      %2091 = vmatprep.subr.mxu0 0.0
      %2092 = vmatpush2.msra.mxu0 0.0
      %2093 = vmatprep.subr.mxu0 0.0
      %2094 = vmatpush2.msra.mxu0 0.0
      %2095 = vmatprep.subr.mxu0 0.0
      %2096 = vmatpush2.msra.mxu0 0.0
      %2097 = vmatprep.subr.mxu0 0.0
      %2098 = vmatpush2.msra.mxu0 0.0
      %2099 = vmatprep.subr.mxu0 0.0
      %2100 = vmatpush2.msra.mxu0 0.0
      %2101 = vmatprep.mubr.f32.mxu0 0.0
      %2102 = vmatmul.mubr.f32.gmra.mxu0 %v1181
      %v2103 = vpop.f32.mrf.mxu0
      %v2104 = vadd.f32 0.0, %v2103
      %v2105 = vpop.f32.mrf.mxu0
      %v2106 = vadd.f32 0.0, %v2105
      %2107 = vdwg.mxu0
      %v2109 = vsel %vm1179, %v1176, 0
      %v2112 = vsel %vm1183, %v808, 0
      %v2115 = vsel %vm1183, %v832, 0
      %v2118 = vsel %vm1183, %v815, 0
      %v2121 = vsel %vm1183, %v833, 0
      %v2124 = vsel %vm1183, %v824, 0
      %v2127 = vsel %vm1183, %v834, 0
      %v2130 = vsel %vm1183, %v831, 0
      %v2133 = vsel %vm1183, %v835, 0
      %v2136 = vsel %vm1183, %v876, 0
      %v2139 = vsel %vm1183, %v900, 0
      %v2142 = vsel %vm1183, %v883, 0
      %v2145 = vsel %vm1183, %v901, 0
      %v2148 = vsel %vm1183, %v892, 0
      %v2151 = vsel %vm1183, %v902, 0
      %v2154 = vsel %vm1183, %v899, 0
      %v2157 = vsel %vm1183, %v903, 0
      %v2160 = vsel %vm1183, %v944, 0
      %v2163 = vsel %vm1183, %v968, 0
      %v2166 = vsel %vm1183, %v951, 0
      %v2169 = vsel %vm1183, %v969, 0
      %v2172 = vsel %vm1183, %v960, 0
      %v2175 = vsel %vm1183, %v970, 0
      %v2178 = vsel %vm1183, %v967, 0
      %v2181 = vsel %vm1183, %v971, 0
      %2183 = vmatprep.subr.mxu0 0.0
      %2184 = vmatpush1.msra.mxu0 0.0
      %2185 = vmatprep.subr.mxu0 0.0
      %2186 = vmatpush1.msra.mxu0 0.0
      %2187 = vmatprep.subr.mxu0 0.0
      %2188 = vmatpush1.msra.mxu0 0.0
      %2189 = vmatprep.subr.mxu0 0.0
      %2190 = vmatpush1.msra.mxu0 0.0
      %2191 = vmatprep.subr.mxu0 0.0
      %2192 = vmatpush1.msra.mxu0 0.0
      %2193 = vmatprep.subr.mxu0 0.0
      %2194 = vmatpush1.msra.mxu0 0.0
      %2195 = vmatprep.subr.mxu0 0.0
      %2196 = vmatpush1.msra.mxu0 0.0
      %2197 = vmatprep.subr.mxu0 0.0
      %2198 = vmatpush1.msra.mxu0 0.0
      %2199 = vmatprep.subr.mxu0 0.0
      %2200 = vmatpush1.msra.mxu0 0.0
      %2201 = vmatprep.subr.mxu0 0.0
      %2202 = vmatpush1.msra.mxu0 0.0
      %2203 = vmatprep.subr.mxu0 0.0
      %2204 = vmatpush1.msra.mxu0 0.0
      %2205 = vmatprep.subr.mxu0 0.0
      %2206 = vmatpush1.msra.mxu0 0.0
      %2207 = vmatprep.subr.mxu0 0.0
      %2208 = vmatpush1.msra.mxu0 0.0
      %2209 = vmatprep.subr.mxu0 0.0
      %2210 = vmatpush1.msra.mxu0 0.0
      %2211 = vmatprep.subr.mxu0 0.0
      %2212 = vmatpush1.msra.mxu0 0.0
      %2213 = vmatprep.subr.mxu0 %v2115
      %2214 = vmatpush1.msra.mxu0 %v2112
      %2215 = vmatprep.subr.mxu0 0.0
      %2216 = vmatpush2.msra.mxu0 0.0
      %2217 = vmatprep.subr.mxu0 0.0
      %2218 = vmatpush2.msra.mxu0 0.0
      %2219 = vmatprep.subr.mxu0 0.0
      %2220 = vmatpush2.msra.mxu0 0.0
      %2221 = vmatprep.subr.mxu0 0.0
      %2222 = vmatpush2.msra.mxu0 0.0
      %2223 = vmatprep.subr.mxu0 0.0
      %2224 = vmatpush2.msra.mxu0 0.0
      %2225 = vmatprep.subr.mxu0 0.0
      %2226 = vmatpush2.msra.mxu0 0.0
      %2227 = vmatprep.subr.mxu0 0.0
      %2228 = vmatpush2.msra.mxu0 0.0
      %2229 = vmatprep.subr.mxu0 0.0
      %2230 = vmatpush2.msra.mxu0 0.0
      %2231 = vmatprep.subr.mxu0 0.0
      %2232 = vmatpush2.msra.mxu0 0.0
      %2233 = vmatprep.subr.mxu0 0.0
      %2234 = vmatpush2.msra.mxu0 0.0
      %2235 = vmatprep.subr.mxu0 0.0
      %2236 = vmatpush2.msra.mxu0 0.0
      %2237 = vmatprep.subr.mxu0 0.0
      %2238 = vmatpush2.msra.mxu0 0.0
      %2239 = vmatprep.subr.mxu0 0.0
      %2240 = vmatpush2.msra.mxu0 0.0
      %2241 = vmatprep.subr.mxu0 0.0
      %2242 = vmatpush2.msra.mxu0 0.0
      %2243 = vmatprep.subr.mxu0 0.0
      %2244 = vmatpush2.msra.mxu0 0.0
      %2245 = vmatprep.subr.mxu0 0.0
      %2246 = vmatpush2.msra.mxu0 0.0
      %2247 = vmatprep.mubr.f32.mxu0 0.0
      %2248 = vmatmul.mubr.f32.gmra.mxu0 %v2109
      %v2249 = vpop.f32.mrf.mxu0
      %v2250 = vadd.f32 %v1323, %v2249
      %v2251 = vpop.f32.mrf.mxu0
      %v2252 = vadd.f32 %v1325, %v2251
      %2253 = vdwg.mxu0
      %2254 = vmatprep.subr.mxu0 0.0
      %2255 = vmatpush1.msra.mxu0 0.0
      %2256 = vmatprep.subr.mxu0 0.0
      %2257 = vmatpush1.msra.mxu0 0.0
      %2258 = vmatprep.subr.mxu0 0.0
      %2259 = vmatpush1.msra.mxu0 0.0
      %2260 = vmatprep.subr.mxu0 0.0
      %2261 = vmatpush1.msra.mxu0 0.0
      %2262 = vmatprep.subr.mxu0 0.0
      %2263 = vmatpush1.msra.mxu0 0.0
      %2264 = vmatprep.subr.mxu0 0.0
      %2265 = vmatpush1.msra.mxu0 0.0
      %2266 = vmatprep.subr.mxu0 0.0
      %2267 = vmatpush1.msra.mxu0 0.0
      %2268 = vmatprep.subr.mxu0 0.0
      %2269 = vmatpush1.msra.mxu0 0.0
      %2270 = vmatprep.subr.mxu0 0.0
      %2271 = vmatpush1.msra.mxu0 0.0
      %2272 = vmatprep.subr.mxu0 0.0
      %2273 = vmatpush1.msra.mxu0 0.0
      %2274 = vmatprep.subr.mxu0 0.0
      %2275 = vmatpush1.msra.mxu0 0.0
      %2276 = vmatprep.subr.mxu0 0.0
      %2277 = vmatpush1.msra.mxu0 0.0
      %2278 = vmatprep.subr.mxu0 0.0
      %2279 = vmatpush1.msra.mxu0 0.0
      %2280 = vmatprep.subr.mxu0 0.0
      %2281 = vmatpush1.msra.mxu0 0.0
      %2282 = vmatprep.subr.mxu0 0.0
      %2283 = vmatpush1.msra.mxu0 0.0
      %2284 = vmatprep.subr.mxu0 %v2121
      %2285 = vmatpush1.msra.mxu0 %v2118
      %2286 = vmatprep.subr.mxu0 0.0
      %2287 = vmatpush2.msra.mxu0 0.0
      %2288 = vmatprep.subr.mxu0 0.0
      %2289 = vmatpush2.msra.mxu0 0.0
      %2290 = vmatprep.subr.mxu0 0.0
      %2291 = vmatpush2.msra.mxu0 0.0
      %2292 = vmatprep.subr.mxu0 0.0
      %2293 = vmatpush2.msra.mxu0 0.0
      %2294 = vmatprep.subr.mxu0 0.0
      %2295 = vmatpush2.msra.mxu0 0.0
      %2296 = vmatprep.subr.mxu0 0.0
      %2297 = vmatpush2.msra.mxu0 0.0
      %2298 = vmatprep.subr.mxu0 0.0
      %2299 = vmatpush2.msra.mxu0 0.0
      %2300 = vmatprep.subr.mxu0 0.0
      %2301 = vmatpush2.msra.mxu0 0.0
      %2302 = vmatprep.subr.mxu0 0.0
      %2303 = vmatpush2.msra.mxu0 0.0
      %2304 = vmatprep.subr.mxu0 0.0
      %2305 = vmatpush2.msra.mxu0 0.0
      %2306 = vmatprep.subr.mxu0 0.0
      %2307 = vmatpush2.msra.mxu0 0.0
      %2308 = vmatprep.subr.mxu0 0.0
      %2309 = vmatpush2.msra.mxu0 0.0
      %2310 = vmatprep.subr.mxu0 0.0
      %2311 = vmatpush2.msra.mxu0 0.0
      %2312 = vmatprep.subr.mxu0 0.0
      %2313 = vmatpush2.msra.mxu0 0.0
      %2314 = vmatprep.subr.mxu0 0.0
      %2315 = vmatpush2.msra.mxu0 0.0
      %2316 = vmatprep.subr.mxu0 0.0
      %2317 = vmatpush2.msra.mxu0 0.0
      %2318 = vmatprep.mubr.f32.mxu0 0.0
      %2319 = vmatmul.mubr.f32.gmra.mxu0 %v2109
      %v2320 = vpop.f32.mrf.mxu0
      %v2321 = vadd.f32 %v1394, %v2320
      %v2322 = vpop.f32.mrf.mxu0
      %v2323 = vadd.f32 %v1396, %v2322
      %2324 = vdwg.mxu0
      %2325 = vmatprep.subr.mxu0 0.0
      %2326 = vmatpush1.msra.mxu0 0.0
      %2327 = vmatprep.subr.mxu0 0.0
      %2328 = vmatpush1.msra.mxu0 0.0
      %2329 = vmatprep.subr.mxu0 0.0
      %2330 = vmatpush1.msra.mxu0 0.0
      %2331 = vmatprep.subr.mxu0 0.0
      %2332 = vmatpush1.msra.mxu0 0.0
      %2333 = vmatprep.subr.mxu0 0.0
      %2334 = vmatpush1.msra.mxu0 0.0
      %2335 = vmatprep.subr.mxu0 0.0
      %2336 = vmatpush1.msra.mxu0 0.0
      %2337 = vmatprep.subr.mxu0 0.0
      %2338 = vmatpush1.msra.mxu0 0.0
      %2339 = vmatprep.subr.mxu0 0.0
      %2340 = vmatpush1.msra.mxu0 0.0
      %2341 = vmatprep.subr.mxu0 0.0
      %2342 = vmatpush1.msra.mxu0 0.0
      %2343 = vmatprep.subr.mxu0 0.0
      %2344 = vmatpush1.msra.mxu0 0.0
      %2345 = vmatprep.subr.mxu0 0.0
      %2346 = vmatpush1.msra.mxu0 0.0
      %2347 = vmatprep.subr.mxu0 0.0
      %2348 = vmatpush1.msra.mxu0 0.0
      %2349 = vmatprep.subr.mxu0 0.0
      %2350 = vmatpush1.msra.mxu0 0.0
      %2351 = vmatprep.subr.mxu0 0.0
      %2352 = vmatpush1.msra.mxu0 0.0
      %2353 = vmatprep.subr.mxu0 0.0
      %2354 = vmatpush1.msra.mxu0 0.0
      %2355 = vmatprep.subr.mxu0 %v2127
      %2356 = vmatpush1.msra.mxu0 %v2124
      %2357 = vmatprep.subr.mxu0 0.0
      %2358 = vmatpush2.msra.mxu0 0.0
      %2359 = vmatprep.subr.mxu0 0.0
      %2360 = vmatpush2.msra.mxu0 0.0
      %2361 = vmatprep.subr.mxu0 0.0
      %2362 = vmatpush2.msra.mxu0 0.0
      %2363 = vmatprep.subr.mxu0 0.0
      %2364 = vmatpush2.msra.mxu0 0.0
      %2365 = vmatprep.subr.mxu0 0.0
      %2366 = vmatpush2.msra.mxu0 0.0
      %2367 = vmatprep.subr.mxu0 0.0
      %2368 = vmatpush2.msra.mxu0 0.0
      %2369 = vmatprep.subr.mxu0 0.0
      %2370 = vmatpush2.msra.mxu0 0.0
      %2371 = vmatprep.subr.mxu0 0.0
      %2372 = vmatpush2.msra.mxu0 0.0
      %2373 = vmatprep.subr.mxu0 0.0
      %2374 = vmatpush2.msra.mxu0 0.0
      %2375 = vmatprep.subr.mxu0 0.0
      %2376 = vmatpush2.msra.mxu0 0.0
      %2377 = vmatprep.subr.mxu0 0.0
      %2378 = vmatpush2.msra.mxu0 0.0
      %2379 = vmatprep.subr.mxu0 0.0
      %2380 = vmatpush2.msra.mxu0 0.0
      %2381 = vmatprep.subr.mxu0 0.0
      %2382 = vmatpush2.msra.mxu0 0.0
      %2383 = vmatprep.subr.mxu0 0.0
      %2384 = vmatpush2.msra.mxu0 0.0
      %2385 = vmatprep.subr.mxu0 0.0
      %2386 = vmatpush2.msra.mxu0 0.0
      %2387 = vmatprep.subr.mxu0 0.0
      %2388 = vmatpush2.msra.mxu0 0.0
      %2389 = vmatprep.mubr.f32.mxu0 0.0
      %2390 = vmatmul.mubr.f32.gmra.mxu0 %v2109
      %v2391 = vpop.f32.mrf.mxu0
      %v2392 = vadd.f32 %v1465, %v2391
      %v2393 = vpop.f32.mrf.mxu0
      %v2394 = vadd.f32 %v1467, %v2393
      %2395 = vdwg.mxu0
      %2396 = vmatprep.subr.mxu0 0.0
      %2397 = vmatpush1.msra.mxu0 0.0
      %2398 = vmatprep.subr.mxu0 0.0
      %2399 = vmatpush1.msra.mxu0 0.0
      %2400 = vmatprep.subr.mxu0 0.0
      %2401 = vmatpush1.msra.mxu0 0.0
      %2402 = vmatprep.subr.mxu0 0.0
      %2403 = vmatpush1.msra.mxu0 0.0
      %2404 = vmatprep.subr.mxu0 0.0
      %2405 = vmatpush1.msra.mxu0 0.0
      %2406 = vmatprep.subr.mxu0 0.0
      %2407 = vmatpush1.msra.mxu0 0.0
      %2408 = vmatprep.subr.mxu0 0.0
      %2409 = vmatpush1.msra.mxu0 0.0
      %2410 = vmatprep.subr.mxu0 0.0
      %2411 = vmatpush1.msra.mxu0 0.0
      %2412 = vmatprep.subr.mxu0 0.0
      %2413 = vmatpush1.msra.mxu0 0.0
      %2414 = vmatprep.subr.mxu0 0.0
      %2415 = vmatpush1.msra.mxu0 0.0
      %2416 = vmatprep.subr.mxu0 0.0
      %2417 = vmatpush1.msra.mxu0 0.0
      %2418 = vmatprep.subr.mxu0 0.0
      %2419 = vmatpush1.msra.mxu0 0.0
      %2420 = vmatprep.subr.mxu0 0.0
      %2421 = vmatpush1.msra.mxu0 0.0
      %2422 = vmatprep.subr.mxu0 0.0
      %2423 = vmatpush1.msra.mxu0 0.0
      %2424 = vmatprep.subr.mxu0 0.0
      %2425 = vmatpush1.msra.mxu0 0.0
      %2426 = vmatprep.subr.mxu0 %v2133
      %2427 = vmatpush1.msra.mxu0 %v2130
      %2428 = vmatprep.subr.mxu0 0.0
      %2429 = vmatpush2.msra.mxu0 0.0
      %2430 = vmatprep.subr.mxu0 0.0
      %2431 = vmatpush2.msra.mxu0 0.0
      %2432 = vmatprep.subr.mxu0 0.0
      %2433 = vmatpush2.msra.mxu0 0.0
      %2434 = vmatprep.subr.mxu0 0.0
      %2435 = vmatpush2.msra.mxu0 0.0
      %2436 = vmatprep.subr.mxu0 0.0
      %2437 = vmatpush2.msra.mxu0 0.0
      %2438 = vmatprep.subr.mxu0 0.0
      %2439 = vmatpush2.msra.mxu0 0.0
      %2440 = vmatprep.subr.mxu0 0.0
      %2441 = vmatpush2.msra.mxu0 0.0
      %2442 = vmatprep.subr.mxu0 0.0
      %2443 = vmatpush2.msra.mxu0 0.0
      %2444 = vmatprep.subr.mxu0 0.0
      %2445 = vmatpush2.msra.mxu0 0.0
      %2446 = vmatprep.subr.mxu0 0.0
      %2447 = vmatpush2.msra.mxu0 0.0
      %2448 = vmatprep.subr.mxu0 0.0
      %2449 = vmatpush2.msra.mxu0 0.0
      %2450 = vmatprep.subr.mxu0 0.0
      %2451 = vmatpush2.msra.mxu0 0.0
      %2452 = vmatprep.subr.mxu0 0.0
      %2453 = vmatpush2.msra.mxu0 0.0
      %2454 = vmatprep.subr.mxu0 0.0
      %2455 = vmatpush2.msra.mxu0 0.0
      %2456 = vmatprep.subr.mxu0 0.0
      %2457 = vmatpush2.msra.mxu0 0.0
      %2458 = vmatprep.subr.mxu0 0.0
      %2459 = vmatpush2.msra.mxu0 0.0
      %2460 = vmatprep.mubr.f32.mxu0 0.0
      %2461 = vmatmul.mubr.f32.gmra.mxu0 %v2109
      %v2462 = vpop.f32.mrf.mxu0
      %v2463 = vadd.f32 %v1536, %v2462
      %v2464 = vpop.f32.mrf.mxu0
      %v2465 = vadd.f32 %v1538, %v2464
      %2466 = vdwg.mxu0
      %2467 = vmatprep.subr.mxu0 0.0
      %2468 = vmatpush1.msra.mxu0 0.0
      %2469 = vmatprep.subr.mxu0 0.0
      %2470 = vmatpush1.msra.mxu0 0.0
      %2471 = vmatprep.subr.mxu0 0.0
      %2472 = vmatpush1.msra.mxu0 0.0
      %2473 = vmatprep.subr.mxu0 0.0
      %2474 = vmatpush1.msra.mxu0 0.0
      %2475 = vmatprep.subr.mxu0 0.0
      %2476 = vmatpush1.msra.mxu0 0.0
      %2477 = vmatprep.subr.mxu0 0.0
      %2478 = vmatpush1.msra.mxu0 0.0
      %2479 = vmatprep.subr.mxu0 0.0
      %2480 = vmatpush1.msra.mxu0 0.0
      %2481 = vmatprep.subr.mxu0 0.0
      %2482 = vmatpush1.msra.mxu0 0.0
      %2483 = vmatprep.subr.mxu0 0.0
      %2484 = vmatpush1.msra.mxu0 0.0
      %2485 = vmatprep.subr.mxu0 0.0
      %2486 = vmatpush1.msra.mxu0 0.0
      %2487 = vmatprep.subr.mxu0 0.0
      %2488 = vmatpush1.msra.mxu0 0.0
      %2489 = vmatprep.subr.mxu0 0.0
      %2490 = vmatpush1.msra.mxu0 0.0
      %2491 = vmatprep.subr.mxu0 0.0
      %2492 = vmatpush1.msra.mxu0 0.0
      %2493 = vmatprep.subr.mxu0 0.0
      %2494 = vmatpush1.msra.mxu0 0.0
      %2495 = vmatprep.subr.mxu0 0.0
      %2496 = vmatpush1.msra.mxu0 0.0
      %2497 = vmatprep.subr.mxu0 %v2139
      %2498 = vmatpush1.msra.mxu0 %v2136
      %2499 = vmatprep.subr.mxu0 0.0
      %2500 = vmatpush2.msra.mxu0 0.0
      %2501 = vmatprep.subr.mxu0 0.0
      %2502 = vmatpush2.msra.mxu0 0.0
      %2503 = vmatprep.subr.mxu0 0.0
      %2504 = vmatpush2.msra.mxu0 0.0
      %2505 = vmatprep.subr.mxu0 0.0
      %2506 = vmatpush2.msra.mxu0 0.0
      %2507 = vmatprep.subr.mxu0 0.0
      %2508 = vmatpush2.msra.mxu0 0.0
      %2509 = vmatprep.subr.mxu0 0.0
      %2510 = vmatpush2.msra.mxu0 0.0
      %2511 = vmatprep.subr.mxu0 0.0
      %2512 = vmatpush2.msra.mxu0 0.0
      %2513 = vmatprep.subr.mxu0 0.0
      %2514 = vmatpush2.msra.mxu0 0.0
      %2515 = vmatprep.subr.mxu0 0.0
      %2516 = vmatpush2.msra.mxu0 0.0
      %2517 = vmatprep.subr.mxu0 0.0
      %2518 = vmatpush2.msra.mxu0 0.0
      %2519 = vmatprep.subr.mxu0 0.0
      %2520 = vmatpush2.msra.mxu0 0.0
      %2521 = vmatprep.subr.mxu0 0.0
      %2522 = vmatpush2.msra.mxu0 0.0
      %2523 = vmatprep.subr.mxu0 0.0
      %2524 = vmatpush2.msra.mxu0 0.0
      %2525 = vmatprep.subr.mxu0 0.0
      %2526 = vmatpush2.msra.mxu0 0.0
      %2527 = vmatprep.subr.mxu0 0.0
      %2528 = vmatpush2.msra.mxu0 0.0
      %2529 = vmatprep.subr.mxu0 0.0
      %2530 = vmatpush2.msra.mxu0 0.0
      %2531 = vmatprep.mubr.f32.mxu0 0.0
      %2532 = vmatmul.mubr.f32.gmra.mxu0 %v2109
      %v2533 = vpop.f32.mrf.mxu0
      %v2534 = vadd.f32 %v1607, %v2533
      %v2535 = vpop.f32.mrf.mxu0
      %v2536 = vadd.f32 %v1609, %v2535
      %2537 = vdwg.mxu0
      %2538 = vmatprep.subr.mxu0 0.0
      %2539 = vmatpush1.msra.mxu0 0.0
      %2540 = vmatprep.subr.mxu0 0.0
      %2541 = vmatpush1.msra.mxu0 0.0
      %2542 = vmatprep.subr.mxu0 0.0
      %2543 = vmatpush1.msra.mxu0 0.0
      %2544 = vmatprep.subr.mxu0 0.0
      %2545 = vmatpush1.msra.mxu0 0.0
      %2546 = vmatprep.subr.mxu0 0.0
      %2547 = vmatpush1.msra.mxu0 0.0
      %2548 = vmatprep.subr.mxu0 0.0
      %2549 = vmatpush1.msra.mxu0 0.0
      %2550 = vmatprep.subr.mxu0 0.0
      %2551 = vmatpush1.msra.mxu0 0.0
      %2552 = vmatprep.subr.mxu0 0.0
      %2553 = vmatpush1.msra.mxu0 0.0
      %2554 = vmatprep.subr.mxu0 0.0
      %2555 = vmatpush1.msra.mxu0 0.0
      %2556 = vmatprep.subr.mxu0 0.0
      %2557 = vmatpush1.msra.mxu0 0.0
      %2558 = vmatprep.subr.mxu0 0.0
      %2559 = vmatpush1.msra.mxu0 0.0
      %2560 = vmatprep.subr.mxu0 0.0
      %2561 = vmatpush1.msra.mxu0 0.0
      %2562 = vmatprep.subr.mxu0 0.0
      %2563 = vmatpush1.msra.mxu0 0.0
      %2564 = vmatprep.subr.mxu0 0.0
      %2565 = vmatpush1.msra.mxu0 0.0
      %2566 = vmatprep.subr.mxu0 0.0
      %2567 = vmatpush1.msra.mxu0 0.0
      %2568 = vmatprep.subr.mxu0 %v2145
      %2569 = vmatpush1.msra.mxu0 %v2142
      %2570 = vmatprep.subr.mxu0 0.0
      %2571 = vmatpush2.msra.mxu0 0.0
      %2572 = vmatprep.subr.mxu0 0.0
      %2573 = vmatpush2.msra.mxu0 0.0
      %2574 = vmatprep.subr.mxu0 0.0
      %2575 = vmatpush2.msra.mxu0 0.0
      %2576 = vmatprep.subr.mxu0 0.0
      %2577 = vmatpush2.msra.mxu0 0.0
      %2578 = vmatprep.subr.mxu0 0.0
      %2579 = vmatpush2.msra.mxu0 0.0
      %2580 = vmatprep.subr.mxu0 0.0
      %2581 = vmatpush2.msra.mxu0 0.0
      %2582 = vmatprep.subr.mxu0 0.0
      %2583 = vmatpush2.msra.mxu0 0.0
      %2584 = vmatprep.subr.mxu0 0.0
      %2585 = vmatpush2.msra.mxu0 0.0
      %2586 = vmatprep.subr.mxu0 0.0
      %2587 = vmatpush2.msra.mxu0 0.0
      %2588 = vmatprep.subr.mxu0 0.0
      %2589 = vmatpush2.msra.mxu0 0.0
      %2590 = vmatprep.subr.mxu0 0.0
      %2591 = vmatpush2.msra.mxu0 0.0
      %2592 = vmatprep.subr.mxu0 0.0
      %2593 = vmatpush2.msra.mxu0 0.0
      %2594 = vmatprep.subr.mxu0 0.0
      %2595 = vmatpush2.msra.mxu0 0.0
      %2596 = vmatprep.subr.mxu0 0.0
      %2597 = vmatpush2.msra.mxu0 0.0
      %2598 = vmatprep.subr.mxu0 0.0
      %2599 = vmatpush2.msra.mxu0 0.0
      %2600 = vmatprep.subr.mxu0 0.0
      %2601 = vmatpush2.msra.mxu0 0.0
      %2602 = vmatprep.mubr.f32.mxu0 0.0
      %2603 = vmatmul.mubr.f32.gmra.mxu0 %v2109
      %v2604 = vpop.f32.mrf.mxu0
      %v2605 = vadd.f32 %v1678, %v2604
      %v2606 = vpop.f32.mrf.mxu0
      %v2607 = vadd.f32 %v1680, %v2606
      %2608 = vdwg.mxu0
      %2609 = vmatprep.subr.mxu0 0.0
      %2610 = vmatpush1.msra.mxu0 0.0
      %2611 = vmatprep.subr.mxu0 0.0
      %2612 = vmatpush1.msra.mxu0 0.0
      %2613 = vmatprep.subr.mxu0 0.0
      %2614 = vmatpush1.msra.mxu0 0.0
      %2615 = vmatprep.subr.mxu0 0.0
      %2616 = vmatpush1.msra.mxu0 0.0
      %2617 = vmatprep.subr.mxu0 0.0
      %2618 = vmatpush1.msra.mxu0 0.0
      %2619 = vmatprep.subr.mxu0 0.0
      %2620 = vmatpush1.msra.mxu0 0.0
      %2621 = vmatprep.subr.mxu0 0.0
      %2622 = vmatpush1.msra.mxu0 0.0
      %2623 = vmatprep.subr.mxu0 0.0
      %2624 = vmatpush1.msra.mxu0 0.0
      %2625 = vmatprep.subr.mxu0 0.0
      %2626 = vmatpush1.msra.mxu0 0.0
      %2627 = vmatprep.subr.mxu0 0.0
      %2628 = vmatpush1.msra.mxu0 0.0
      %2629 = vmatprep.subr.mxu0 0.0
      %2630 = vmatpush1.msra.mxu0 0.0
      %2631 = vmatprep.subr.mxu0 0.0
      %2632 = vmatpush1.msra.mxu0 0.0
      %2633 = vmatprep.subr.mxu0 0.0
      %2634 = vmatpush1.msra.mxu0 0.0
      %2635 = vmatprep.subr.mxu0 0.0
      %2636 = vmatpush1.msra.mxu0 0.0
      %2637 = vmatprep.subr.mxu0 0.0
      %2638 = vmatpush1.msra.mxu0 0.0
      %2639 = vmatprep.subr.mxu0 %v2151
      %2640 = vmatpush1.msra.mxu0 %v2148
      %2641 = vmatprep.subr.mxu0 0.0
      %2642 = vmatpush2.msra.mxu0 0.0
      %2643 = vmatprep.subr.mxu0 0.0
      %2644 = vmatpush2.msra.mxu0 0.0
      %2645 = vmatprep.subr.mxu0 0.0
      %2646 = vmatpush2.msra.mxu0 0.0
      %2647 = vmatprep.subr.mxu0 0.0
      %2648 = vmatpush2.msra.mxu0 0.0
      %2649 = vmatprep.subr.mxu0 0.0
      %2650 = vmatpush2.msra.mxu0 0.0
      %2651 = vmatprep.subr.mxu0 0.0
      %2652 = vmatpush2.msra.mxu0 0.0
      %2653 = vmatprep.subr.mxu0 0.0
      %2654 = vmatpush2.msra.mxu0 0.0
      %2655 = vmatprep.subr.mxu0 0.0
      %2656 = vmatpush2.msra.mxu0 0.0
      %2657 = vmatprep.subr.mxu0 0.0
      %2658 = vmatpush2.msra.mxu0 0.0
      %2659 = vmatprep.subr.mxu0 0.0
      %2660 = vmatpush2.msra.mxu0 0.0
      %2661 = vmatprep.subr.mxu0 0.0
      %2662 = vmatpush2.msra.mxu0 0.0
      %2663 = vmatprep.subr.mxu0 0.0
      %2664 = vmatpush2.msra.mxu0 0.0
      %2665 = vmatprep.subr.mxu0 0.0
      %2666 = vmatpush2.msra.mxu0 0.0
      %2667 = vmatprep.subr.mxu0 0.0
      %2668 = vmatpush2.msra.mxu0 0.0
      %2669 = vmatprep.subr.mxu0 0.0
      %2670 = vmatpush2.msra.mxu0 0.0
      %2671 = vmatprep.subr.mxu0 0.0
      %2672 = vmatpush2.msra.mxu0 0.0
      %2673 = vmatprep.mubr.f32.mxu0 0.0
      %2674 = vmatmul.mubr.f32.gmra.mxu0 %v2109
      %v2675 = vpop.f32.mrf.mxu0
      %v2676 = vadd.f32 %v1749, %v2675
      %v2677 = vpop.f32.mrf.mxu0
      %v2678 = vadd.f32 %v1751, %v2677
      %2679 = vdwg.mxu0
      %2680 = vmatprep.subr.mxu0 0.0
      %2681 = vmatpush1.msra.mxu0 0.0
      %2682 = vmatprep.subr.mxu0 0.0
      %2683 = vmatpush1.msra.mxu0 0.0
      %2684 = vmatprep.subr.mxu0 0.0
      %2685 = vmatpush1.msra.mxu0 0.0
      %2686 = vmatprep.subr.mxu0 0.0
      %2687 = vmatpush1.msra.mxu0 0.0
      %2688 = vmatprep.subr.mxu0 0.0
      %2689 = vmatpush1.msra.mxu0 0.0
      %2690 = vmatprep.subr.mxu0 0.0
      %2691 = vmatpush1.msra.mxu0 0.0
      %2692 = vmatprep.subr.mxu0 0.0
      %2693 = vmatpush1.msra.mxu0 0.0
      %2694 = vmatprep.subr.mxu0 0.0
      %2695 = vmatpush1.msra.mxu0 0.0
      %2696 = vmatprep.subr.mxu0 0.0
      %2697 = vmatpush1.msra.mxu0 0.0
      %2698 = vmatprep.subr.mxu0 0.0
      %2699 = vmatpush1.msra.mxu0 0.0
      %2700 = vmatprep.subr.mxu0 0.0
      %2701 = vmatpush1.msra.mxu0 0.0
      %2702 = vmatprep.subr.mxu0 0.0
      %2703 = vmatpush1.msra.mxu0 0.0
      %2704 = vmatprep.subr.mxu0 0.0
      %2705 = vmatpush1.msra.mxu0 0.0
      %2706 = vmatprep.subr.mxu0 0.0
      %2707 = vmatpush1.msra.mxu0 0.0
      %2708 = vmatprep.subr.mxu0 0.0
      %2709 = vmatpush1.msra.mxu0 0.0
      %2710 = vmatprep.subr.mxu0 %v2157
      %2711 = vmatpush1.msra.mxu0 %v2154
      %2712 = vmatprep.subr.mxu0 0.0
      %2713 = vmatpush2.msra.mxu0 0.0
      %2714 = vmatprep.subr.mxu0 0.0
      %2715 = vmatpush2.msra.mxu0 0.0
      %2716 = vmatprep.subr.mxu0 0.0
      %2717 = vmatpush2.msra.mxu0 0.0
      %2718 = vmatprep.subr.mxu0 0.0
      %2719 = vmatpush2.msra.mxu0 0.0
      %2720 = vmatprep.subr.mxu0 0.0
      %2721 = vmatpush2.msra.mxu0 0.0
      %2722 = vmatprep.subr.mxu0 0.0
      %2723 = vmatpush2.msra.mxu0 0.0
      %2724 = vmatprep.subr.mxu0 0.0
      %2725 = vmatpush2.msra.mxu0 0.0
      %2726 = vmatprep.subr.mxu0 0.0
      %2727 = vmatpush2.msra.mxu0 0.0
      %2728 = vmatprep.subr.mxu0 0.0
      %2729 = vmatpush2.msra.mxu0 0.0
      %2730 = vmatprep.subr.mxu0 0.0
      %2731 = vmatpush2.msra.mxu0 0.0
      %2732 = vmatprep.subr.mxu0 0.0
      %2733 = vmatpush2.msra.mxu0 0.0
      %2734 = vmatprep.subr.mxu0 0.0
      %2735 = vmatpush2.msra.mxu0 0.0
      %2736 = vmatprep.subr.mxu0 0.0
      %2737 = vmatpush2.msra.mxu0 0.0
      %2738 = vmatprep.subr.mxu0 0.0
      %2739 = vmatpush2.msra.mxu0 0.0
      %2740 = vmatprep.subr.mxu0 0.0
      %2741 = vmatpush2.msra.mxu0 0.0
      %2742 = vmatprep.subr.mxu0 0.0
      %2743 = vmatpush2.msra.mxu0 0.0
      %2744 = vmatprep.mubr.f32.mxu0 0.0
      %2745 = vmatmul.mubr.f32.gmra.mxu0 %v2109
      %v2746 = vpop.f32.mrf.mxu0
      %v2747 = vadd.f32 %v1820, %v2746
      %v2748 = vpop.f32.mrf.mxu0
      %v2749 = vadd.f32 %v1822, %v2748
      %2750 = vdwg.mxu0
      %2751 = vmatprep.subr.mxu0 0.0
      %2752 = vmatpush1.msra.mxu0 0.0
      %2753 = vmatprep.subr.mxu0 0.0
      %2754 = vmatpush1.msra.mxu0 0.0
      %2755 = vmatprep.subr.mxu0 0.0
      %2756 = vmatpush1.msra.mxu0 0.0
      %2757 = vmatprep.subr.mxu0 0.0
      %2758 = vmatpush1.msra.mxu0 0.0
      %2759 = vmatprep.subr.mxu0 0.0
      %2760 = vmatpush1.msra.mxu0 0.0
      %2761 = vmatprep.subr.mxu0 0.0
      %2762 = vmatpush1.msra.mxu0 0.0
      %2763 = vmatprep.subr.mxu0 0.0
      %2764 = vmatpush1.msra.mxu0 0.0
      %2765 = vmatprep.subr.mxu0 0.0
      %2766 = vmatpush1.msra.mxu0 0.0
      %2767 = vmatprep.subr.mxu0 0.0
      %2768 = vmatpush1.msra.mxu0 0.0
      %2769 = vmatprep.subr.mxu0 0.0
      %2770 = vmatpush1.msra.mxu0 0.0
      %2771 = vmatprep.subr.mxu0 0.0
      %2772 = vmatpush1.msra.mxu0 0.0
      %2773 = vmatprep.subr.mxu0 0.0
      %2774 = vmatpush1.msra.mxu0 0.0
      %2775 = vmatprep.subr.mxu0 0.0
      %2776 = vmatpush1.msra.mxu0 0.0
      %2777 = vmatprep.subr.mxu0 0.0
      %2778 = vmatpush1.msra.mxu0 0.0
      %2779 = vmatprep.subr.mxu0 0.0
      %2780 = vmatpush1.msra.mxu0 0.0
      %2781 = vmatprep.subr.mxu0 %v2163
      %2782 = vmatpush1.msra.mxu0 %v2160
      %2783 = vmatprep.subr.mxu0 0.0
      %2784 = vmatpush2.msra.mxu0 0.0
      %2785 = vmatprep.subr.mxu0 0.0
      %2786 = vmatpush2.msra.mxu0 0.0
      %2787 = vmatprep.subr.mxu0 0.0
      %2788 = vmatpush2.msra.mxu0 0.0
      %2789 = vmatprep.subr.mxu0 0.0
      %2790 = vmatpush2.msra.mxu0 0.0
      %2791 = vmatprep.subr.mxu0 0.0
      %2792 = vmatpush2.msra.mxu0 0.0
      %2793 = vmatprep.subr.mxu0 0.0
      %2794 = vmatpush2.msra.mxu0 0.0
      %2795 = vmatprep.subr.mxu0 0.0
      %2796 = vmatpush2.msra.mxu0 0.0
      %2797 = vmatprep.subr.mxu0 0.0
      %2798 = vmatpush2.msra.mxu0 0.0
      %2799 = vmatprep.subr.mxu0 0.0
      %2800 = vmatpush2.msra.mxu0 0.0
      %2801 = vmatprep.subr.mxu0 0.0
      %2802 = vmatpush2.msra.mxu0 0.0
      %2803 = vmatprep.subr.mxu0 0.0
      %2804 = vmatpush2.msra.mxu0 0.0
      %2805 = vmatprep.subr.mxu0 0.0
      %2806 = vmatpush2.msra.mxu0 0.0
      %2807 = vmatprep.subr.mxu0 0.0
      %2808 = vmatpush2.msra.mxu0 0.0
      %2809 = vmatprep.subr.mxu0 0.0
      %2810 = vmatpush2.msra.mxu0 0.0
      %2811 = vmatprep.subr.mxu0 0.0
      %2812 = vmatpush2.msra.mxu0 0.0
      %2813 = vmatprep.subr.mxu0 0.0
      %2814 = vmatpush2.msra.mxu0 0.0
      %2815 = vmatprep.mubr.f32.mxu0 0.0
      %2816 = vmatmul.mubr.f32.gmra.mxu0 %v2109
      %v2817 = vpop.f32.mrf.mxu0
      %v2818 = vadd.f32 %v1891, %v2817
      %v2819 = vpop.f32.mrf.mxu0
      %v2820 = vadd.f32 %v1893, %v2819
      %2821 = vdwg.mxu0
      %2822 = vmatprep.subr.mxu0 0.0
      %2823 = vmatpush1.msra.mxu0 0.0
      %2824 = vmatprep.subr.mxu0 0.0
      %2825 = vmatpush1.msra.mxu0 0.0
      %2826 = vmatprep.subr.mxu0 0.0
      %2827 = vmatpush1.msra.mxu0 0.0
      %2828 = vmatprep.subr.mxu0 0.0
      %2829 = vmatpush1.msra.mxu0 0.0
      %2830 = vmatprep.subr.mxu0 0.0
      %2831 = vmatpush1.msra.mxu0 0.0
      %2832 = vmatprep.subr.mxu0 0.0
      %2833 = vmatpush1.msra.mxu0 0.0
      %2834 = vmatprep.subr.mxu0 0.0
      %2835 = vmatpush1.msra.mxu0 0.0
      %2836 = vmatprep.subr.mxu0 0.0
      %2837 = vmatpush1.msra.mxu0 0.0
      %2838 = vmatprep.subr.mxu0 0.0
      %2839 = vmatpush1.msra.mxu0 0.0
      %2840 = vmatprep.subr.mxu0 0.0
      %2841 = vmatpush1.msra.mxu0 0.0
      %2842 = vmatprep.subr.mxu0 0.0
      %2843 = vmatpush1.msra.mxu0 0.0
      %2844 = vmatprep.subr.mxu0 0.0
      %2845 = vmatpush1.msra.mxu0 0.0
      %2846 = vmatprep.subr.mxu0 0.0
      %2847 = vmatpush1.msra.mxu0 0.0
      %2848 = vmatprep.subr.mxu0 0.0
      %2849 = vmatpush1.msra.mxu0 0.0
      %2850 = vmatprep.subr.mxu0 0.0
      %2851 = vmatpush1.msra.mxu0 0.0
      %2852 = vmatprep.subr.mxu0 %v2169
      %2853 = vmatpush1.msra.mxu0 %v2166
      %2854 = vmatprep.subr.mxu0 0.0
      %2855 = vmatpush2.msra.mxu0 0.0
      %2856 = vmatprep.subr.mxu0 0.0
      %2857 = vmatpush2.msra.mxu0 0.0
      %2858 = vmatprep.subr.mxu0 0.0
      %2859 = vmatpush2.msra.mxu0 0.0
      %2860 = vmatprep.subr.mxu0 0.0
      %2861 = vmatpush2.msra.mxu0 0.0
      %2862 = vmatprep.subr.mxu0 0.0
      %2863 = vmatpush2.msra.mxu0 0.0
      %2864 = vmatprep.subr.mxu0 0.0
      %2865 = vmatpush2.msra.mxu0 0.0
      %2866 = vmatprep.subr.mxu0 0.0
      %2867 = vmatpush2.msra.mxu0 0.0
      %2868 = vmatprep.subr.mxu0 0.0
      %2869 = vmatpush2.msra.mxu0 0.0
      %2870 = vmatprep.subr.mxu0 0.0
      %2871 = vmatpush2.msra.mxu0 0.0
      %2872 = vmatprep.subr.mxu0 0.0
      %2873 = vmatpush2.msra.mxu0 0.0
      %2874 = vmatprep.subr.mxu0 0.0
      %2875 = vmatpush2.msra.mxu0 0.0
      %2876 = vmatprep.subr.mxu0 0.0
      %2877 = vmatpush2.msra.mxu0 0.0
      %2878 = vmatprep.subr.mxu0 0.0
      %2879 = vmatpush2.msra.mxu0 0.0
      %2880 = vmatprep.subr.mxu0 0.0
      %2881 = vmatpush2.msra.mxu0 0.0
      %2882 = vmatprep.subr.mxu0 0.0
      %2883 = vmatpush2.msra.mxu0 0.0
      %2884 = vmatprep.subr.mxu0 0.0
      %2885 = vmatpush2.msra.mxu0 0.0
      %2886 = vmatprep.mubr.f32.mxu0 0.0
      %2887 = vmatmul.mubr.f32.gmra.mxu0 %v2109
      %v2888 = vpop.f32.mrf.mxu0
      %v2889 = vadd.f32 %v1962, %v2888
      %v2890 = vpop.f32.mrf.mxu0
      %v2891 = vadd.f32 %v1964, %v2890
      %2892 = vdwg.mxu0
      %2893 = vmatprep.subr.mxu0 0.0
      %2894 = vmatpush1.msra.mxu0 0.0
      %2895 = vmatprep.subr.mxu0 0.0
      %2896 = vmatpush1.msra.mxu0 0.0
      %2897 = vmatprep.subr.mxu0 0.0
      %2898 = vmatpush1.msra.mxu0 0.0
      %2899 = vmatprep.subr.mxu0 0.0
      %2900 = vmatpush1.msra.mxu0 0.0
      %2901 = vmatprep.subr.mxu0 0.0
      %2902 = vmatpush1.msra.mxu0 0.0
      %2903 = vmatprep.subr.mxu0 0.0
      %2904 = vmatpush1.msra.mxu0 0.0
      %2905 = vmatprep.subr.mxu0 0.0
      %2906 = vmatpush1.msra.mxu0 0.0
      %2907 = vmatprep.subr.mxu0 0.0
      %2908 = vmatpush1.msra.mxu0 0.0
      %2909 = vmatprep.subr.mxu0 0.0
      %2910 = vmatpush1.msra.mxu0 0.0
      %2911 = vmatprep.subr.mxu0 0.0
      %2912 = vmatpush1.msra.mxu0 0.0
      %2913 = vmatprep.subr.mxu0 0.0
      %2914 = vmatpush1.msra.mxu0 0.0
      %2915 = vmatprep.subr.mxu0 0.0
      %2916 = vmatpush1.msra.mxu0 0.0
      %2917 = vmatprep.subr.mxu0 0.0
      %2918 = vmatpush1.msra.mxu0 0.0
      %2919 = vmatprep.subr.mxu0 0.0
      %2920 = vmatpush1.msra.mxu0 0.0
      %2921 = vmatprep.subr.mxu0 0.0
      %2922 = vmatpush1.msra.mxu0 0.0
      %2923 = vmatprep.subr.mxu0 %v2175
      %2924 = vmatpush1.msra.mxu0 %v2172
      %2925 = vmatprep.subr.mxu0 0.0
      %2926 = vmatpush2.msra.mxu0 0.0
      %2927 = vmatprep.subr.mxu0 0.0
      %2928 = vmatpush2.msra.mxu0 0.0
      %2929 = vmatprep.subr.mxu0 0.0
      %2930 = vmatpush2.msra.mxu0 0.0
      %2931 = vmatprep.subr.mxu0 0.0
      %2932 = vmatpush2.msra.mxu0 0.0
      %2933 = vmatprep.subr.mxu0 0.0
      %2934 = vmatpush2.msra.mxu0 0.0
      %2935 = vmatprep.subr.mxu0 0.0
      %2936 = vmatpush2.msra.mxu0 0.0
      %2937 = vmatprep.subr.mxu0 0.0
      %2938 = vmatpush2.msra.mxu0 0.0
      %2939 = vmatprep.subr.mxu0 0.0
      %2940 = vmatpush2.msra.mxu0 0.0
      %2941 = vmatprep.subr.mxu0 0.0
      %2942 = vmatpush2.msra.mxu0 0.0
      %2943 = vmatprep.subr.mxu0 0.0
      %2944 = vmatpush2.msra.mxu0 0.0
      %2945 = vmatprep.subr.mxu0 0.0
      %2946 = vmatpush2.msra.mxu0 0.0
      %2947 = vmatprep.subr.mxu0 0.0
      %2948 = vmatpush2.msra.mxu0 0.0
      %2949 = vmatprep.subr.mxu0 0.0
      %2950 = vmatpush2.msra.mxu0 0.0
      %2951 = vmatprep.subr.mxu0 0.0
      %2952 = vmatpush2.msra.mxu0 0.0
      %2953 = vmatprep.subr.mxu0 0.0
      %2954 = vmatpush2.msra.mxu0 0.0
      %2955 = vmatprep.subr.mxu0 0.0
      %2956 = vmatpush2.msra.mxu0 0.0
      %2957 = vmatprep.mubr.f32.mxu0 0.0
      %2958 = vmatmul.mubr.f32.gmra.mxu0 %v2109
      %v2959 = vpop.f32.mrf.mxu0
      %v2960 = vadd.f32 %v2033, %v2959
      %v2961 = vpop.f32.mrf.mxu0
      %v2962 = vadd.f32 %v2035, %v2961
      %2963 = vdwg.mxu0
      %2964 = vmatprep.subr.mxu0 0.0
      %2965 = vmatpush1.msra.mxu0 0.0
      %2966 = vmatprep.subr.mxu0 0.0
      %2967 = vmatpush1.msra.mxu0 0.0
      %2968 = vmatprep.subr.mxu0 0.0
      %2969 = vmatpush1.msra.mxu0 0.0
      %2970 = vmatprep.subr.mxu0 0.0
      %2971 = vmatpush1.msra.mxu0 0.0
      %2972 = vmatprep.subr.mxu0 0.0
      %2973 = vmatpush1.msra.mxu0 0.0
      %2974 = vmatprep.subr.mxu0 0.0
      %2975 = vmatpush1.msra.mxu0 0.0
      %2976 = vmatprep.subr.mxu0 0.0
      %2977 = vmatpush1.msra.mxu0 0.0
      %2978 = vmatprep.subr.mxu0 0.0
      %2979 = vmatpush1.msra.mxu0 0.0
      %2980 = vmatprep.subr.mxu0 0.0
      %2981 = vmatpush1.msra.mxu0 0.0
      %2982 = vmatprep.subr.mxu0 0.0
      %2983 = vmatpush1.msra.mxu0 0.0
      %2984 = vmatprep.subr.mxu0 0.0
      %2985 = vmatpush1.msra.mxu0 0.0
      %2986 = vmatprep.subr.mxu0 0.0
      %2987 = vmatpush1.msra.mxu0 0.0
      %2988 = vmatprep.subr.mxu0 0.0
      %2989 = vmatpush1.msra.mxu0 0.0
      %2990 = vmatprep.subr.mxu0 0.0
      %2991 = vmatpush1.msra.mxu0 0.0
      %2992 = vmatprep.subr.mxu0 0.0
      %2993 = vmatpush1.msra.mxu0 0.0
      %2994 = vmatprep.subr.mxu0 %v2181
      %2995 = vmatpush1.msra.mxu0 %v2178
      %2996 = vmatprep.subr.mxu0 0.0
      %2997 = vmatpush2.msra.mxu0 0.0
      %2998 = vmatprep.subr.mxu0 0.0
      %2999 = vmatpush2.msra.mxu0 0.0
      %3000 = vmatprep.subr.mxu0 0.0
      %3001 = vmatpush2.msra.mxu0 0.0
      %3002 = vmatprep.subr.mxu0 0.0
      %3003 = vmatpush2.msra.mxu0 0.0
      %3004 = vmatprep.subr.mxu0 0.0
      %3005 = vmatpush2.msra.mxu0 0.0
      %3006 = vmatprep.subr.mxu0 0.0
      %3007 = vmatpush2.msra.mxu0 0.0
      %3008 = vmatprep.subr.mxu0 0.0
      %3009 = vmatpush2.msra.mxu0 0.0
      %3010 = vmatprep.subr.mxu0 0.0
      %3011 = vmatpush2.msra.mxu0 0.0
      %3012 = vmatprep.subr.mxu0 0.0
      %3013 = vmatpush2.msra.mxu0 0.0
      %3014 = vmatprep.subr.mxu0 0.0
      %3015 = vmatpush2.msra.mxu0 0.0
      %3016 = vmatprep.subr.mxu0 0.0
      %3017 = vmatpush2.msra.mxu0 0.0
      %3018 = vmatprep.subr.mxu0 0.0
      %3019 = vmatpush2.msra.mxu0 0.0
      %3020 = vmatprep.subr.mxu0 0.0
      %3021 = vmatpush2.msra.mxu0 0.0
      %3022 = vmatprep.subr.mxu0 0.0
      %3023 = vmatpush2.msra.mxu0 0.0
      %3024 = vmatprep.subr.mxu0 0.0
      %3025 = vmatpush2.msra.mxu0 0.0
      %3026 = vmatprep.subr.mxu0 0.0
      %3027 = vmatpush2.msra.mxu0 0.0
      %3028 = vmatprep.mubr.f32.mxu0 0.0
      %3029 = vmatmul.mubr.f32.gmra.mxu0 %v2109
      %v3030 = vpop.f32.mrf.mxu0
      %v3031 = vadd.f32 %v2104, %v3030
      %v3032 = vpop.f32.mrf.mxu0
      %v3033 = vadd.f32 %v2106, %v3032
      %3034 = vdwg.mxu0
      %s3035 = scalar_lea.vmem %s4, 8
      %v3036 = vld [vmem:[%s3035] sm:$0xf]
      %s3037 = scalar_lea.vmem %s4, 12
      %v3038 = vld [vmem:[%s3037] sm:$0xf]
      %v3040 = vsel %vm1179, %v3038, 0
      %3042 = vmatprep.subr.mxu0 0.0
      %3043 = vmatpush1.msra.mxu0 0.0
      %3044 = vmatprep.subr.mxu0 0.0
      %3045 = vmatpush1.msra.mxu0 0.0
      %3046 = vmatprep.subr.mxu0 0.0
      %3047 = vmatpush1.msra.mxu0 0.0
      %3048 = vmatprep.subr.mxu0 0.0
      %3049 = vmatpush1.msra.mxu0 0.0
      %3050 = vmatprep.subr.mxu0 0.0
      %3051 = vmatpush1.msra.mxu0 0.0
      %3052 = vmatprep.subr.mxu0 0.0
      %3053 = vmatpush1.msra.mxu0 0.0
      %3054 = vmatprep.subr.mxu0 0.0
      %3055 = vmatpush1.msra.mxu0 0.0
      %3056 = vmatprep.subr.mxu0 0.0
      %3057 = vmatpush1.msra.mxu0 0.0
      %3058 = vmatprep.subr.mxu0 0.0
      %3059 = vmatpush1.msra.mxu0 0.0
      %3060 = vmatprep.subr.mxu0 0.0
      %3061 = vmatpush1.msra.mxu0 0.0
      %3062 = vmatprep.subr.mxu0 0.0
      %3063 = vmatpush1.msra.mxu0 0.0
      %3064 = vmatprep.subr.mxu0 0.0
      %3065 = vmatpush1.msra.mxu0 0.0
      %3066 = vmatprep.subr.mxu0 0.0
      %3067 = vmatpush1.msra.mxu0 0.0
      %3068 = vmatprep.subr.mxu0 0.0
      %3069 = vmatpush1.msra.mxu0 0.0
      %3070 = vmatprep.subr.mxu0 0.0
      %3071 = vmatpush1.msra.mxu0 0.0
      %3072 = vmatprep.subr.mxu0 %v1188
      %3073 = vmatpush1.msra.mxu0 %v1185
      %3074 = vmatprep.subr.mxu0 0.0
      %3075 = vmatpush2.msra.mxu0 0.0
      %3076 = vmatprep.subr.mxu0 0.0
      %3077 = vmatpush2.msra.mxu0 0.0
      %3078 = vmatprep.subr.mxu0 0.0
      %3079 = vmatpush2.msra.mxu0 0.0
      %3080 = vmatprep.subr.mxu0 0.0
      %3081 = vmatpush2.msra.mxu0 0.0
      %3082 = vmatprep.subr.mxu0 0.0
      %3083 = vmatpush2.msra.mxu0 0.0
      %3084 = vmatprep.subr.mxu0 0.0
      %3085 = vmatpush2.msra.mxu0 0.0
      %3086 = vmatprep.subr.mxu0 0.0
      %3087 = vmatpush2.msra.mxu0 0.0
      %3088 = vmatprep.subr.mxu0 0.0
      %3089 = vmatpush2.msra.mxu0 0.0
      %3090 = vmatprep.subr.mxu0 0.0
      %3091 = vmatpush2.msra.mxu0 0.0
      %3092 = vmatprep.subr.mxu0 0.0
      %3093 = vmatpush2.msra.mxu0 0.0
      %3094 = vmatprep.subr.mxu0 0.0
      %3095 = vmatpush2.msra.mxu0 0.0
      %3096 = vmatprep.subr.mxu0 0.0
      %3097 = vmatpush2.msra.mxu0 0.0
      %3098 = vmatprep.subr.mxu0 0.0
      %3099 = vmatpush2.msra.mxu0 0.0
      %3100 = vmatprep.subr.mxu0 0.0
      %3101 = vmatpush2.msra.mxu0 0.0
      %3102 = vmatprep.subr.mxu0 0.0
      %3103 = vmatpush2.msra.mxu0 0.0
      %3104 = vmatprep.subr.mxu0 0.0
      %3105 = vmatpush2.msra.mxu0 0.0
      %3106 = vmatprep.mubr.f32.mxu0 0.0
      %3107 = vmatmul.mubr.f32.gmra.mxu0 %v3040
      %v3108 = vpop.f32.mrf.mxu0
      %v3109 = vadd.f32 0.0, %v3108
      %v3110 = vpop.f32.mrf.mxu0
      %v3111 = vadd.f32 0.0, %v3110
      %3112 = vdwg.mxu0
      %3113 = vmatprep.subr.mxu0 0.0
      %3114 = vmatpush1.msra.mxu0 0.0
      %3115 = vmatprep.subr.mxu0 0.0
      %3116 = vmatpush1.msra.mxu0 0.0
      %3117 = vmatprep.subr.mxu0 0.0
      %3118 = vmatpush1.msra.mxu0 0.0
      %3119 = vmatprep.subr.mxu0 0.0
      %3120 = vmatpush1.msra.mxu0 0.0
      %3121 = vmatprep.subr.mxu0 0.0
      %3122 = vmatpush1.msra.mxu0 0.0
      %3123 = vmatprep.subr.mxu0 0.0
      %3124 = vmatpush1.msra.mxu0 0.0
      %3125 = vmatprep.subr.mxu0 0.0
      %3126 = vmatpush1.msra.mxu0 0.0
      %3127 = vmatprep.subr.mxu0 0.0
      %3128 = vmatpush1.msra.mxu0 0.0
      %3129 = vmatprep.subr.mxu0 0.0
      %3130 = vmatpush1.msra.mxu0 0.0
      %3131 = vmatprep.subr.mxu0 0.0
      %3132 = vmatpush1.msra.mxu0 0.0
      %3133 = vmatprep.subr.mxu0 0.0
      %3134 = vmatpush1.msra.mxu0 0.0
      %3135 = vmatprep.subr.mxu0 0.0
      %3136 = vmatpush1.msra.mxu0 0.0
      %3137 = vmatprep.subr.mxu0 0.0
      %3138 = vmatpush1.msra.mxu0 0.0
      %3139 = vmatprep.subr.mxu0 0.0
      %3140 = vmatpush1.msra.mxu0 0.0
      %3141 = vmatprep.subr.mxu0 0.0
      %3142 = vmatpush1.msra.mxu0 0.0
      %3143 = vmatprep.subr.mxu0 %v1194
      %3144 = vmatpush1.msra.mxu0 %v1191
      %3145 = vmatprep.subr.mxu0 0.0
      %3146 = vmatpush2.msra.mxu0 0.0
      %3147 = vmatprep.subr.mxu0 0.0
      %3148 = vmatpush2.msra.mxu0 0.0
      %3149 = vmatprep.subr.mxu0 0.0
      %3150 = vmatpush2.msra.mxu0 0.0
      %3151 = vmatprep.subr.mxu0 0.0
      %3152 = vmatpush2.msra.mxu0 0.0
      %3153 = vmatprep.subr.mxu0 0.0
      %3154 = vmatpush2.msra.mxu0 0.0
      %3155 = vmatprep.subr.mxu0 0.0
      %3156 = vmatpush2.msra.mxu0 0.0
      %3157 = vmatprep.subr.mxu0 0.0
      %3158 = vmatpush2.msra.mxu0 0.0
      %3159 = vmatprep.subr.mxu0 0.0
      %3160 = vmatpush2.msra.mxu0 0.0
      %3161 = vmatprep.subr.mxu0 0.0
      %3162 = vmatpush2.msra.mxu0 0.0
      %3163 = vmatprep.subr.mxu0 0.0
      %3164 = vmatpush2.msra.mxu0 0.0
      %3165 = vmatprep.subr.mxu0 0.0
      %3166 = vmatpush2.msra.mxu0 0.0
      %3167 = vmatprep.subr.mxu0 0.0
      %3168 = vmatpush2.msra.mxu0 0.0
      %3169 = vmatprep.subr.mxu0 0.0
      %3170 = vmatpush2.msra.mxu0 0.0
      %3171 = vmatprep.subr.mxu0 0.0
      %3172 = vmatpush2.msra.mxu0 0.0
      %3173 = vmatprep.subr.mxu0 0.0
      %3174 = vmatpush2.msra.mxu0 0.0
      %3175 = vmatprep.subr.mxu0 0.0
      %3176 = vmatpush2.msra.mxu0 0.0
      %3177 = vmatprep.mubr.f32.mxu0 0.0
      %3178 = vmatmul.mubr.f32.gmra.mxu0 %v3040
      %v3179 = vpop.f32.mrf.mxu0
      %v3180 = vadd.f32 0.0, %v3179
      %v3181 = vpop.f32.mrf.mxu0
      %v3182 = vadd.f32 0.0, %v3181
      %3183 = vdwg.mxu0
      %3184 = vmatprep.subr.mxu0 0.0
      %3185 = vmatpush1.msra.mxu0 0.0
      %3186 = vmatprep.subr.mxu0 0.0
      %3187 = vmatpush1.msra.mxu0 0.0
      %3188 = vmatprep.subr.mxu0 0.0
      %3189 = vmatpush1.msra.mxu0 0.0
      %3190 = vmatprep.subr.mxu0 0.0
      %3191 = vmatpush1.msra.mxu0 0.0
      %3192 = vmatprep.subr.mxu0 0.0
      %3193 = vmatpush1.msra.mxu0 0.0
      %3194 = vmatprep.subr.mxu0 0.0
      %3195 = vmatpush1.msra.mxu0 0.0
      %3196 = vmatprep.subr.mxu0 0.0
      %3197 = vmatpush1.msra.mxu0 0.0
      %3198 = vmatprep.subr.mxu0 0.0
      %3199 = vmatpush1.msra.mxu0 0.0
      %3200 = vmatprep.subr.mxu0 0.0
      %3201 = vmatpush1.msra.mxu0 0.0
      %3202 = vmatprep.subr.mxu0 0.0
      %3203 = vmatpush1.msra.mxu0 0.0
      %3204 = vmatprep.subr.mxu0 0.0
      %3205 = vmatpush1.msra.mxu0 0.0
      %3206 = vmatprep.subr.mxu0 0.0
      %3207 = vmatpush1.msra.mxu0 0.0
      %3208 = vmatprep.subr.mxu0 0.0
      %3209 = vmatpush1.msra.mxu0 0.0
      %3210 = vmatprep.subr.mxu0 0.0
      %3211 = vmatpush1.msra.mxu0 0.0
      %3212 = vmatprep.subr.mxu0 0.0
      %3213 = vmatpush1.msra.mxu0 0.0
      %3214 = vmatprep.subr.mxu0 %v1200
      %3215 = vmatpush1.msra.mxu0 %v1197
      %3216 = vmatprep.subr.mxu0 0.0
      %3217 = vmatpush2.msra.mxu0 0.0
      %3218 = vmatprep.subr.mxu0 0.0
      %3219 = vmatpush2.msra.mxu0 0.0
      %3220 = vmatprep.subr.mxu0 0.0
      %3221 = vmatpush2.msra.mxu0 0.0
      %3222 = vmatprep.subr.mxu0 0.0
      %3223 = vmatpush2.msra.mxu0 0.0
      %3224 = vmatprep.subr.mxu0 0.0
      %3225 = vmatpush2.msra.mxu0 0.0
      %3226 = vmatprep.subr.mxu0 0.0
      %3227 = vmatpush2.msra.mxu0 0.0
      %3228 = vmatprep.subr.mxu0 0.0
      %3229 = vmatpush2.msra.mxu0 0.0
      %3230 = vmatprep.subr.mxu0 0.0
      %3231 = vmatpush2.msra.mxu0 0.0
      %3232 = vmatprep.subr.mxu0 0.0
      %3233 = vmatpush2.msra.mxu0 0.0
      %3234 = vmatprep.subr.mxu0 0.0
      %3235 = vmatpush2.msra.mxu0 0.0
      %3236 = vmatprep.subr.mxu0 0.0
      %3237 = vmatpush2.msra.mxu0 0.0
      %3238 = vmatprep.subr.mxu0 0.0
      %3239 = vmatpush2.msra.mxu0 0.0
      %3240 = vmatprep.subr.mxu0 0.0
      %3241 = vmatpush2.msra.mxu0 0.0
      %3242 = vmatprep.subr.mxu0 0.0
      %3243 = vmatpush2.msra.mxu0 0.0
      %3244 = vmatprep.subr.mxu0 0.0
      %3245 = vmatpush2.msra.mxu0 0.0
      %3246 = vmatprep.subr.mxu0 0.0
      %3247 = vmatpush2.msra.mxu0 0.0
      %3248 = vmatprep.mubr.f32.mxu0 0.0
      %3249 = vmatmul.mubr.f32.gmra.mxu0 %v3040
      %v3250 = vpop.f32.mrf.mxu0
      %v3251 = vadd.f32 0.0, %v3250
      %v3252 = vpop.f32.mrf.mxu0
      %v3253 = vadd.f32 0.0, %v3252
      %3254 = vdwg.mxu0
      %3255 = vmatprep.subr.mxu0 0.0
      %3256 = vmatpush1.msra.mxu0 0.0
      %3257 = vmatprep.subr.mxu0 0.0
      %3258 = vmatpush1.msra.mxu0 0.0
      %3259 = vmatprep.subr.mxu0 0.0
      %3260 = vmatpush1.msra.mxu0 0.0
      %3261 = vmatprep.subr.mxu0 0.0
      %3262 = vmatpush1.msra.mxu0 0.0
      %3263 = vmatprep.subr.mxu0 0.0
      %3264 = vmatpush1.msra.mxu0 0.0
      %3265 = vmatprep.subr.mxu0 0.0
      %3266 = vmatpush1.msra.mxu0 0.0
      %3267 = vmatprep.subr.mxu0 0.0
      %3268 = vmatpush1.msra.mxu0 0.0
      %3269 = vmatprep.subr.mxu0 0.0
      %3270 = vmatpush1.msra.mxu0 0.0
      %3271 = vmatprep.subr.mxu0 0.0
      %3272 = vmatpush1.msra.mxu0 0.0
      %3273 = vmatprep.subr.mxu0 0.0
      %3274 = vmatpush1.msra.mxu0 0.0
      %3275 = vmatprep.subr.mxu0 0.0
      %3276 = vmatpush1.msra.mxu0 0.0
      %3277 = vmatprep.subr.mxu0 0.0
      %3278 = vmatpush1.msra.mxu0 0.0
      %3279 = vmatprep.subr.mxu0 0.0
      %3280 = vmatpush1.msra.mxu0 0.0
      %3281 = vmatprep.subr.mxu0 0.0
      %3282 = vmatpush1.msra.mxu0 0.0
      %3283 = vmatprep.subr.mxu0 0.0
      %3284 = vmatpush1.msra.mxu0 0.0
      %3285 = vmatprep.subr.mxu0 %v1206
      %3286 = vmatpush1.msra.mxu0 %v1203
      %3287 = vmatprep.subr.mxu0 0.0
      %3288 = vmatpush2.msra.mxu0 0.0
      %3289 = vmatprep.subr.mxu0 0.0
      %3290 = vmatpush2.msra.mxu0 0.0
      %3291 = vmatprep.subr.mxu0 0.0
      %3292 = vmatpush2.msra.mxu0 0.0
      %3293 = vmatprep.subr.mxu0 0.0
      %3294 = vmatpush2.msra.mxu0 0.0
      %3295 = vmatprep.subr.mxu0 0.0
      %3296 = vmatpush2.msra.mxu0 0.0
      %3297 = vmatprep.subr.mxu0 0.0
      %3298 = vmatpush2.msra.mxu0 0.0
      %3299 = vmatprep.subr.mxu0 0.0
      %3300 = vmatpush2.msra.mxu0 0.0
      %3301 = vmatprep.subr.mxu0 0.0
      %3302 = vmatpush2.msra.mxu0 0.0
      %3303 = vmatprep.subr.mxu0 0.0
      %3304 = vmatpush2.msra.mxu0 0.0
      %3305 = vmatprep.subr.mxu0 0.0
      %3306 = vmatpush2.msra.mxu0 0.0
      %3307 = vmatprep.subr.mxu0 0.0
      %3308 = vmatpush2.msra.mxu0 0.0
      %3309 = vmatprep.subr.mxu0 0.0
      %3310 = vmatpush2.msra.mxu0 0.0
      %3311 = vmatprep.subr.mxu0 0.0
      %3312 = vmatpush2.msra.mxu0 0.0
      %3313 = vmatprep.subr.mxu0 0.0
      %3314 = vmatpush2.msra.mxu0 0.0
      %3315 = vmatprep.subr.mxu0 0.0
      %3316 = vmatpush2.msra.mxu0 0.0
      %3317 = vmatprep.subr.mxu0 0.0
      %3318 = vmatpush2.msra.mxu0 0.0
      %3319 = vmatprep.mubr.f32.mxu0 0.0
      %3320 = vmatmul.mubr.f32.gmra.mxu0 %v3040
      %v3321 = vpop.f32.mrf.mxu0
      %v3322 = vadd.f32 0.0, %v3321
      %v3323 = vpop.f32.mrf.mxu0
      %v3324 = vadd.f32 0.0, %v3323
      %3325 = vdwg.mxu0
      %3326 = vmatprep.subr.mxu0 0.0
      %3327 = vmatpush1.msra.mxu0 0.0
      %3328 = vmatprep.subr.mxu0 0.0
      %3329 = vmatpush1.msra.mxu0 0.0
      %3330 = vmatprep.subr.mxu0 0.0
      %3331 = vmatpush1.msra.mxu0 0.0
      %3332 = vmatprep.subr.mxu0 0.0
      %3333 = vmatpush1.msra.mxu0 0.0
      %3334 = vmatprep.subr.mxu0 0.0
      %3335 = vmatpush1.msra.mxu0 0.0
      %3336 = vmatprep.subr.mxu0 0.0
      %3337 = vmatpush1.msra.mxu0 0.0
      %3338 = vmatprep.subr.mxu0 0.0
      %3339 = vmatpush1.msra.mxu0 0.0
      %3340 = vmatprep.subr.mxu0 0.0
      %3341 = vmatpush1.msra.mxu0 0.0
      %3342 = vmatprep.subr.mxu0 0.0
      %3343 = vmatpush1.msra.mxu0 0.0
      %3344 = vmatprep.subr.mxu0 0.0
      %3345 = vmatpush1.msra.mxu0 0.0
      %3346 = vmatprep.subr.mxu0 0.0
      %3347 = vmatpush1.msra.mxu0 0.0
      %3348 = vmatprep.subr.mxu0 0.0
      %3349 = vmatpush1.msra.mxu0 0.0
      %3350 = vmatprep.subr.mxu0 0.0
      %3351 = vmatpush1.msra.mxu0 0.0
      %3352 = vmatprep.subr.mxu0 0.0
      %3353 = vmatpush1.msra.mxu0 0.0
      %3354 = vmatprep.subr.mxu0 0.0
      %3355 = vmatpush1.msra.mxu0 0.0
      %3356 = vmatprep.subr.mxu0 %v1212
      %3357 = vmatpush1.msra.mxu0 %v1209
      %3358 = vmatprep.subr.mxu0 0.0
      %3359 = vmatpush2.msra.mxu0 0.0
      %3360 = vmatprep.subr.mxu0 0.0
      %3361 = vmatpush2.msra.mxu0 0.0
      %3362 = vmatprep.subr.mxu0 0.0
      %3363 = vmatpush2.msra.mxu0 0.0
      %3364 = vmatprep.subr.mxu0 0.0
      %3365 = vmatpush2.msra.mxu0 0.0
      %3366 = vmatprep.subr.mxu0 0.0
      %3367 = vmatpush2.msra.mxu0 0.0
      %3368 = vmatprep.subr.mxu0 0.0
      %3369 = vmatpush2.msra.mxu0 0.0
      %3370 = vmatprep.subr.mxu0 0.0
      %3371 = vmatpush2.msra.mxu0 0.0
      %3372 = vmatprep.subr.mxu0 0.0
      %3373 = vmatpush2.msra.mxu0 0.0
      %3374 = vmatprep.subr.mxu0 0.0
      %3375 = vmatpush2.msra.mxu0 0.0
      %3376 = vmatprep.subr.mxu0 0.0
      %3377 = vmatpush2.msra.mxu0 0.0
      %3378 = vmatprep.subr.mxu0 0.0
      %3379 = vmatpush2.msra.mxu0 0.0
      %3380 = vmatprep.subr.mxu0 0.0
      %3381 = vmatpush2.msra.mxu0 0.0
      %3382 = vmatprep.subr.mxu0 0.0
      %3383 = vmatpush2.msra.mxu0 0.0
      %3384 = vmatprep.subr.mxu0 0.0
      %3385 = vmatpush2.msra.mxu0 0.0
      %3386 = vmatprep.subr.mxu0 0.0
      %3387 = vmatpush2.msra.mxu0 0.0
      %3388 = vmatprep.subr.mxu0 0.0
      %3389 = vmatpush2.msra.mxu0 0.0
      %3390 = vmatprep.mubr.f32.mxu0 0.0
      %3391 = vmatmul.mubr.f32.gmra.mxu0 %v3040
      %v3392 = vpop.f32.mrf.mxu0
      %v3393 = vadd.f32 0.0, %v3392
      %v3394 = vpop.f32.mrf.mxu0
      %v3395 = vadd.f32 0.0, %v3394
      %3396 = vdwg.mxu0
      %3397 = vmatprep.subr.mxu0 0.0
      %3398 = vmatpush1.msra.mxu0 0.0
      %3399 = vmatprep.subr.mxu0 0.0
      %3400 = vmatpush1.msra.mxu0 0.0
      %3401 = vmatprep.subr.mxu0 0.0
      %3402 = vmatpush1.msra.mxu0 0.0
      %3403 = vmatprep.subr.mxu0 0.0
      %3404 = vmatpush1.msra.mxu0 0.0
      %3405 = vmatprep.subr.mxu0 0.0
      %3406 = vmatpush1.msra.mxu0 0.0
      %3407 = vmatprep.subr.mxu0 0.0
      %3408 = vmatpush1.msra.mxu0 0.0
      %3409 = vmatprep.subr.mxu0 0.0
      %3410 = vmatpush1.msra.mxu0 0.0
      %3411 = vmatprep.subr.mxu0 0.0
      %3412 = vmatpush1.msra.mxu0 0.0
      %3413 = vmatprep.subr.mxu0 0.0
      %3414 = vmatpush1.msra.mxu0 0.0
      %3415 = vmatprep.subr.mxu0 0.0
      %3416 = vmatpush1.msra.mxu0 0.0
      %3417 = vmatprep.subr.mxu0 0.0
      %3418 = vmatpush1.msra.mxu0 0.0
      %3419 = vmatprep.subr.mxu0 0.0
      %3420 = vmatpush1.msra.mxu0 0.0
      %3421 = vmatprep.subr.mxu0 0.0
      %3422 = vmatpush1.msra.mxu0 0.0
      %3423 = vmatprep.subr.mxu0 0.0
      %3424 = vmatpush1.msra.mxu0 0.0
      %3425 = vmatprep.subr.mxu0 0.0
      %3426 = vmatpush1.msra.mxu0 0.0
      %3427 = vmatprep.subr.mxu0 %v1218
      %3428 = vmatpush1.msra.mxu0 %v1215
      %3429 = vmatprep.subr.mxu0 0.0
      %3430 = vmatpush2.msra.mxu0 0.0
      %3431 = vmatprep.subr.mxu0 0.0
      %3432 = vmatpush2.msra.mxu0 0.0
      %3433 = vmatprep.subr.mxu0 0.0
      %3434 = vmatpush2.msra.mxu0 0.0
      %3435 = vmatprep.subr.mxu0 0.0
      %3436 = vmatpush2.msra.mxu0 0.0
      %3437 = vmatprep.subr.mxu0 0.0
      %3438 = vmatpush2.msra.mxu0 0.0
      %3439 = vmatprep.subr.mxu0 0.0
      %3440 = vmatpush2.msra.mxu0 0.0
      %3441 = vmatprep.subr.mxu0 0.0
      %3442 = vmatpush2.msra.mxu0 0.0
      %3443 = vmatprep.subr.mxu0 0.0
      %3444 = vmatpush2.msra.mxu0 0.0
      %3445 = vmatprep.subr.mxu0 0.0
      %3446 = vmatpush2.msra.mxu0 0.0
      %3447 = vmatprep.subr.mxu0 0.0
      %3448 = vmatpush2.msra.mxu0 0.0
      %3449 = vmatprep.subr.mxu0 0.0
      %3450 = vmatpush2.msra.mxu0 0.0
      %3451 = vmatprep.subr.mxu0 0.0
      %3452 = vmatpush2.msra.mxu0 0.0
      %3453 = vmatprep.subr.mxu0 0.0
      %3454 = vmatpush2.msra.mxu0 0.0
      %3455 = vmatprep.subr.mxu0 0.0
      %3456 = vmatpush2.msra.mxu0 0.0
      %3457 = vmatprep.subr.mxu0 0.0
      %3458 = vmatpush2.msra.mxu0 0.0
      %3459 = vmatprep.subr.mxu0 0.0
      %3460 = vmatpush2.msra.mxu0 0.0
      %3461 = vmatprep.mubr.f32.mxu0 0.0
      %3462 = vmatmul.mubr.f32.gmra.mxu0 %v3040
      %v3463 = vpop.f32.mrf.mxu0
      %v3464 = vadd.f32 0.0, %v3463
      %v3465 = vpop.f32.mrf.mxu0
      %v3466 = vadd.f32 0.0, %v3465
      %3467 = vdwg.mxu0
      %3468 = vmatprep.subr.mxu0 0.0
      %3469 = vmatpush1.msra.mxu0 0.0
      %3470 = vmatprep.subr.mxu0 0.0
      %3471 = vmatpush1.msra.mxu0 0.0
      %3472 = vmatprep.subr.mxu0 0.0
      %3473 = vmatpush1.msra.mxu0 0.0
      %3474 = vmatprep.subr.mxu0 0.0
      %3475 = vmatpush1.msra.mxu0 0.0
      %3476 = vmatprep.subr.mxu0 0.0
      %3477 = vmatpush1.msra.mxu0 0.0
      %3478 = vmatprep.subr.mxu0 0.0
      %3479 = vmatpush1.msra.mxu0 0.0
      %3480 = vmatprep.subr.mxu0 0.0
      %3481 = vmatpush1.msra.mxu0 0.0
      %3482 = vmatprep.subr.mxu0 0.0
      %3483 = vmatpush1.msra.mxu0 0.0
      %3484 = vmatprep.subr.mxu0 0.0
      %3485 = vmatpush1.msra.mxu0 0.0
      %3486 = vmatprep.subr.mxu0 0.0
      %3487 = vmatpush1.msra.mxu0 0.0
      %3488 = vmatprep.subr.mxu0 0.0
      %3489 = vmatpush1.msra.mxu0 0.0
      %3490 = vmatprep.subr.mxu0 0.0
      %3491 = vmatpush1.msra.mxu0 0.0
      %3492 = vmatprep.subr.mxu0 0.0
      %3493 = vmatpush1.msra.mxu0 0.0
      %3494 = vmatprep.subr.mxu0 0.0
      %3495 = vmatpush1.msra.mxu0 0.0
      %3496 = vmatprep.subr.mxu0 0.0
      %3497 = vmatpush1.msra.mxu0 0.0
      %3498 = vmatprep.subr.mxu0 %v1224
      %3499 = vmatpush1.msra.mxu0 %v1221
      %3500 = vmatprep.subr.mxu0 0.0
      %3501 = vmatpush2.msra.mxu0 0.0
      %3502 = vmatprep.subr.mxu0 0.0
      %3503 = vmatpush2.msra.mxu0 0.0
      %3504 = vmatprep.subr.mxu0 0.0
      %3505 = vmatpush2.msra.mxu0 0.0
      %3506 = vmatprep.subr.mxu0 0.0
      %3507 = vmatpush2.msra.mxu0 0.0
      %3508 = vmatprep.subr.mxu0 0.0
      %3509 = vmatpush2.msra.mxu0 0.0
      %3510 = vmatprep.subr.mxu0 0.0
      %3511 = vmatpush2.msra.mxu0 0.0
      %3512 = vmatprep.subr.mxu0 0.0
      %3513 = vmatpush2.msra.mxu0 0.0
      %3514 = vmatprep.subr.mxu0 0.0
      %3515 = vmatpush2.msra.mxu0 0.0
      %3516 = vmatprep.subr.mxu0 0.0
      %3517 = vmatpush2.msra.mxu0 0.0
      %3518 = vmatprep.subr.mxu0 0.0
      %3519 = vmatpush2.msra.mxu0 0.0
      %3520 = vmatprep.subr.mxu0 0.0
      %3521 = vmatpush2.msra.mxu0 0.0
      %3522 = vmatprep.subr.mxu0 0.0
      %3523 = vmatpush2.msra.mxu0 0.0
      %3524 = vmatprep.subr.mxu0 0.0
      %3525 = vmatpush2.msra.mxu0 0.0
      %3526 = vmatprep.subr.mxu0 0.0
      %3527 = vmatpush2.msra.mxu0 0.0
      %3528 = vmatprep.subr.mxu0 0.0
      %3529 = vmatpush2.msra.mxu0 0.0
      %3530 = vmatprep.subr.mxu0 0.0
      %3531 = vmatpush2.msra.mxu0 0.0
      %3532 = vmatprep.mubr.f32.mxu0 0.0
      %3533 = vmatmul.mubr.f32.gmra.mxu0 %v3040
      %v3534 = vpop.f32.mrf.mxu0
      %v3535 = vadd.f32 0.0, %v3534
      %v3536 = vpop.f32.mrf.mxu0
      %v3537 = vadd.f32 0.0, %v3536
      %3538 = vdwg.mxu0
      %3539 = vmatprep.subr.mxu0 0.0
      %3540 = vmatpush1.msra.mxu0 0.0
      %3541 = vmatprep.subr.mxu0 0.0
      %3542 = vmatpush1.msra.mxu0 0.0
      %3543 = vmatprep.subr.mxu0 0.0
      %3544 = vmatpush1.msra.mxu0 0.0
      %3545 = vmatprep.subr.mxu0 0.0
      %3546 = vmatpush1.msra.mxu0 0.0
      %3547 = vmatprep.subr.mxu0 0.0
      %3548 = vmatpush1.msra.mxu0 0.0
      %3549 = vmatprep.subr.mxu0 0.0
      %3550 = vmatpush1.msra.mxu0 0.0
      %3551 = vmatprep.subr.mxu0 0.0
      %3552 = vmatpush1.msra.mxu0 0.0
      %3553 = vmatprep.subr.mxu0 0.0
      %3554 = vmatpush1.msra.mxu0 0.0
      %3555 = vmatprep.subr.mxu0 0.0
      %3556 = vmatpush1.msra.mxu0 0.0
      %3557 = vmatprep.subr.mxu0 0.0
      %3558 = vmatpush1.msra.mxu0 0.0
      %3559 = vmatprep.subr.mxu0 0.0
      %3560 = vmatpush1.msra.mxu0 0.0
      %3561 = vmatprep.subr.mxu0 0.0
      %3562 = vmatpush1.msra.mxu0 0.0
      %3563 = vmatprep.subr.mxu0 0.0
      %3564 = vmatpush1.msra.mxu0 0.0
      %3565 = vmatprep.subr.mxu0 0.0
      %3566 = vmatpush1.msra.mxu0 0.0
      %3567 = vmatprep.subr.mxu0 0.0
      %3568 = vmatpush1.msra.mxu0 0.0
      %3569 = vmatprep.subr.mxu0 %v1230
      %3570 = vmatpush1.msra.mxu0 %v1227
      %3571 = vmatprep.subr.mxu0 0.0
      %3572 = vmatpush2.msra.mxu0 0.0
      %3573 = vmatprep.subr.mxu0 0.0
      %3574 = vmatpush2.msra.mxu0 0.0
      %3575 = vmatprep.subr.mxu0 0.0
      %3576 = vmatpush2.msra.mxu0 0.0
      %3577 = vmatprep.subr.mxu0 0.0
      %3578 = vmatpush2.msra.mxu0 0.0
      %3579 = vmatprep.subr.mxu0 0.0
      %3580 = vmatpush2.msra.mxu0 0.0
      %3581 = vmatprep.subr.mxu0 0.0
      %3582 = vmatpush2.msra.mxu0 0.0
      %3583 = vmatprep.subr.mxu0 0.0
      %3584 = vmatpush2.msra.mxu0 0.0
      %3585 = vmatprep.subr.mxu0 0.0
      %3586 = vmatpush2.msra.mxu0 0.0
      %3587 = vmatprep.subr.mxu0 0.0
      %3588 = vmatpush2.msra.mxu0 0.0
      %3589 = vmatprep.subr.mxu0 0.0
      %3590 = vmatpush2.msra.mxu0 0.0
      %3591 = vmatprep.subr.mxu0 0.0
      %3592 = vmatpush2.msra.mxu0 0.0
      %3593 = vmatprep.subr.mxu0 0.0
      %3594 = vmatpush2.msra.mxu0 0.0
      %3595 = vmatprep.subr.mxu0 0.0
      %3596 = vmatpush2.msra.mxu0 0.0
      %3597 = vmatprep.subr.mxu0 0.0
      %3598 = vmatpush2.msra.mxu0 0.0
      %3599 = vmatprep.subr.mxu0 0.0
      %3600 = vmatpush2.msra.mxu0 0.0
      %3601 = vmatprep.subr.mxu0 0.0
      %3602 = vmatpush2.msra.mxu0 0.0
      %3603 = vmatprep.mubr.f32.mxu0 0.0
      %3604 = vmatmul.mubr.f32.gmra.mxu0 %v3040
      %v3605 = vpop.f32.mrf.mxu0
      %v3606 = vadd.f32 0.0, %v3605
      %v3607 = vpop.f32.mrf.mxu0
      %v3608 = vadd.f32 0.0, %v3607
      %3609 = vdwg.mxu0
      %3610 = vmatprep.subr.mxu0 0.0
      %3611 = vmatpush1.msra.mxu0 0.0
      %3612 = vmatprep.subr.mxu0 0.0
      %3613 = vmatpush1.msra.mxu0 0.0
      %3614 = vmatprep.subr.mxu0 0.0
      %3615 = vmatpush1.msra.mxu0 0.0
      %3616 = vmatprep.subr.mxu0 0.0
      %3617 = vmatpush1.msra.mxu0 0.0
      %3618 = vmatprep.subr.mxu0 0.0
      %3619 = vmatpush1.msra.mxu0 0.0
      %3620 = vmatprep.subr.mxu0 0.0
      %3621 = vmatpush1.msra.mxu0 0.0
      %3622 = vmatprep.subr.mxu0 0.0
      %3623 = vmatpush1.msra.mxu0 0.0
      %3624 = vmatprep.subr.mxu0 0.0
      %3625 = vmatpush1.msra.mxu0 0.0
      %3626 = vmatprep.subr.mxu0 0.0
      %3627 = vmatpush1.msra.mxu0 0.0
      %3628 = vmatprep.subr.mxu0 0.0
      %3629 = vmatpush1.msra.mxu0 0.0
      %3630 = vmatprep.subr.mxu0 0.0
      %3631 = vmatpush1.msra.mxu0 0.0
      %3632 = vmatprep.subr.mxu0 0.0
      %3633 = vmatpush1.msra.mxu0 0.0
      %3634 = vmatprep.subr.mxu0 0.0
      %3635 = vmatpush1.msra.mxu0 0.0
      %3636 = vmatprep.subr.mxu0 0.0
      %3637 = vmatpush1.msra.mxu0 0.0
      %3638 = vmatprep.subr.mxu0 0.0
      %3639 = vmatpush1.msra.mxu0 0.0
      %3640 = vmatprep.subr.mxu0 %v1236
      %3641 = vmatpush1.msra.mxu0 %v1233
      %3642 = vmatprep.subr.mxu0 0.0
      %3643 = vmatpush2.msra.mxu0 0.0
      %3644 = vmatprep.subr.mxu0 0.0
      %3645 = vmatpush2.msra.mxu0 0.0
      %3646 = vmatprep.subr.mxu0 0.0
      %3647 = vmatpush2.msra.mxu0 0.0
      %3648 = vmatprep.subr.mxu0 0.0
      %3649 = vmatpush2.msra.mxu0 0.0
      %3650 = vmatprep.subr.mxu0 0.0
      %3651 = vmatpush2.msra.mxu0 0.0
      %3652 = vmatprep.subr.mxu0 0.0
      %3653 = vmatpush2.msra.mxu0 0.0
      %3654 = vmatprep.subr.mxu0 0.0
      %3655 = vmatpush2.msra.mxu0 0.0
      %3656 = vmatprep.subr.mxu0 0.0
      %3657 = vmatpush2.msra.mxu0 0.0
      %3658 = vmatprep.subr.mxu0 0.0
      %3659 = vmatpush2.msra.mxu0 0.0
      %3660 = vmatprep.subr.mxu0 0.0
      %3661 = vmatpush2.msra.mxu0 0.0
      %3662 = vmatprep.subr.mxu0 0.0
      %3663 = vmatpush2.msra.mxu0 0.0
      %3664 = vmatprep.subr.mxu0 0.0
      %3665 = vmatpush2.msra.mxu0 0.0
      %3666 = vmatprep.subr.mxu0 0.0
      %3667 = vmatpush2.msra.mxu0 0.0
      %3668 = vmatprep.subr.mxu0 0.0
      %3669 = vmatpush2.msra.mxu0 0.0
      %3670 = vmatprep.subr.mxu0 0.0
      %3671 = vmatpush2.msra.mxu0 0.0
      %3672 = vmatprep.subr.mxu0 0.0
      %3673 = vmatpush2.msra.mxu0 0.0
      %3674 = vmatprep.mubr.f32.mxu0 0.0
      %3675 = vmatmul.mubr.f32.gmra.mxu0 %v3040
      %v3676 = vpop.f32.mrf.mxu0
      %v3677 = vadd.f32 0.0, %v3676
      %v3678 = vpop.f32.mrf.mxu0
      %v3679 = vadd.f32 0.0, %v3678
      %3680 = vdwg.mxu0
      %3681 = vmatprep.subr.mxu0 0.0
      %3682 = vmatpush1.msra.mxu0 0.0
      %3683 = vmatprep.subr.mxu0 0.0
      %3684 = vmatpush1.msra.mxu0 0.0
      %3685 = vmatprep.subr.mxu0 0.0
      %3686 = vmatpush1.msra.mxu0 0.0
      %3687 = vmatprep.subr.mxu0 0.0
      %3688 = vmatpush1.msra.mxu0 0.0
      %3689 = vmatprep.subr.mxu0 0.0
      %3690 = vmatpush1.msra.mxu0 0.0
      %3691 = vmatprep.subr.mxu0 0.0
      %3692 = vmatpush1.msra.mxu0 0.0
      %3693 = vmatprep.subr.mxu0 0.0
      %3694 = vmatpush1.msra.mxu0 0.0
      %3695 = vmatprep.subr.mxu0 0.0
      %3696 = vmatpush1.msra.mxu0 0.0
      %3697 = vmatprep.subr.mxu0 0.0
      %3698 = vmatpush1.msra.mxu0 0.0
      %3699 = vmatprep.subr.mxu0 0.0
      %3700 = vmatpush1.msra.mxu0 0.0
      %3701 = vmatprep.subr.mxu0 0.0
      %3702 = vmatpush1.msra.mxu0 0.0
      %3703 = vmatprep.subr.mxu0 0.0
      %3704 = vmatpush1.msra.mxu0 0.0
      %3705 = vmatprep.subr.mxu0 0.0
      %3706 = vmatpush1.msra.mxu0 0.0
      %3707 = vmatprep.subr.mxu0 0.0
      %3708 = vmatpush1.msra.mxu0 0.0
      %3709 = vmatprep.subr.mxu0 0.0
      %3710 = vmatpush1.msra.mxu0 0.0
      %3711 = vmatprep.subr.mxu0 %v1242
      %3712 = vmatpush1.msra.mxu0 %v1239
      %3713 = vmatprep.subr.mxu0 0.0
      %3714 = vmatpush2.msra.mxu0 0.0
      %3715 = vmatprep.subr.mxu0 0.0
      %3716 = vmatpush2.msra.mxu0 0.0
      %3717 = vmatprep.subr.mxu0 0.0
      %3718 = vmatpush2.msra.mxu0 0.0
      %3719 = vmatprep.subr.mxu0 0.0
      %3720 = vmatpush2.msra.mxu0 0.0
      %3721 = vmatprep.subr.mxu0 0.0
      %3722 = vmatpush2.msra.mxu0 0.0
      %3723 = vmatprep.subr.mxu0 0.0
      %3724 = vmatpush2.msra.mxu0 0.0
      %3725 = vmatprep.subr.mxu0 0.0
      %3726 = vmatpush2.msra.mxu0 0.0
      %3727 = vmatprep.subr.mxu0 0.0
      %3728 = vmatpush2.msra.mxu0 0.0
      %3729 = vmatprep.subr.mxu0 0.0
      %3730 = vmatpush2.msra.mxu0 0.0
      %3731 = vmatprep.subr.mxu0 0.0
      %3732 = vmatpush2.msra.mxu0 0.0
      %3733 = vmatprep.subr.mxu0 0.0
      %3734 = vmatpush2.msra.mxu0 0.0
      %3735 = vmatprep.subr.mxu0 0.0
      %3736 = vmatpush2.msra.mxu0 0.0
      %3737 = vmatprep.subr.mxu0 0.0
      %3738 = vmatpush2.msra.mxu0 0.0
      %3739 = vmatprep.subr.mxu0 0.0
      %3740 = vmatpush2.msra.mxu0 0.0
      %3741 = vmatprep.subr.mxu0 0.0
      %3742 = vmatpush2.msra.mxu0 0.0
      %3743 = vmatprep.subr.mxu0 0.0
      %3744 = vmatpush2.msra.mxu0 0.0
      %3745 = vmatprep.mubr.f32.mxu0 0.0
      %3746 = vmatmul.mubr.f32.gmra.mxu0 %v3040
      %v3747 = vpop.f32.mrf.mxu0
      %v3748 = vadd.f32 0.0, %v3747
      %v3749 = vpop.f32.mrf.mxu0
      %v3750 = vadd.f32 0.0, %v3749
      %3751 = vdwg.mxu0
      %3752 = vmatprep.subr.mxu0 0.0
      %3753 = vmatpush1.msra.mxu0 0.0
      %3754 = vmatprep.subr.mxu0 0.0
      %3755 = vmatpush1.msra.mxu0 0.0
      %3756 = vmatprep.subr.mxu0 0.0
      %3757 = vmatpush1.msra.mxu0 0.0
      %3758 = vmatprep.subr.mxu0 0.0
      %3759 = vmatpush1.msra.mxu0 0.0
      %3760 = vmatprep.subr.mxu0 0.0
      %3761 = vmatpush1.msra.mxu0 0.0
      %3762 = vmatprep.subr.mxu0 0.0
      %3763 = vmatpush1.msra.mxu0 0.0
      %3764 = vmatprep.subr.mxu0 0.0
      %3765 = vmatpush1.msra.mxu0 0.0
      %3766 = vmatprep.subr.mxu0 0.0
      %3767 = vmatpush1.msra.mxu0 0.0
      %3768 = vmatprep.subr.mxu0 0.0
      %3769 = vmatpush1.msra.mxu0 0.0
      %3770 = vmatprep.subr.mxu0 0.0
      %3771 = vmatpush1.msra.mxu0 0.0
      %3772 = vmatprep.subr.mxu0 0.0
      %3773 = vmatpush1.msra.mxu0 0.0
      %3774 = vmatprep.subr.mxu0 0.0
      %3775 = vmatpush1.msra.mxu0 0.0
      %3776 = vmatprep.subr.mxu0 0.0
      %3777 = vmatpush1.msra.mxu0 0.0
      %3778 = vmatprep.subr.mxu0 0.0
      %3779 = vmatpush1.msra.mxu0 0.0
      %3780 = vmatprep.subr.mxu0 0.0
      %3781 = vmatpush1.msra.mxu0 0.0
      %3782 = vmatprep.subr.mxu0 %v1248
      %3783 = vmatpush1.msra.mxu0 %v1245
      %3784 = vmatprep.subr.mxu0 0.0
      %3785 = vmatpush2.msra.mxu0 0.0
      %3786 = vmatprep.subr.mxu0 0.0
      %3787 = vmatpush2.msra.mxu0 0.0
      %3788 = vmatprep.subr.mxu0 0.0
      %3789 = vmatpush2.msra.mxu0 0.0
      %3790 = vmatprep.subr.mxu0 0.0
      %3791 = vmatpush2.msra.mxu0 0.0
      %3792 = vmatprep.subr.mxu0 0.0
      %3793 = vmatpush2.msra.mxu0 0.0
      %3794 = vmatprep.subr.mxu0 0.0
      %3795 = vmatpush2.msra.mxu0 0.0
      %3796 = vmatprep.subr.mxu0 0.0
      %3797 = vmatpush2.msra.mxu0 0.0
      %3798 = vmatprep.subr.mxu0 0.0
      %3799 = vmatpush2.msra.mxu0 0.0
      %3800 = vmatprep.subr.mxu0 0.0
      %3801 = vmatpush2.msra.mxu0 0.0
      %3802 = vmatprep.subr.mxu0 0.0
      %3803 = vmatpush2.msra.mxu0 0.0
      %3804 = vmatprep.subr.mxu0 0.0
      %3805 = vmatpush2.msra.mxu0 0.0
      %3806 = vmatprep.subr.mxu0 0.0
      %3807 = vmatpush2.msra.mxu0 0.0
      %3808 = vmatprep.subr.mxu0 0.0
      %3809 = vmatpush2.msra.mxu0 0.0
      %3810 = vmatprep.subr.mxu0 0.0
      %3811 = vmatpush2.msra.mxu0 0.0
      %3812 = vmatprep.subr.mxu0 0.0
      %3813 = vmatpush2.msra.mxu0 0.0
      %3814 = vmatprep.subr.mxu0 0.0
      %3815 = vmatpush2.msra.mxu0 0.0
      %3816 = vmatprep.mubr.f32.mxu0 0.0
      %3817 = vmatmul.mubr.f32.gmra.mxu0 %v3040
      %v3818 = vpop.f32.mrf.mxu0
      %v3819 = vadd.f32 0.0, %v3818
      %v3820 = vpop.f32.mrf.mxu0
      %v3821 = vadd.f32 0.0, %v3820
      %3822 = vdwg.mxu0
      %3823 = vmatprep.subr.mxu0 0.0
      %3824 = vmatpush1.msra.mxu0 0.0
      %3825 = vmatprep.subr.mxu0 0.0
      %3826 = vmatpush1.msra.mxu0 0.0
      %3827 = vmatprep.subr.mxu0 0.0
      %3828 = vmatpush1.msra.mxu0 0.0
      %3829 = vmatprep.subr.mxu0 0.0
      %3830 = vmatpush1.msra.mxu0 0.0
      %3831 = vmatprep.subr.mxu0 0.0
      %3832 = vmatpush1.msra.mxu0 0.0
      %3833 = vmatprep.subr.mxu0 0.0
      %3834 = vmatpush1.msra.mxu0 0.0
      %3835 = vmatprep.subr.mxu0 0.0
      %3836 = vmatpush1.msra.mxu0 0.0
      %3837 = vmatprep.subr.mxu0 0.0
      %3838 = vmatpush1.msra.mxu0 0.0
      %3839 = vmatprep.subr.mxu0 0.0
      %3840 = vmatpush1.msra.mxu0 0.0
      %3841 = vmatprep.subr.mxu0 0.0
      %3842 = vmatpush1.msra.mxu0 0.0
      %3843 = vmatprep.subr.mxu0 0.0
      %3844 = vmatpush1.msra.mxu0 0.0
      %3845 = vmatprep.subr.mxu0 0.0
      %3846 = vmatpush1.msra.mxu0 0.0
      %3847 = vmatprep.subr.mxu0 0.0
      %3848 = vmatpush1.msra.mxu0 0.0
      %3849 = vmatprep.subr.mxu0 0.0
      %3850 = vmatpush1.msra.mxu0 0.0
      %3851 = vmatprep.subr.mxu0 0.0
      %3852 = vmatpush1.msra.mxu0 0.0
      %3853 = vmatprep.subr.mxu0 %v1254
      %3854 = vmatpush1.msra.mxu0 %v1251
      %3855 = vmatprep.subr.mxu0 0.0
      %3856 = vmatpush2.msra.mxu0 0.0
      %3857 = vmatprep.subr.mxu0 0.0
      %3858 = vmatpush2.msra.mxu0 0.0
      %3859 = vmatprep.subr.mxu0 0.0
      %3860 = vmatpush2.msra.mxu0 0.0
      %3861 = vmatprep.subr.mxu0 0.0
      %3862 = vmatpush2.msra.mxu0 0.0
      %3863 = vmatprep.subr.mxu0 0.0
      %3864 = vmatpush2.msra.mxu0 0.0
      %3865 = vmatprep.subr.mxu0 0.0
      %3866 = vmatpush2.msra.mxu0 0.0
      %3867 = vmatprep.subr.mxu0 0.0
      %3868 = vmatpush2.msra.mxu0 0.0
      %3869 = vmatprep.subr.mxu0 0.0
      %3870 = vmatpush2.msra.mxu0 0.0
      %3871 = vmatprep.subr.mxu0 0.0
      %3872 = vmatpush2.msra.mxu0 0.0
      %3873 = vmatprep.subr.mxu0 0.0
      %3874 = vmatpush2.msra.mxu0 0.0
      %3875 = vmatprep.subr.mxu0 0.0
      %3876 = vmatpush2.msra.mxu0 0.0
      %3877 = vmatprep.subr.mxu0 0.0
      %3878 = vmatpush2.msra.mxu0 0.0
      %3879 = vmatprep.subr.mxu0 0.0
      %3880 = vmatpush2.msra.mxu0 0.0
      %3881 = vmatprep.subr.mxu0 0.0
      %3882 = vmatpush2.msra.mxu0 0.0
      %3883 = vmatprep.subr.mxu0 0.0
      %3884 = vmatpush2.msra.mxu0 0.0
      %3885 = vmatprep.subr.mxu0 0.0
      %3886 = vmatpush2.msra.mxu0 0.0
      %3887 = vmatprep.mubr.f32.mxu0 0.0
      %3888 = vmatmul.mubr.f32.gmra.mxu0 %v3040
      %v3889 = vpop.f32.mrf.mxu0
      %v3890 = vadd.f32 0.0, %v3889
      %v3891 = vpop.f32.mrf.mxu0
      %v3892 = vadd.f32 0.0, %v3891
      %3893 = vdwg.mxu0
      %v3895 = vsel %vm1179, %v3036, 0
      %3897 = vmatprep.subr.mxu0 0.0
      %3898 = vmatpush1.msra.mxu0 0.0
      %3899 = vmatprep.subr.mxu0 0.0
      %3900 = vmatpush1.msra.mxu0 0.0
      %3901 = vmatprep.subr.mxu0 0.0
      %3902 = vmatpush1.msra.mxu0 0.0
      %3903 = vmatprep.subr.mxu0 0.0
      %3904 = vmatpush1.msra.mxu0 0.0
      %3905 = vmatprep.subr.mxu0 0.0
      %3906 = vmatpush1.msra.mxu0 0.0
      %3907 = vmatprep.subr.mxu0 0.0
      %3908 = vmatpush1.msra.mxu0 0.0
      %3909 = vmatprep.subr.mxu0 0.0
      %3910 = vmatpush1.msra.mxu0 0.0
      %3911 = vmatprep.subr.mxu0 0.0
      %3912 = vmatpush1.msra.mxu0 0.0
      %3913 = vmatprep.subr.mxu0 0.0
      %3914 = vmatpush1.msra.mxu0 0.0
      %3915 = vmatprep.subr.mxu0 0.0
      %3916 = vmatpush1.msra.mxu0 0.0
      %3917 = vmatprep.subr.mxu0 0.0
      %3918 = vmatpush1.msra.mxu0 0.0
      %3919 = vmatprep.subr.mxu0 0.0
      %3920 = vmatpush1.msra.mxu0 0.0
      %3921 = vmatprep.subr.mxu0 0.0
      %3922 = vmatpush1.msra.mxu0 0.0
      %3923 = vmatprep.subr.mxu0 0.0
      %3924 = vmatpush1.msra.mxu0 0.0
      %3925 = vmatprep.subr.mxu0 0.0
      %3926 = vmatpush1.msra.mxu0 0.0
      %3927 = vmatprep.subr.mxu0 %v2115
      %3928 = vmatpush1.msra.mxu0 %v2112
      %3929 = vmatprep.subr.mxu0 0.0
      %3930 = vmatpush2.msra.mxu0 0.0
      %3931 = vmatprep.subr.mxu0 0.0
      %3932 = vmatpush2.msra.mxu0 0.0
      %3933 = vmatprep.subr.mxu0 0.0
      %3934 = vmatpush2.msra.mxu0 0.0
      %3935 = vmatprep.subr.mxu0 0.0
      %3936 = vmatpush2.msra.mxu0 0.0
      %3937 = vmatprep.subr.mxu0 0.0
      %3938 = vmatpush2.msra.mxu0 0.0
      %3939 = vmatprep.subr.mxu0 0.0
      %3940 = vmatpush2.msra.mxu0 0.0
      %3941 = vmatprep.subr.mxu0 0.0
      %3942 = vmatpush2.msra.mxu0 0.0
      %3943 = vmatprep.subr.mxu0 0.0
      %3944 = vmatpush2.msra.mxu0 0.0
      %3945 = vmatprep.subr.mxu0 0.0
      %3946 = vmatpush2.msra.mxu0 0.0
      %3947 = vmatprep.subr.mxu0 0.0
      %3948 = vmatpush2.msra.mxu0 0.0
      %3949 = vmatprep.subr.mxu0 0.0
      %3950 = vmatpush2.msra.mxu0 0.0
      %3951 = vmatprep.subr.mxu0 0.0
      %3952 = vmatpush2.msra.mxu0 0.0
      %3953 = vmatprep.subr.mxu0 0.0
      %3954 = vmatpush2.msra.mxu0 0.0
      %3955 = vmatprep.subr.mxu0 0.0
      %3956 = vmatpush2.msra.mxu0 0.0
      %3957 = vmatprep.subr.mxu0 0.0
      %3958 = vmatpush2.msra.mxu0 0.0
      %3959 = vmatprep.subr.mxu0 0.0
      %3960 = vmatpush2.msra.mxu0 0.0
      %3961 = vmatprep.mubr.f32.mxu0 0.0
      %3962 = vmatmul.mubr.f32.gmra.mxu0 %v3895
      %v3963 = vpop.f32.mrf.mxu0
      %v3964 = vadd.f32 %v3109, %v3963
      %v3965 = vpop.f32.mrf.mxu0
      %v3966 = vadd.f32 %v3111, %v3965
      %3967 = vdwg.mxu0
      %3968 = vmatprep.subr.mxu0 0.0
      %3969 = vmatpush1.msra.mxu0 0.0
      %3970 = vmatprep.subr.mxu0 0.0
      %3971 = vmatpush1.msra.mxu0 0.0
      %3972 = vmatprep.subr.mxu0 0.0
      %3973 = vmatpush1.msra.mxu0 0.0
      %3974 = vmatprep.subr.mxu0 0.0
      %3975 = vmatpush1.msra.mxu0 0.0
      %3976 = vmatprep.subr.mxu0 0.0
      %3977 = vmatpush1.msra.mxu0 0.0
      %3978 = vmatprep.subr.mxu0 0.0
      %3979 = vmatpush1.msra.mxu0 0.0
      %3980 = vmatprep.subr.mxu0 0.0
      %3981 = vmatpush1.msra.mxu0 0.0
      %3982 = vmatprep.subr.mxu0 0.0
      %3983 = vmatpush1.msra.mxu0 0.0
      %3984 = vmatprep.subr.mxu0 0.0
      %3985 = vmatpush1.msra.mxu0 0.0
      %3986 = vmatprep.subr.mxu0 0.0
      %3987 = vmatpush1.msra.mxu0 0.0
      %3988 = vmatprep.subr.mxu0 0.0
      %3989 = vmatpush1.msra.mxu0 0.0
      %3990 = vmatprep.subr.mxu0 0.0
      %3991 = vmatpush1.msra.mxu0 0.0
      %3992 = vmatprep.subr.mxu0 0.0
      %3993 = vmatpush1.msra.mxu0 0.0
      %3994 = vmatprep.subr.mxu0 0.0
      %3995 = vmatpush1.msra.mxu0 0.0
      %3996 = vmatprep.subr.mxu0 0.0
      %3997 = vmatpush1.msra.mxu0 0.0
      %3998 = vmatprep.subr.mxu0 %v2121
      %3999 = vmatpush1.msra.mxu0 %v2118
      %4000 = vmatprep.subr.mxu0 0.0
      %4001 = vmatpush2.msra.mxu0 0.0
      %4002 = vmatprep.subr.mxu0 0.0
      %4003 = vmatpush2.msra.mxu0 0.0
      %4004 = vmatprep.subr.mxu0 0.0
      %4005 = vmatpush2.msra.mxu0 0.0
      %4006 = vmatprep.subr.mxu0 0.0
      %4007 = vmatpush2.msra.mxu0 0.0
      %4008 = vmatprep.subr.mxu0 0.0
      %4009 = vmatpush2.msra.mxu0 0.0
      %4010 = vmatprep.subr.mxu0 0.0
      %4011 = vmatpush2.msra.mxu0 0.0
      %4012 = vmatprep.subr.mxu0 0.0
      %4013 = vmatpush2.msra.mxu0 0.0
      %4014 = vmatprep.subr.mxu0 0.0
      %4015 = vmatpush2.msra.mxu0 0.0
      %4016 = vmatprep.subr.mxu0 0.0
      %4017 = vmatpush2.msra.mxu0 0.0
      %4018 = vmatprep.subr.mxu0 0.0
      %4019 = vmatpush2.msra.mxu0 0.0
      %4020 = vmatprep.subr.mxu0 0.0
      %4021 = vmatpush2.msra.mxu0 0.0
      %4022 = vmatprep.subr.mxu0 0.0
      %4023 = vmatpush2.msra.mxu0 0.0
      %4024 = vmatprep.subr.mxu0 0.0
      %4025 = vmatpush2.msra.mxu0 0.0
      %4026 = vmatprep.subr.mxu0 0.0
      %4027 = vmatpush2.msra.mxu0 0.0
      %4028 = vmatprep.subr.mxu0 0.0
      %4029 = vmatpush2.msra.mxu0 0.0
      %4030 = vmatprep.subr.mxu0 0.0
      %4031 = vmatpush2.msra.mxu0 0.0
      %4032 = vmatprep.mubr.f32.mxu0 0.0
      %4033 = vmatmul.mubr.f32.gmra.mxu0 %v3895
      %v4034 = vpop.f32.mrf.mxu0
      %v4035 = vadd.f32 %v3180, %v4034
      %v4036 = vpop.f32.mrf.mxu0
      %v4037 = vadd.f32 %v3182, %v4036
      %4038 = vdwg.mxu0
      %4039 = vmatprep.subr.mxu0 0.0
      %4040 = vmatpush1.msra.mxu0 0.0
      %4041 = vmatprep.subr.mxu0 0.0
      %4042 = vmatpush1.msra.mxu0 0.0
      %4043 = vmatprep.subr.mxu0 0.0
      %4044 = vmatpush1.msra.mxu0 0.0
      %4045 = vmatprep.subr.mxu0 0.0
      %4046 = vmatpush1.msra.mxu0 0.0
      %4047 = vmatprep.subr.mxu0 0.0
      %4048 = vmatpush1.msra.mxu0 0.0
      %4049 = vmatprep.subr.mxu0 0.0
      %4050 = vmatpush1.msra.mxu0 0.0
      %4051 = vmatprep.subr.mxu0 0.0
      %4052 = vmatpush1.msra.mxu0 0.0
      %4053 = vmatprep.subr.mxu0 0.0
      %4054 = vmatpush1.msra.mxu0 0.0
      %4055 = vmatprep.subr.mxu0 0.0
      %4056 = vmatpush1.msra.mxu0 0.0
      %4057 = vmatprep.subr.mxu0 0.0
      %4058 = vmatpush1.msra.mxu0 0.0
      %4059 = vmatprep.subr.mxu0 0.0
      %4060 = vmatpush1.msra.mxu0 0.0
      %4061 = vmatprep.subr.mxu0 0.0
      %4062 = vmatpush1.msra.mxu0 0.0
      %4063 = vmatprep.subr.mxu0 0.0
      %4064 = vmatpush1.msra.mxu0 0.0
      %4065 = vmatprep.subr.mxu0 0.0
      %4066 = vmatpush1.msra.mxu0 0.0
      %4067 = vmatprep.subr.mxu0 0.0
      %4068 = vmatpush1.msra.mxu0 0.0
      %4069 = vmatprep.subr.mxu0 %v2127
      %4070 = vmatpush1.msra.mxu0 %v2124
      %4071 = vmatprep.subr.mxu0 0.0
      %4072 = vmatpush2.msra.mxu0 0.0
      %4073 = vmatprep.subr.mxu0 0.0
      %4074 = vmatpush2.msra.mxu0 0.0
      %4075 = vmatprep.subr.mxu0 0.0
      %4076 = vmatpush2.msra.mxu0 0.0
      %4077 = vmatprep.subr.mxu0 0.0
      %4078 = vmatpush2.msra.mxu0 0.0
      %4079 = vmatprep.subr.mxu0 0.0
      %4080 = vmatpush2.msra.mxu0 0.0
      %4081 = vmatprep.subr.mxu0 0.0
      %4082 = vmatpush2.msra.mxu0 0.0
      %4083 = vmatprep.subr.mxu0 0.0
      %4084 = vmatpush2.msra.mxu0 0.0
      %4085 = vmatprep.subr.mxu0 0.0
      %4086 = vmatpush2.msra.mxu0 0.0
      %4087 = vmatprep.subr.mxu0 0.0
      %4088 = vmatpush2.msra.mxu0 0.0
      %4089 = vmatprep.subr.mxu0 0.0
      %4090 = vmatpush2.msra.mxu0 0.0
      %4091 = vmatprep.subr.mxu0 0.0
      %4092 = vmatpush2.msra.mxu0 0.0
      %4093 = vmatprep.subr.mxu0 0.0
      %4094 = vmatpush2.msra.mxu0 0.0
      %4095 = vmatprep.subr.mxu0 0.0
      %4096 = vmatpush2.msra.mxu0 0.0
      %4097 = vmatprep.subr.mxu0 0.0
      %4098 = vmatpush2.msra.mxu0 0.0
      %4099 = vmatprep.subr.mxu0 0.0
      %4100 = vmatpush2.msra.mxu0 0.0
      %4101 = vmatprep.subr.mxu0 0.0
      %4102 = vmatpush2.msra.mxu0 0.0
      %4103 = vmatprep.mubr.f32.mxu0 0.0
      %4104 = vmatmul.mubr.f32.gmra.mxu0 %v3895
      %v4105 = vpop.f32.mrf.mxu0
      %v4106 = vadd.f32 %v3251, %v4105
      %v4107 = vpop.f32.mrf.mxu0
      %v4108 = vadd.f32 %v3253, %v4107
      %4109 = vdwg.mxu0
      %4110 = vmatprep.subr.mxu0 0.0
      %4111 = vmatpush1.msra.mxu0 0.0
      %4112 = vmatprep.subr.mxu0 0.0
      %4113 = vmatpush1.msra.mxu0 0.0
      %4114 = vmatprep.subr.mxu0 0.0
      %4115 = vmatpush1.msra.mxu0 0.0
      %4116 = vmatprep.subr.mxu0 0.0
      %4117 = vmatpush1.msra.mxu0 0.0
      %4118 = vmatprep.subr.mxu0 0.0
      %4119 = vmatpush1.msra.mxu0 0.0
      %4120 = vmatprep.subr.mxu0 0.0
      %4121 = vmatpush1.msra.mxu0 0.0
      %4122 = vmatprep.subr.mxu0 0.0
      %4123 = vmatpush1.msra.mxu0 0.0
      %4124 = vmatprep.subr.mxu0 0.0
      %4125 = vmatpush1.msra.mxu0 0.0
      %4126 = vmatprep.subr.mxu0 0.0
      %4127 = vmatpush1.msra.mxu0 0.0
      %4128 = vmatprep.subr.mxu0 0.0
      %4129 = vmatpush1.msra.mxu0 0.0
      %4130 = vmatprep.subr.mxu0 0.0
      %4131 = vmatpush1.msra.mxu0 0.0
      %4132 = vmatprep.subr.mxu0 0.0
      %4133 = vmatpush1.msra.mxu0 0.0
      %4134 = vmatprep.subr.mxu0 0.0
      %4135 = vmatpush1.msra.mxu0 0.0
      %4136 = vmatprep.subr.mxu0 0.0
      %4137 = vmatpush1.msra.mxu0 0.0
      %4138 = vmatprep.subr.mxu0 0.0
      %4139 = vmatpush1.msra.mxu0 0.0
      %4140 = vmatprep.subr.mxu0 %v2133
      %4141 = vmatpush1.msra.mxu0 %v2130
      %4142 = vmatprep.subr.mxu0 0.0
      %4143 = vmatpush2.msra.mxu0 0.0
      %4144 = vmatprep.subr.mxu0 0.0
      %4145 = vmatpush2.msra.mxu0 0.0
      %4146 = vmatprep.subr.mxu0 0.0
      %4147 = vmatpush2.msra.mxu0 0.0
      %4148 = vmatprep.subr.mxu0 0.0
      %4149 = vmatpush2.msra.mxu0 0.0
      %4150 = vmatprep.subr.mxu0 0.0
      %4151 = vmatpush2.msra.mxu0 0.0
      %4152 = vmatprep.subr.mxu0 0.0
      %4153 = vmatpush2.msra.mxu0 0.0
      %4154 = vmatprep.subr.mxu0 0.0
      %4155 = vmatpush2.msra.mxu0 0.0
      %4156 = vmatprep.subr.mxu0 0.0
      %4157 = vmatpush2.msra.mxu0 0.0
      %4158 = vmatprep.subr.mxu0 0.0
      %4159 = vmatpush2.msra.mxu0 0.0
      %4160 = vmatprep.subr.mxu0 0.0
      %4161 = vmatpush2.msra.mxu0 0.0
      %4162 = vmatprep.subr.mxu0 0.0
      %4163 = vmatpush2.msra.mxu0 0.0
      %4164 = vmatprep.subr.mxu0 0.0
      %4165 = vmatpush2.msra.mxu0 0.0
      %4166 = vmatprep.subr.mxu0 0.0
      %4167 = vmatpush2.msra.mxu0 0.0
      %4168 = vmatprep.subr.mxu0 0.0
      %4169 = vmatpush2.msra.mxu0 0.0
      %4170 = vmatprep.subr.mxu0 0.0
      %4171 = vmatpush2.msra.mxu0 0.0
      %4172 = vmatprep.subr.mxu0 0.0
      %4173 = vmatpush2.msra.mxu0 0.0
      %4174 = vmatprep.mubr.f32.mxu0 0.0
      %4175 = vmatmul.mubr.f32.gmra.mxu0 %v3895
      %v4176 = vpop.f32.mrf.mxu0
      %v4177 = vadd.f32 %v3322, %v4176
      %v4178 = vpop.f32.mrf.mxu0
      %v4179 = vadd.f32 %v3324, %v4178
      %4180 = vdwg.mxu0
      %4181 = vmatprep.subr.mxu0 0.0
      %4182 = vmatpush1.msra.mxu0 0.0
      %4183 = vmatprep.subr.mxu0 0.0
      %4184 = vmatpush1.msra.mxu0 0.0
      %4185 = vmatprep.subr.mxu0 0.0
      %4186 = vmatpush1.msra.mxu0 0.0
      %4187 = vmatprep.subr.mxu0 0.0
      %4188 = vmatpush1.msra.mxu0 0.0
      %4189 = vmatprep.subr.mxu0 0.0
      %4190 = vmatpush1.msra.mxu0 0.0
      %4191 = vmatprep.subr.mxu0 0.0
      %4192 = vmatpush1.msra.mxu0 0.0
      %4193 = vmatprep.subr.mxu0 0.0
      %4194 = vmatpush1.msra.mxu0 0.0
      %4195 = vmatprep.subr.mxu0 0.0
      %4196 = vmatpush1.msra.mxu0 0.0
      %4197 = vmatprep.subr.mxu0 0.0
      %4198 = vmatpush1.msra.mxu0 0.0
      %4199 = vmatprep.subr.mxu0 0.0
      %4200 = vmatpush1.msra.mxu0 0.0
      %4201 = vmatprep.subr.mxu0 0.0
      %4202 = vmatpush1.msra.mxu0 0.0
      %4203 = vmatprep.subr.mxu0 0.0
      %4204 = vmatpush1.msra.mxu0 0.0
      %4205 = vmatprep.subr.mxu0 0.0
      %4206 = vmatpush1.msra.mxu0 0.0
      %4207 = vmatprep.subr.mxu0 0.0
      %4208 = vmatpush1.msra.mxu0 0.0
      %4209 = vmatprep.subr.mxu0 0.0
      %4210 = vmatpush1.msra.mxu0 0.0
      %4211 = vmatprep.subr.mxu0 %v2139
      %4212 = vmatpush1.msra.mxu0 %v2136
      %4213 = vmatprep.subr.mxu0 0.0
      %4214 = vmatpush2.msra.mxu0 0.0
      %4215 = vmatprep.subr.mxu0 0.0
      %4216 = vmatpush2.msra.mxu0 0.0
      %4217 = vmatprep.subr.mxu0 0.0
      %4218 = vmatpush2.msra.mxu0 0.0
      %4219 = vmatprep.subr.mxu0 0.0
      %4220 = vmatpush2.msra.mxu0 0.0
      %4221 = vmatprep.subr.mxu0 0.0
      %4222 = vmatpush2.msra.mxu0 0.0
      %4223 = vmatprep.subr.mxu0 0.0
      %4224 = vmatpush2.msra.mxu0 0.0
      %4225 = vmatprep.subr.mxu0 0.0
      %4226 = vmatpush2.msra.mxu0 0.0
      %4227 = vmatprep.subr.mxu0 0.0
      %4228 = vmatpush2.msra.mxu0 0.0
      %4229 = vmatprep.subr.mxu0 0.0
      %4230 = vmatpush2.msra.mxu0 0.0
      %4231 = vmatprep.subr.mxu0 0.0
      %4232 = vmatpush2.msra.mxu0 0.0
      %4233 = vmatprep.subr.mxu0 0.0
      %4234 = vmatpush2.msra.mxu0 0.0
      %4235 = vmatprep.subr.mxu0 0.0
      %4236 = vmatpush2.msra.mxu0 0.0
      %4237 = vmatprep.subr.mxu0 0.0
      %4238 = vmatpush2.msra.mxu0 0.0
      %4239 = vmatprep.subr.mxu0 0.0
      %4240 = vmatpush2.msra.mxu0 0.0
      %4241 = vmatprep.subr.mxu0 0.0
      %4242 = vmatpush2.msra.mxu0 0.0
      %4243 = vmatprep.subr.mxu0 0.0
      %4244 = vmatpush2.msra.mxu0 0.0
      %4245 = vmatprep.mubr.f32.mxu0 0.0
      %4246 = vmatmul.mubr.f32.gmra.mxu0 %v3895
      %v4247 = vpop.f32.mrf.mxu0
      %v4248 = vadd.f32 %v3393, %v4247
      %v4249 = vpop.f32.mrf.mxu0
      %v4250 = vadd.f32 %v3395, %v4249
      %4251 = vdwg.mxu0
      %4252 = vmatprep.subr.mxu0 0.0
      %4253 = vmatpush1.msra.mxu0 0.0
      %4254 = vmatprep.subr.mxu0 0.0
      %4255 = vmatpush1.msra.mxu0 0.0
      %4256 = vmatprep.subr.mxu0 0.0
      %4257 = vmatpush1.msra.mxu0 0.0
      %4258 = vmatprep.subr.mxu0 0.0
      %4259 = vmatpush1.msra.mxu0 0.0
      %4260 = vmatprep.subr.mxu0 0.0
      %4261 = vmatpush1.msra.mxu0 0.0
      %4262 = vmatprep.subr.mxu0 0.0
      %4263 = vmatpush1.msra.mxu0 0.0
      %4264 = vmatprep.subr.mxu0 0.0
      %4265 = vmatpush1.msra.mxu0 0.0
      %4266 = vmatprep.subr.mxu0 0.0
      %4267 = vmatpush1.msra.mxu0 0.0
      %4268 = vmatprep.subr.mxu0 0.0
      %4269 = vmatpush1.msra.mxu0 0.0
      %4270 = vmatprep.subr.mxu0 0.0
      %4271 = vmatpush1.msra.mxu0 0.0
      %4272 = vmatprep.subr.mxu0 0.0
      %4273 = vmatpush1.msra.mxu0 0.0
      %4274 = vmatprep.subr.mxu0 0.0
      %4275 = vmatpush1.msra.mxu0 0.0
      %4276 = vmatprep.subr.mxu0 0.0
      %4277 = vmatpush1.msra.mxu0 0.0
      %4278 = vmatprep.subr.mxu0 0.0
      %4279 = vmatpush1.msra.mxu0 0.0
      %4280 = vmatprep.subr.mxu0 0.0
      %4281 = vmatpush1.msra.mxu0 0.0
      %4282 = vmatprep.subr.mxu0 %v2145
      %4283 = vmatpush1.msra.mxu0 %v2142
      %4284 = vmatprep.subr.mxu0 0.0
      %4285 = vmatpush2.msra.mxu0 0.0
      %4286 = vmatprep.subr.mxu0 0.0
      %4287 = vmatpush2.msra.mxu0 0.0
      %4288 = vmatprep.subr.mxu0 0.0
      %4289 = vmatpush2.msra.mxu0 0.0
      %4290 = vmatprep.subr.mxu0 0.0
      %4291 = vmatpush2.msra.mxu0 0.0
      %4292 = vmatprep.subr.mxu0 0.0
      %4293 = vmatpush2.msra.mxu0 0.0
      %4294 = vmatprep.subr.mxu0 0.0
      %4295 = vmatpush2.msra.mxu0 0.0
      %4296 = vmatprep.subr.mxu0 0.0
      %4297 = vmatpush2.msra.mxu0 0.0
      %4298 = vmatprep.subr.mxu0 0.0
      %4299 = vmatpush2.msra.mxu0 0.0
      %4300 = vmatprep.subr.mxu0 0.0
      %4301 = vmatpush2.msra.mxu0 0.0
      %4302 = vmatprep.subr.mxu0 0.0
      %4303 = vmatpush2.msra.mxu0 0.0
      %4304 = vmatprep.subr.mxu0 0.0
      %4305 = vmatpush2.msra.mxu0 0.0
      %4306 = vmatprep.subr.mxu0 0.0
      %4307 = vmatpush2.msra.mxu0 0.0
      %4308 = vmatprep.subr.mxu0 0.0
      %4309 = vmatpush2.msra.mxu0 0.0
      %4310 = vmatprep.subr.mxu0 0.0
      %4311 = vmatpush2.msra.mxu0 0.0
      %4312 = vmatprep.subr.mxu0 0.0
      %4313 = vmatpush2.msra.mxu0 0.0
      %4314 = vmatprep.subr.mxu0 0.0
      %4315 = vmatpush2.msra.mxu0 0.0
      %4316 = vmatprep.mubr.f32.mxu0 0.0
      %4317 = vmatmul.mubr.f32.gmra.mxu0 %v3895
      %v4318 = vpop.f32.mrf.mxu0
      %v4319 = vadd.f32 %v3464, %v4318
      %v4320 = vpop.f32.mrf.mxu0
      %v4321 = vadd.f32 %v3466, %v4320
      %4322 = vdwg.mxu0
      %4323 = vmatprep.subr.mxu0 0.0
      %4324 = vmatpush1.msra.mxu0 0.0
      %4325 = vmatprep.subr.mxu0 0.0
      %4326 = vmatpush1.msra.mxu0 0.0
      %4327 = vmatprep.subr.mxu0 0.0
      %4328 = vmatpush1.msra.mxu0 0.0
      %4329 = vmatprep.subr.mxu0 0.0
      %4330 = vmatpush1.msra.mxu0 0.0
      %4331 = vmatprep.subr.mxu0 0.0
      %4332 = vmatpush1.msra.mxu0 0.0
      %4333 = vmatprep.subr.mxu0 0.0
      %4334 = vmatpush1.msra.mxu0 0.0
      %4335 = vmatprep.subr.mxu0 0.0
      %4336 = vmatpush1.msra.mxu0 0.0
      %4337 = vmatprep.subr.mxu0 0.0
      %4338 = vmatpush1.msra.mxu0 0.0
      %4339 = vmatprep.subr.mxu0 0.0
      %4340 = vmatpush1.msra.mxu0 0.0
      %4341 = vmatprep.subr.mxu0 0.0
      %4342 = vmatpush1.msra.mxu0 0.0
      %4343 = vmatprep.subr.mxu0 0.0
      %4344 = vmatpush1.msra.mxu0 0.0
      %4345 = vmatprep.subr.mxu0 0.0
      %4346 = vmatpush1.msra.mxu0 0.0
      %4347 = vmatprep.subr.mxu0 0.0
      %4348 = vmatpush1.msra.mxu0 0.0
      %4349 = vmatprep.subr.mxu0 0.0
      %4350 = vmatpush1.msra.mxu0 0.0
      %4351 = vmatprep.subr.mxu0 0.0
      %4352 = vmatpush1.msra.mxu0 0.0
      %4353 = vmatprep.subr.mxu0 %v2151
      %4354 = vmatpush1.msra.mxu0 %v2148
      %4355 = vmatprep.subr.mxu0 0.0
      %4356 = vmatpush2.msra.mxu0 0.0
      %4357 = vmatprep.subr.mxu0 0.0
      %4358 = vmatpush2.msra.mxu0 0.0
      %4359 = vmatprep.subr.mxu0 0.0
      %4360 = vmatpush2.msra.mxu0 0.0
      %4361 = vmatprep.subr.mxu0 0.0
      %4362 = vmatpush2.msra.mxu0 0.0
      %4363 = vmatprep.subr.mxu0 0.0
      %4364 = vmatpush2.msra.mxu0 0.0
      %4365 = vmatprep.subr.mxu0 0.0
      %4366 = vmatpush2.msra.mxu0 0.0
      %4367 = vmatprep.subr.mxu0 0.0
      %4368 = vmatpush2.msra.mxu0 0.0
      %4369 = vmatprep.subr.mxu0 0.0
      %4370 = vmatpush2.msra.mxu0 0.0
      %4371 = vmatprep.subr.mxu0 0.0
      %4372 = vmatpush2.msra.mxu0 0.0
      %4373 = vmatprep.subr.mxu0 0.0
      %4374 = vmatpush2.msra.mxu0 0.0
      %4375 = vmatprep.subr.mxu0 0.0
      %4376 = vmatpush2.msra.mxu0 0.0
      %4377 = vmatprep.subr.mxu0 0.0
      %4378 = vmatpush2.msra.mxu0 0.0
      %4379 = vmatprep.subr.mxu0 0.0
      %4380 = vmatpush2.msra.mxu0 0.0
      %4381 = vmatprep.subr.mxu0 0.0
      %4382 = vmatpush2.msra.mxu0 0.0
      %4383 = vmatprep.subr.mxu0 0.0
      %4384 = vmatpush2.msra.mxu0 0.0
      %4385 = vmatprep.subr.mxu0 0.0
      %4386 = vmatpush2.msra.mxu0 0.0
      %4387 = vmatprep.mubr.f32.mxu0 0.0
      %4388 = vmatmul.mubr.f32.gmra.mxu0 %v3895
      %v4389 = vpop.f32.mrf.mxu0
      %v4390 = vadd.f32 %v3535, %v4389
      %v4391 = vpop.f32.mrf.mxu0
      %v4392 = vadd.f32 %v3537, %v4391
      %4393 = vdwg.mxu0
      %4394 = vmatprep.subr.mxu0 0.0
      %4395 = vmatpush1.msra.mxu0 0.0
      %4396 = vmatprep.subr.mxu0 0.0
      %4397 = vmatpush1.msra.mxu0 0.0
      %4398 = vmatprep.subr.mxu0 0.0
      %4399 = vmatpush1.msra.mxu0 0.0
      %4400 = vmatprep.subr.mxu0 0.0
      %4401 = vmatpush1.msra.mxu0 0.0
      %4402 = vmatprep.subr.mxu0 0.0
      %4403 = vmatpush1.msra.mxu0 0.0
      %4404 = vmatprep.subr.mxu0 0.0
      %4405 = vmatpush1.msra.mxu0 0.0
      %4406 = vmatprep.subr.mxu0 0.0
      %4407 = vmatpush1.msra.mxu0 0.0
      %4408 = vmatprep.subr.mxu0 0.0
      %4409 = vmatpush1.msra.mxu0 0.0
      %4410 = vmatprep.subr.mxu0 0.0
      %4411 = vmatpush1.msra.mxu0 0.0
      %4412 = vmatprep.subr.mxu0 0.0
      %4413 = vmatpush1.msra.mxu0 0.0
      %4414 = vmatprep.subr.mxu0 0.0
      %4415 = vmatpush1.msra.mxu0 0.0
      %4416 = vmatprep.subr.mxu0 0.0
      %4417 = vmatpush1.msra.mxu0 0.0
      %4418 = vmatprep.subr.mxu0 0.0
      %4419 = vmatpush1.msra.mxu0 0.0
      %4420 = vmatprep.subr.mxu0 0.0
      %4421 = vmatpush1.msra.mxu0 0.0
      %4422 = vmatprep.subr.mxu0 0.0
      %4423 = vmatpush1.msra.mxu0 0.0
      %4424 = vmatprep.subr.mxu0 %v2157
      %4425 = vmatpush1.msra.mxu0 %v2154
      %4426 = vmatprep.subr.mxu0 0.0
      %4427 = vmatpush2.msra.mxu0 0.0
      %4428 = vmatprep.subr.mxu0 0.0
      %4429 = vmatpush2.msra.mxu0 0.0
      %4430 = vmatprep.subr.mxu0 0.0
      %4431 = vmatpush2.msra.mxu0 0.0
      %4432 = vmatprep.subr.mxu0 0.0
      %4433 = vmatpush2.msra.mxu0 0.0
      %4434 = vmatprep.subr.mxu0 0.0
      %4435 = vmatpush2.msra.mxu0 0.0
      %4436 = vmatprep.subr.mxu0 0.0
      %4437 = vmatpush2.msra.mxu0 0.0
      %4438 = vmatprep.subr.mxu0 0.0
      %4439 = vmatpush2.msra.mxu0 0.0
      %4440 = vmatprep.subr.mxu0 0.0
      %4441 = vmatpush2.msra.mxu0 0.0
      %4442 = vmatprep.subr.mxu0 0.0
      %4443 = vmatpush2.msra.mxu0 0.0
      %4444 = vmatprep.subr.mxu0 0.0
      %4445 = vmatpush2.msra.mxu0 0.0
      %4446 = vmatprep.subr.mxu0 0.0
      %4447 = vmatpush2.msra.mxu0 0.0
      %4448 = vmatprep.subr.mxu0 0.0
      %4449 = vmatpush2.msra.mxu0 0.0
      %4450 = vmatprep.subr.mxu0 0.0
      %4451 = vmatpush2.msra.mxu0 0.0
      %4452 = vmatprep.subr.mxu0 0.0
      %4453 = vmatpush2.msra.mxu0 0.0
      %4454 = vmatprep.subr.mxu0 0.0
      %4455 = vmatpush2.msra.mxu0 0.0
      %4456 = vmatprep.subr.mxu0 0.0
      %4457 = vmatpush2.msra.mxu0 0.0
      %4458 = vmatprep.mubr.f32.mxu0 0.0
      %4459 = vmatmul.mubr.f32.gmra.mxu0 %v3895
      %v4460 = vpop.f32.mrf.mxu0
      %v4461 = vadd.f32 %v3606, %v4460
      %v4462 = vpop.f32.mrf.mxu0
      %v4463 = vadd.f32 %v3608, %v4462
      %4464 = vdwg.mxu0
      %4465 = vmatprep.subr.mxu0 0.0
      %4466 = vmatpush1.msra.mxu0 0.0
      %4467 = vmatprep.subr.mxu0 0.0
      %4468 = vmatpush1.msra.mxu0 0.0
      %4469 = vmatprep.subr.mxu0 0.0
      %4470 = vmatpush1.msra.mxu0 0.0
      %4471 = vmatprep.subr.mxu0 0.0
      %4472 = vmatpush1.msra.mxu0 0.0
      %4473 = vmatprep.subr.mxu0 0.0
      %4474 = vmatpush1.msra.mxu0 0.0
      %4475 = vmatprep.subr.mxu0 0.0
      %4476 = vmatpush1.msra.mxu0 0.0
      %4477 = vmatprep.subr.mxu0 0.0
      %4478 = vmatpush1.msra.mxu0 0.0
      %4479 = vmatprep.subr.mxu0 0.0
      %4480 = vmatpush1.msra.mxu0 0.0
      %4481 = vmatprep.subr.mxu0 0.0
      %4482 = vmatpush1.msra.mxu0 0.0
      %4483 = vmatprep.subr.mxu0 0.0
      %4484 = vmatpush1.msra.mxu0 0.0
      %4485 = vmatprep.subr.mxu0 0.0
      %4486 = vmatpush1.msra.mxu0 0.0
      %4487 = vmatprep.subr.mxu0 0.0
      %4488 = vmatpush1.msra.mxu0 0.0
      %4489 = vmatprep.subr.mxu0 0.0
      %4490 = vmatpush1.msra.mxu0 0.0
      %4491 = vmatprep.subr.mxu0 0.0
      %4492 = vmatpush1.msra.mxu0 0.0
      %4493 = vmatprep.subr.mxu0 0.0
      %4494 = vmatpush1.msra.mxu0 0.0
      %4495 = vmatprep.subr.mxu0 %v2163
      %4496 = vmatpush1.msra.mxu0 %v2160
      %4497 = vmatprep.subr.mxu0 0.0
      %4498 = vmatpush2.msra.mxu0 0.0
      %4499 = vmatprep.subr.mxu0 0.0
      %4500 = vmatpush2.msra.mxu0 0.0
      %4501 = vmatprep.subr.mxu0 0.0
      %4502 = vmatpush2.msra.mxu0 0.0
      %4503 = vmatprep.subr.mxu0 0.0
      %4504 = vmatpush2.msra.mxu0 0.0
      %4505 = vmatprep.subr.mxu0 0.0
      %4506 = vmatpush2.msra.mxu0 0.0
      %4507 = vmatprep.subr.mxu0 0.0
      %4508 = vmatpush2.msra.mxu0 0.0
      %4509 = vmatprep.subr.mxu0 0.0
      %4510 = vmatpush2.msra.mxu0 0.0
      %4511 = vmatprep.subr.mxu0 0.0
      %4512 = vmatpush2.msra.mxu0 0.0
      %4513 = vmatprep.subr.mxu0 0.0
      %4514 = vmatpush2.msra.mxu0 0.0
      %4515 = vmatprep.subr.mxu0 0.0
      %4516 = vmatpush2.msra.mxu0 0.0
      %4517 = vmatprep.subr.mxu0 0.0
      %4518 = vmatpush2.msra.mxu0 0.0
      %4519 = vmatprep.subr.mxu0 0.0
      %4520 = vmatpush2.msra.mxu0 0.0
      %4521 = vmatprep.subr.mxu0 0.0
      %4522 = vmatpush2.msra.mxu0 0.0
      %4523 = vmatprep.subr.mxu0 0.0
      %4524 = vmatpush2.msra.mxu0 0.0
      %4525 = vmatprep.subr.mxu0 0.0
      %4526 = vmatpush2.msra.mxu0 0.0
      %4527 = vmatprep.subr.mxu0 0.0
      %4528 = vmatpush2.msra.mxu0 0.0
      %4529 = vmatprep.mubr.f32.mxu0 0.0
      %4530 = vmatmul.mubr.f32.gmra.mxu0 %v3895
      %v4531 = vpop.f32.mrf.mxu0
      %v4532 = vadd.f32 %v3677, %v4531
      %v4533 = vpop.f32.mrf.mxu0
      %v4534 = vadd.f32 %v3679, %v4533
      %4535 = vdwg.mxu0
      %4536 = vmatprep.subr.mxu0 0.0
      %4537 = vmatpush1.msra.mxu0 0.0
      %4538 = vmatprep.subr.mxu0 0.0
      %4539 = vmatpush1.msra.mxu0 0.0
      %4540 = vmatprep.subr.mxu0 0.0
      %4541 = vmatpush1.msra.mxu0 0.0
      %4542 = vmatprep.subr.mxu0 0.0
      %4543 = vmatpush1.msra.mxu0 0.0
      %4544 = vmatprep.subr.mxu0 0.0
      %4545 = vmatpush1.msra.mxu0 0.0
      %4546 = vmatprep.subr.mxu0 0.0
      %4547 = vmatpush1.msra.mxu0 0.0
      %4548 = vmatprep.subr.mxu0 0.0
      %4549 = vmatpush1.msra.mxu0 0.0
      %4550 = vmatprep.subr.mxu0 0.0
      %4551 = vmatpush1.msra.mxu0 0.0
      %4552 = vmatprep.subr.mxu0 0.0
      %4553 = vmatpush1.msra.mxu0 0.0
      %4554 = vmatprep.subr.mxu0 0.0
      %4555 = vmatpush1.msra.mxu0 0.0
      %4556 = vmatprep.subr.mxu0 0.0
      %4557 = vmatpush1.msra.mxu0 0.0
      %4558 = vmatprep.subr.mxu0 0.0
      %4559 = vmatpush1.msra.mxu0 0.0
      %4560 = vmatprep.subr.mxu0 0.0
      %4561 = vmatpush1.msra.mxu0 0.0
      %4562 = vmatprep.subr.mxu0 0.0
      %4563 = vmatpush1.msra.mxu0 0.0
      %4564 = vmatprep.subr.mxu0 0.0
      %4565 = vmatpush1.msra.mxu0 0.0
      %4566 = vmatprep.subr.mxu0 %v2169
      %4567 = vmatpush1.msra.mxu0 %v2166
      %4568 = vmatprep.subr.mxu0 0.0
      %4569 = vmatpush2.msra.mxu0 0.0
      %4570 = vmatprep.subr.mxu0 0.0
      %4571 = vmatpush2.msra.mxu0 0.0
      %4572 = vmatprep.subr.mxu0 0.0
      %4573 = vmatpush2.msra.mxu0 0.0
      %4574 = vmatprep.subr.mxu0 0.0
      %4575 = vmatpush2.msra.mxu0 0.0
      %4576 = vmatprep.subr.mxu0 0.0
      %4577 = vmatpush2.msra.mxu0 0.0
      %4578 = vmatprep.subr.mxu0 0.0
      %4579 = vmatpush2.msra.mxu0 0.0
      %4580 = vmatprep.subr.mxu0 0.0
      %4581 = vmatpush2.msra.mxu0 0.0
      %4582 = vmatprep.subr.mxu0 0.0
      %4583 = vmatpush2.msra.mxu0 0.0
      %4584 = vmatprep.subr.mxu0 0.0
      %4585 = vmatpush2.msra.mxu0 0.0
      %4586 = vmatprep.subr.mxu0 0.0
      %4587 = vmatpush2.msra.mxu0 0.0
      %4588 = vmatprep.subr.mxu0 0.0
      %4589 = vmatpush2.msra.mxu0 0.0
      %4590 = vmatprep.subr.mxu0 0.0
      %4591 = vmatpush2.msra.mxu0 0.0
      %4592 = vmatprep.subr.mxu0 0.0
      %4593 = vmatpush2.msra.mxu0 0.0
      %4594 = vmatprep.subr.mxu0 0.0
      %4595 = vmatpush2.msra.mxu0 0.0
      %4596 = vmatprep.subr.mxu0 0.0
      %4597 = vmatpush2.msra.mxu0 0.0
      %4598 = vmatprep.subr.mxu0 0.0
      %4599 = vmatpush2.msra.mxu0 0.0
      %4600 = vmatprep.mubr.f32.mxu0 0.0
      %4601 = vmatmul.mubr.f32.gmra.mxu0 %v3895
      %v4602 = vpop.f32.mrf.mxu0
      %v4603 = vadd.f32 %v3748, %v4602
      %v4604 = vpop.f32.mrf.mxu0
      %v4605 = vadd.f32 %v3750, %v4604
      %4606 = vdwg.mxu0
      %4607 = vmatprep.subr.mxu0 0.0
      %4608 = vmatpush1.msra.mxu0 0.0
      %4609 = vmatprep.subr.mxu0 0.0
      %4610 = vmatpush1.msra.mxu0 0.0
      %4611 = vmatprep.subr.mxu0 0.0
      %4612 = vmatpush1.msra.mxu0 0.0
      %4613 = vmatprep.subr.mxu0 0.0
      %4614 = vmatpush1.msra.mxu0 0.0
      %4615 = vmatprep.subr.mxu0 0.0
      %4616 = vmatpush1.msra.mxu0 0.0
      %4617 = vmatprep.subr.mxu0 0.0
      %4618 = vmatpush1.msra.mxu0 0.0
      %4619 = vmatprep.subr.mxu0 0.0
      %4620 = vmatpush1.msra.mxu0 0.0
      %4621 = vmatprep.subr.mxu0 0.0
      %4622 = vmatpush1.msra.mxu0 0.0
      %4623 = vmatprep.subr.mxu0 0.0
      %4624 = vmatpush1.msra.mxu0 0.0
      %4625 = vmatprep.subr.mxu0 0.0
      %4626 = vmatpush1.msra.mxu0 0.0
      %4627 = vmatprep.subr.mxu0 0.0
      %4628 = vmatpush1.msra.mxu0 0.0
      %4629 = vmatprep.subr.mxu0 0.0
      %4630 = vmatpush1.msra.mxu0 0.0
      %4631 = vmatprep.subr.mxu0 0.0
      %4632 = vmatpush1.msra.mxu0 0.0
      %4633 = vmatprep.subr.mxu0 0.0
      %4634 = vmatpush1.msra.mxu0 0.0
      %4635 = vmatprep.subr.mxu0 0.0
      %4636 = vmatpush1.msra.mxu0 0.0
      %4637 = vmatprep.subr.mxu0 %v2175
      %4638 = vmatpush1.msra.mxu0 %v2172
      %4639 = vmatprep.subr.mxu0 0.0
      %4640 = vmatpush2.msra.mxu0 0.0
      %4641 = vmatprep.subr.mxu0 0.0
      %4642 = vmatpush2.msra.mxu0 0.0
      %4643 = vmatprep.subr.mxu0 0.0
      %4644 = vmatpush2.msra.mxu0 0.0
      %4645 = vmatprep.subr.mxu0 0.0
      %4646 = vmatpush2.msra.mxu0 0.0
      %4647 = vmatprep.subr.mxu0 0.0
      %4648 = vmatpush2.msra.mxu0 0.0
      %4649 = vmatprep.subr.mxu0 0.0
      %4650 = vmatpush2.msra.mxu0 0.0
      %4651 = vmatprep.subr.mxu0 0.0
      %4652 = vmatpush2.msra.mxu0 0.0
      %4653 = vmatprep.subr.mxu0 0.0
      %4654 = vmatpush2.msra.mxu0 0.0
      %4655 = vmatprep.subr.mxu0 0.0
      %4656 = vmatpush2.msra.mxu0 0.0
      %4657 = vmatprep.subr.mxu0 0.0
      %4658 = vmatpush2.msra.mxu0 0.0
      %4659 = vmatprep.subr.mxu0 0.0
      %4660 = vmatpush2.msra.mxu0 0.0
      %4661 = vmatprep.subr.mxu0 0.0
      %4662 = vmatpush2.msra.mxu0 0.0
      %4663 = vmatprep.subr.mxu0 0.0
      %4664 = vmatpush2.msra.mxu0 0.0
      %4665 = vmatprep.subr.mxu0 0.0
      %4666 = vmatpush2.msra.mxu0 0.0
      %4667 = vmatprep.subr.mxu0 0.0
      %4668 = vmatpush2.msra.mxu0 0.0
      %4669 = vmatprep.subr.mxu0 0.0
      %4670 = vmatpush2.msra.mxu0 0.0
      %4671 = vmatprep.mubr.f32.mxu0 0.0
      %4672 = vmatmul.mubr.f32.gmra.mxu0 %v3895
      %v4673 = vpop.f32.mrf.mxu0
      %v4674 = vadd.f32 %v3819, %v4673
      %v4675 = vpop.f32.mrf.mxu0
      %v4676 = vadd.f32 %v3821, %v4675
      %4677 = vdwg.mxu0
      %4678 = vmatprep.subr.mxu0 0.0
      %4679 = vmatpush1.msra.mxu0 0.0
      %4680 = vmatprep.subr.mxu0 0.0
      %4681 = vmatpush1.msra.mxu0 0.0
      %4682 = vmatprep.subr.mxu0 0.0
      %4683 = vmatpush1.msra.mxu0 0.0
      %4684 = vmatprep.subr.mxu0 0.0
      %4685 = vmatpush1.msra.mxu0 0.0
      %4686 = vmatprep.subr.mxu0 0.0
      %4687 = vmatpush1.msra.mxu0 0.0
      %4688 = vmatprep.subr.mxu0 0.0
      %4689 = vmatpush1.msra.mxu0 0.0
      %4690 = vmatprep.subr.mxu0 0.0
      %4691 = vmatpush1.msra.mxu0 0.0
      %4692 = vmatprep.subr.mxu0 0.0
      %4693 = vmatpush1.msra.mxu0 0.0
      %4694 = vmatprep.subr.mxu0 0.0
      %4695 = vmatpush1.msra.mxu0 0.0
      %4696 = vmatprep.subr.mxu0 0.0
      %4697 = vmatpush1.msra.mxu0 0.0
      %4698 = vmatprep.subr.mxu0 0.0
      %4699 = vmatpush1.msra.mxu0 0.0
      %4700 = vmatprep.subr.mxu0 0.0
      %4701 = vmatpush1.msra.mxu0 0.0
      %4702 = vmatprep.subr.mxu0 0.0
      %4703 = vmatpush1.msra.mxu0 0.0
      %4704 = vmatprep.subr.mxu0 0.0
      %4705 = vmatpush1.msra.mxu0 0.0
      %4706 = vmatprep.subr.mxu0 0.0
      %4707 = vmatpush1.msra.mxu0 0.0
      %4708 = vmatprep.subr.mxu0 %v2181
      %4709 = vmatpush1.msra.mxu0 %v2178
      %4710 = vmatprep.subr.mxu0 0.0
      %4711 = vmatpush2.msra.mxu0 0.0
      %4712 = vmatprep.subr.mxu0 0.0
      %4713 = vmatpush2.msra.mxu0 0.0
      %4714 = vmatprep.subr.mxu0 0.0
      %4715 = vmatpush2.msra.mxu0 0.0
      %4716 = vmatprep.subr.mxu0 0.0
      %4717 = vmatpush2.msra.mxu0 0.0
      %4718 = vmatprep.subr.mxu0 0.0
      %4719 = vmatpush2.msra.mxu0 0.0
      %4720 = vmatprep.subr.mxu0 0.0
      %4721 = vmatpush2.msra.mxu0 0.0
      %4722 = vmatprep.subr.mxu0 0.0
      %4723 = vmatpush2.msra.mxu0 0.0
      %4724 = vmatprep.subr.mxu0 0.0
      %4725 = vmatpush2.msra.mxu0 0.0
      %4726 = vmatprep.subr.mxu0 0.0
      %4727 = vmatpush2.msra.mxu0 0.0
      %4728 = vmatprep.subr.mxu0 0.0
      %4729 = vmatpush2.msra.mxu0 0.0
      %4730 = vmatprep.subr.mxu0 0.0
      %4731 = vmatpush2.msra.mxu0 0.0
      %4732 = vmatprep.subr.mxu0 0.0
      %4733 = vmatpush2.msra.mxu0 0.0
      %4734 = vmatprep.subr.mxu0 0.0
      %4735 = vmatpush2.msra.mxu0 0.0
      %4736 = vmatprep.subr.mxu0 0.0
      %4737 = vmatpush2.msra.mxu0 0.0
      %4738 = vmatprep.subr.mxu0 0.0
      %4739 = vmatpush2.msra.mxu0 0.0
      %4740 = vmatprep.subr.mxu0 0.0
      %4741 = vmatpush2.msra.mxu0 0.0
      %4742 = vmatprep.mubr.f32.mxu0 0.0
      %4743 = vmatmul.mubr.f32.gmra.mxu0 %v3895
      %v4744 = vpop.f32.mrf.mxu0
      %v4745 = vadd.f32 %v3890, %v4744
      %v4746 = vpop.f32.mrf.mxu0
      %v4747 = vadd.f32 %v3892, %v4746
      %4748 = vdwg.mxu0
      %v4773 = vcombine.low %v2250, %v2252
      %v4774 = vcombine.low %v2321, %v2323
      %v4775 = vcombine.low %v2392, %v2394
      %v4776 = vcombine.low %v2463, %v2465
      %v4778 = vunpack.c.l.s4 1966171168
      %v4779 = vunpack.c.0.s8 %v4778
      %v4780 = vlaneseq
      %v4781 = vshrl.u32 %v4780, 7
      %v4782 = vsub.s32 %v4779, %v4781
      %v4783 = vrot.slane %v4773, %v4782
      %v4785 = vunpack.c.l.s4 1966171168
      %v4786 = vunpack.c.0.s8 %v4785
      %v4787 = vlaneseq
      %v4788 = vshrl.u32 %v4787, 7
      %v4789 = vsub.s32 %v4786, %v4788
      %v4790 = vrot.slane %v4774, %v4789
      %v4792 = vunpack.c.l.s4 1966171168
      %v4793 = vunpack.c.0.s8 %v4792
      %v4794 = vlaneseq
      %v4795 = vshrl.u32 %v4794, 7
      %v4796 = vsub.s32 %v4793, %v4795
      %v4797 = vrot.slane %v4775, %v4796
      %v4799 = vunpack.c.l.s4 1966171168
      %v4800 = vunpack.c.0.s8 %v4799
      %v4801 = vlaneseq
      %v4802 = vshrl.u32 %v4801, 7
      %v4803 = vsub.s32 %v4800, %v4802
      %v4804 = vrot.slane %v4776, %v4803
      %v4805 = vcombine.low %v4783, %v4790
      %v4806 = vcombine.high %v4783, %v4790
      %v4807 = vcombine.low %v4797, %v4804
      %v4808 = vcombine.high %v4797, %v4804
      %v4810 = vunpack.c.l.s4 1966171168
      %v4811 = vunpack.c.0.s8 %v4810
      %v4812 = vlaneseq
      %v4813 = vshrl.u32 %v4812, 7
      %v4814 = vsub.s32 %v4811, %v4813
      %v4815 = vrot.slane %v4805, %v4814
      %v4817 = vunpack.c.l.s4 1966171168
      %v4818 = vunpack.c.0.s8 %v4817
      %v4819 = vlaneseq
      %v4820 = vshrl.u32 %v4819, 7
      %v4821 = vsub.s32 %v4818, %v4820
      %v4822 = vrot.slane %v4806, %v4821
      %v4824 = vunpack.c.l.s4 1966171168
      %v4825 = vunpack.c.0.s8 %v4824
      %v4826 = vlaneseq
      %v4827 = vshrl.u32 %v4826, 7
      %v4828 = vsub.s32 %v4825, %v4827
      %v4829 = vrot.slane %v4807, %v4828
      %v4831 = vunpack.c.l.s4 1966171168
      %v4832 = vunpack.c.0.s8 %v4831
      %v4833 = vlaneseq
      %v4834 = vshrl.u32 %v4833, 7
      %v4835 = vsub.s32 %v4832, %v4834
      %v4836 = vrot.slane %v4808, %v4835
      %v4837 = vcombine.low %v4815, %v4829
      %v4838 = vcombine.high %v4815, %v4829
      %v4839 = vcombine.low %v4822, %v4836
      %v4840 = vcombine.high %v4822, %v4836
      %v4841 = vcombine.low %v2534, %v2536
      %v4842 = vcombine.low %v2605, %v2607
      %v4843 = vcombine.low %v2676, %v2678
      %v4844 = vcombine.low %v2747, %v2749
      %v4846 = vunpack.c.l.s4 1966171168
      %v4847 = vunpack.c.0.s8 %v4846
      %v4848 = vlaneseq
      %v4849 = vshrl.u32 %v4848, 7
      %v4850 = vsub.s32 %v4847, %v4849
      %v4851 = vrot.slane %v4841, %v4850
      %v4853 = vunpack.c.l.s4 1966171168
      %v4854 = vunpack.c.0.s8 %v4853
      %v4855 = vlaneseq
      %v4856 = vshrl.u32 %v4855, 7
      %v4857 = vsub.s32 %v4854, %v4856
      %v4858 = vrot.slane %v4842, %v4857
      %v4860 = vunpack.c.l.s4 1966171168
      %v4861 = vunpack.c.0.s8 %v4860
      %v4862 = vlaneseq
      %v4863 = vshrl.u32 %v4862, 7
      %v4864 = vsub.s32 %v4861, %v4863
      %v4865 = vrot.slane %v4843, %v4864
      %v4867 = vunpack.c.l.s4 1966171168
      %v4868 = vunpack.c.0.s8 %v4867
      %v4869 = vlaneseq
      %v4870 = vshrl.u32 %v4869, 7
      %v4871 = vsub.s32 %v4868, %v4870
      %v4872 = vrot.slane %v4844, %v4871
      %v4873 = vcombine.low %v4851, %v4858
      %v4874 = vcombine.high %v4851, %v4858
      %v4875 = vcombine.low %v4865, %v4872
      %v4876 = vcombine.high %v4865, %v4872
      %v4878 = vunpack.c.l.s4 1966171168
      %v4879 = vunpack.c.0.s8 %v4878
      %v4880 = vlaneseq
      %v4881 = vshrl.u32 %v4880, 7
      %v4882 = vsub.s32 %v4879, %v4881
      %v4883 = vrot.slane %v4873, %v4882
      %v4885 = vunpack.c.l.s4 1966171168
      %v4886 = vunpack.c.0.s8 %v4885
      %v4887 = vlaneseq
      %v4888 = vshrl.u32 %v4887, 7
      %v4889 = vsub.s32 %v4886, %v4888
      %v4890 = vrot.slane %v4874, %v4889
      %v4892 = vunpack.c.l.s4 1966171168
      %v4893 = vunpack.c.0.s8 %v4892
      %v4894 = vlaneseq
      %v4895 = vshrl.u32 %v4894, 7
      %v4896 = vsub.s32 %v4893, %v4895
      %v4897 = vrot.slane %v4875, %v4896
      %v4899 = vunpack.c.l.s4 1966171168
      %v4900 = vunpack.c.0.s8 %v4899
      %v4901 = vlaneseq
      %v4902 = vshrl.u32 %v4901, 7
      %v4903 = vsub.s32 %v4900, %v4902
      %v4904 = vrot.slane %v4876, %v4903
      %v4905 = vcombine.low %v4883, %v4897
      %v4906 = vcombine.high %v4883, %v4897
      %v4907 = vcombine.low %v4890, %v4904
      %v4908 = vcombine.high %v4890, %v4904
      %v4909 = vcombine.low %v2818, %v2820
      %v4910 = vcombine.low %v2889, %v2891
      %v4911 = vcombine.low %v2960, %v2962
      %v4912 = vcombine.low %v3031, %v3033
      %v4914 = vunpack.c.l.s4 1966171168
      %v4915 = vunpack.c.0.s8 %v4914
      %v4916 = vlaneseq
      %v4917 = vshrl.u32 %v4916, 7
      %v4918 = vsub.s32 %v4915, %v4917
      %v4919 = vrot.slane %v4909, %v4918
      %v4921 = vunpack.c.l.s4 1966171168
      %v4922 = vunpack.c.0.s8 %v4921
      %v4923 = vlaneseq
      %v4924 = vshrl.u32 %v4923, 7
      %v4925 = vsub.s32 %v4922, %v4924
      %v4926 = vrot.slane %v4910, %v4925
      %v4928 = vunpack.c.l.s4 1966171168
      %v4929 = vunpack.c.0.s8 %v4928
      %v4930 = vlaneseq
      %v4931 = vshrl.u32 %v4930, 7
      %v4932 = vsub.s32 %v4929, %v4931
      %v4933 = vrot.slane %v4911, %v4932
      %v4935 = vunpack.c.l.s4 1966171168
      %v4936 = vunpack.c.0.s8 %v4935
      %v4937 = vlaneseq
      %v4938 = vshrl.u32 %v4937, 7
      %v4939 = vsub.s32 %v4936, %v4938
      %v4940 = vrot.slane %v4912, %v4939
      %v4941 = vcombine.low %v4919, %v4926
      %v4942 = vcombine.high %v4919, %v4926
      %v4943 = vcombine.low %v4933, %v4940
      %v4944 = vcombine.high %v4933, %v4940
      %v4946 = vunpack.c.l.s4 1966171168
      %v4947 = vunpack.c.0.s8 %v4946
      %v4948 = vlaneseq
      %v4949 = vshrl.u32 %v4948, 7
      %v4950 = vsub.s32 %v4947, %v4949
      %v4951 = vrot.slane %v4941, %v4950
      %v4953 = vunpack.c.l.s4 1966171168
      %v4954 = vunpack.c.0.s8 %v4953
      %v4955 = vlaneseq
      %v4956 = vshrl.u32 %v4955, 7
      %v4957 = vsub.s32 %v4954, %v4956
      %v4958 = vrot.slane %v4942, %v4957
      %v4960 = vunpack.c.l.s4 1966171168
      %v4961 = vunpack.c.0.s8 %v4960
      %v4962 = vlaneseq
      %v4963 = vshrl.u32 %v4962, 7
      %v4964 = vsub.s32 %v4961, %v4963
      %v4965 = vrot.slane %v4943, %v4964
      %v4967 = vunpack.c.l.s4 1966171168
      %v4968 = vunpack.c.0.s8 %v4967
      %v4969 = vlaneseq
      %v4970 = vshrl.u32 %v4969, 7
      %v4971 = vsub.s32 %v4968, %v4970
      %v4972 = vrot.slane %v4944, %v4971
      %v4973 = vcombine.low %v4951, %v4965
      %v4974 = vcombine.high %v4951, %v4965
      %v4975 = vcombine.low %v4958, %v4972
      %v4976 = vcombine.high %v4958, %v4972
      %v5013 = vcombine.low %v3964, %v3966
      %v5014 = vcombine.low %v4035, %v4037
      %v5015 = vcombine.low %v4106, %v4108
      %v5016 = vcombine.low %v4177, %v4179
      %v5018 = vunpack.c.l.s4 1966171168
      %v5019 = vunpack.c.0.s8 %v5018
      %v5020 = vlaneseq
      %v5021 = vshrl.u32 %v5020, 7
      %v5022 = vsub.s32 %v5019, %v5021
      %v5023 = vrot.slane %v5013, %v5022
      %v5025 = vunpack.c.l.s4 1966171168
      %v5026 = vunpack.c.0.s8 %v5025
      %v5027 = vlaneseq
      %v5028 = vshrl.u32 %v5027, 7
      %v5029 = vsub.s32 %v5026, %v5028
      %v5030 = vrot.slane %v5014, %v5029
      %v5032 = vunpack.c.l.s4 1966171168
      %v5033 = vunpack.c.0.s8 %v5032
      %v5034 = vlaneseq
      %v5035 = vshrl.u32 %v5034, 7
      %v5036 = vsub.s32 %v5033, %v5035
      %v5037 = vrot.slane %v5015, %v5036
      %v5039 = vunpack.c.l.s4 1966171168
      %v5040 = vunpack.c.0.s8 %v5039
      %v5041 = vlaneseq
      %v5042 = vshrl.u32 %v5041, 7
      %v5043 = vsub.s32 %v5040, %v5042
      %v5044 = vrot.slane %v5016, %v5043
      %v5045 = vcombine.low %v5023, %v5030
      %v5046 = vcombine.high %v5023, %v5030
      %v5047 = vcombine.low %v5037, %v5044
      %v5048 = vcombine.high %v5037, %v5044
      %v5050 = vunpack.c.l.s4 1966171168
      %v5051 = vunpack.c.0.s8 %v5050
      %v5052 = vlaneseq
      %v5053 = vshrl.u32 %v5052, 7
      %v5054 = vsub.s32 %v5051, %v5053
      %v5055 = vrot.slane %v5045, %v5054
      %v5057 = vunpack.c.l.s4 1966171168
      %v5058 = vunpack.c.0.s8 %v5057
      %v5059 = vlaneseq
      %v5060 = vshrl.u32 %v5059, 7
      %v5061 = vsub.s32 %v5058, %v5060
      %v5062 = vrot.slane %v5046, %v5061
      %v5064 = vunpack.c.l.s4 1966171168
      %v5065 = vunpack.c.0.s8 %v5064
      %v5066 = vlaneseq
      %v5067 = vshrl.u32 %v5066, 7
      %v5068 = vsub.s32 %v5065, %v5067
      %v5069 = vrot.slane %v5047, %v5068
      %v5071 = vunpack.c.l.s4 1966171168
      %v5072 = vunpack.c.0.s8 %v5071
      %v5073 = vlaneseq
      %v5074 = vshrl.u32 %v5073, 7
      %v5075 = vsub.s32 %v5072, %v5074
      %v5076 = vrot.slane %v5048, %v5075
      %v5077 = vcombine.low %v5055, %v5069
      %v5078 = vcombine.high %v5055, %v5069
      %v5079 = vcombine.low %v5062, %v5076
      %v5080 = vcombine.high %v5062, %v5076
      %v5081 = vcombine.low %v4248, %v4250
      %v5082 = vcombine.low %v4319, %v4321
      %v5083 = vcombine.low %v4390, %v4392
      %v5084 = vcombine.low %v4461, %v4463
      %v5086 = vunpack.c.l.s4 1966171168
      %v5087 = vunpack.c.0.s8 %v5086
      %v5088 = vlaneseq
      %v5089 = vshrl.u32 %v5088, 7
      %v5090 = vsub.s32 %v5087, %v5089
      %v5091 = vrot.slane %v5081, %v5090
      %v5093 = vunpack.c.l.s4 1966171168
      %v5094 = vunpack.c.0.s8 %v5093
      %v5095 = vlaneseq
      %v5096 = vshrl.u32 %v5095, 7
      %v5097 = vsub.s32 %v5094, %v5096
      %v5098 = vrot.slane %v5082, %v5097
      %v5100 = vunpack.c.l.s4 1966171168
      %v5101 = vunpack.c.0.s8 %v5100
      %v5102 = vlaneseq
      %v5103 = vshrl.u32 %v5102, 7
      %v5104 = vsub.s32 %v5101, %v5103
      %v5105 = vrot.slane %v5083, %v5104
      %v5107 = vunpack.c.l.s4 1966171168
      %v5108 = vunpack.c.0.s8 %v5107
      %v5109 = vlaneseq
      %v5110 = vshrl.u32 %v5109, 7
      %v5111 = vsub.s32 %v5108, %v5110
      %v5112 = vrot.slane %v5084, %v5111
      %v5113 = vcombine.low %v5091, %v5098
      %v5114 = vcombine.high %v5091, %v5098
      %v5115 = vcombine.low %v5105, %v5112
      %v5116 = vcombine.high %v5105, %v5112
      %v5118 = vunpack.c.l.s4 1966171168
      %v5119 = vunpack.c.0.s8 %v5118
      %v5120 = vlaneseq
      %v5121 = vshrl.u32 %v5120, 7
      %v5122 = vsub.s32 %v5119, %v5121
      %v5123 = vrot.slane %v5113, %v5122
      %v5125 = vunpack.c.l.s4 1966171168
      %v5126 = vunpack.c.0.s8 %v5125
      %v5127 = vlaneseq
      %v5128 = vshrl.u32 %v5127, 7
      %v5129 = vsub.s32 %v5126, %v5128
      %v5130 = vrot.slane %v5114, %v5129
      %v5132 = vunpack.c.l.s4 1966171168
      %v5133 = vunpack.c.0.s8 %v5132
      %v5134 = vlaneseq
      %v5135 = vshrl.u32 %v5134, 7
      %v5136 = vsub.s32 %v5133, %v5135
      %v5137 = vrot.slane %v5115, %v5136
      %v5139 = vunpack.c.l.s4 1966171168
      %v5140 = vunpack.c.0.s8 %v5139
      %v5141 = vlaneseq
      %v5142 = vshrl.u32 %v5141, 7
      %v5143 = vsub.s32 %v5140, %v5142
      %v5144 = vrot.slane %v5116, %v5143
      %v5145 = vcombine.low %v5123, %v5137
      %v5146 = vcombine.high %v5123, %v5137
      %v5147 = vcombine.low %v5130, %v5144
      %v5148 = vcombine.high %v5130, %v5144
      %v5149 = vcombine.low %v4532, %v4534
      %v5150 = vcombine.low %v4603, %v4605
      %v5151 = vcombine.low %v4674, %v4676
      %v5152 = vcombine.low %v4745, %v4747
      %v5154 = vunpack.c.l.s4 1966171168
      %v5155 = vunpack.c.0.s8 %v5154
      %v5156 = vlaneseq
      %v5157 = vshrl.u32 %v5156, 7
      %v5158 = vsub.s32 %v5155, %v5157
      %v5159 = vrot.slane %v5149, %v5158
      %v5161 = vunpack.c.l.s4 1966171168
      %v5162 = vunpack.c.0.s8 %v5161
      %v5163 = vlaneseq
      %v5164 = vshrl.u32 %v5163, 7
      %v5165 = vsub.s32 %v5162, %v5164
      %v5166 = vrot.slane %v5150, %v5165
      %v5168 = vunpack.c.l.s4 1966171168
      %v5169 = vunpack.c.0.s8 %v5168
      %v5170 = vlaneseq
      %v5171 = vshrl.u32 %v5170, 7
      %v5172 = vsub.s32 %v5169, %v5171
      %v5173 = vrot.slane %v5151, %v5172
      %v5175 = vunpack.c.l.s4 1966171168
      %v5176 = vunpack.c.0.s8 %v5175
      %v5177 = vlaneseq
      %v5178 = vshrl.u32 %v5177, 7
      %v5179 = vsub.s32 %v5176, %v5178
      %v5180 = vrot.slane %v5152, %v5179
      %v5181 = vcombine.low %v5159, %v5166
      %v5182 = vcombine.high %v5159, %v5166
      %v5183 = vcombine.low %v5173, %v5180
      %v5184 = vcombine.high %v5173, %v5180
      %v5186 = vunpack.c.l.s4 1966171168
      %v5187 = vunpack.c.0.s8 %v5186
      %v5188 = vlaneseq
      %v5189 = vshrl.u32 %v5188, 7
      %v5190 = vsub.s32 %v5187, %v5189
      %v5191 = vrot.slane %v5181, %v5190
      %v5193 = vunpack.c.l.s4 1966171168
      %v5194 = vunpack.c.0.s8 %v5193
      %v5195 = vlaneseq
      %v5196 = vshrl.u32 %v5195, 7
      %v5197 = vsub.s32 %v5194, %v5196
      %v5198 = vrot.slane %v5182, %v5197
      %v5200 = vunpack.c.l.s4 1966171168
      %v5201 = vunpack.c.0.s8 %v5200
      %v5202 = vlaneseq
      %v5203 = vshrl.u32 %v5202, 7
      %v5204 = vsub.s32 %v5201, %v5203
      %v5205 = vrot.slane %v5183, %v5204
      %v5207 = vunpack.c.l.s4 1966171168
      %v5208 = vunpack.c.0.s8 %v5207
      %v5209 = vlaneseq
      %v5210 = vshrl.u32 %v5209, 7
      %v5211 = vsub.s32 %v5208, %v5210
      %v5212 = vrot.slane %v5184, %v5211
      %v5213 = vcombine.low %v5191, %v5205
      %v5214 = vcombine.high %v5191, %v5205
      %v5215 = vcombine.low %v5198, %v5212
      %v5216 = vcombine.high %v5198, %v5212
      %v5229 = vld [vmem:[%s5] sm:$0xff]
      %v5230 = vld [vmem:[%s5 + $0x8] sm:$0xff]
      %v5231 = vld [vmem:[%s5 + $0x10] sm:$0xff]
      %v5232 = vld [vmem:[%s5 + $0x18] sm:$0xff]
      %v5233 = vld [vmem:[%s5 + $0x20] sm:$0xff]
      %v5234 = vld [vmem:[%s5 + $0x28] sm:$0xff]
      %v5235 = vld [vmem:[%s5 + $0x30] sm:$0xff]
      %v5236 = vld [vmem:[%s5 + $0x38] sm:$0xff]
      %v5237 = vld [vmem:[%s5 + $0x40] sm:$0xff]
      %v5238 = vld [vmem:[%s5 + $0x48] sm:$0xff]
      %v5239 = vld [vmem:[%s5 + $0x50] sm:$0xff]
      %v5240 = vld [vmem:[%s5 + $0x58] sm:$0xff]
      %v5241 = vld [vmem:[%s5 + $0x60] sm:$0xff]
      %v5242 = vld [vmem:[%s5 + $0x68] sm:$0xff]
      %v5243 = vld [vmem:[%s5 + $0x70] sm:$0xff]
      %v5244 = vld [vmem:[%s5 + $0x78] sm:$0xff]
      %v5245 = vld [vmem:[%s6] sm:$0xff]
      %v5246 = vld [vmem:[%s6 + $0x8] sm:$0xff]
      %v5247 = vld [vmem:[%s6 + $0x10] sm:$0xff]
      %v5248 = vld [vmem:[%s6 + $0x18] sm:$0xff]
      %v5249 = vld [vmem:[%s6 + $0x20] sm:$0xff]
      %v5250 = vld [vmem:[%s6 + $0x28] sm:$0xff]
      %v5251 = vld [vmem:[%s6 + $0x30] sm:$0xff]
      %v5252 = vld [vmem:[%s6 + $0x38] sm:$0xff]
      %v5253 = vld [vmem:[%s6 + $0x40] sm:$0xff]
      %v5254 = vld [vmem:[%s6 + $0x48] sm:$0xff]
      %v5255 = vld [vmem:[%s6 + $0x50] sm:$0xff]
      %v5256 = vld [vmem:[%s6 + $0x58] sm:$0xff]
      %v5257 = vld [vmem:[%s6 + $0x60] sm:$0xff]
      %v5258 = vld [vmem:[%s6 + $0x68] sm:$0xff]
      %v5259 = vld [vmem:[%s6 + $0x70] sm:$0xff]
      %v5260 = vld [vmem:[%s6 + $0x78] sm:$0xff]
      %5261 = vmatprep.subr.mxu0 0.0
      %5262 = vmatpush1.msra.mxu0 %v5260
      %5263 = vmatprep.subr.mxu0 0.0
      %5264 = vmatpush1.msra.mxu0 %v5259
      %5265 = vmatprep.subr.mxu0 0.0
      %5266 = vmatpush1.msra.mxu0 %v5258
      %5267 = vmatprep.subr.mxu0 0.0
      %5268 = vmatpush1.msra.mxu0 %v5257
      %5269 = vmatprep.subr.mxu0 0.0
      %5270 = vmatpush1.msra.mxu0 %v5256
      %5271 = vmatprep.subr.mxu0 0.0
      %5272 = vmatpush1.msra.mxu0 %v5255
      %5273 = vmatprep.subr.mxu0 0.0
      %5274 = vmatpush1.msra.mxu0 %v5254
      %5275 = vmatprep.subr.mxu0 0.0
      %5276 = vmatpush1.msra.mxu0 %v5253
      %5277 = vmatprep.subr.mxu0 0.0
      %5278 = vmatpush1.msra.mxu0 %v5252
      %5279 = vmatprep.subr.mxu0 0.0
      %5280 = vmatpush1.msra.mxu0 %v5251
      %5281 = vmatprep.subr.mxu0 0.0
      %5282 = vmatpush1.msra.mxu0 %v5250
      %5283 = vmatprep.subr.mxu0 0.0
      %5284 = vmatpush1.msra.mxu0 %v5249
      %5285 = vmatprep.subr.mxu0 0.0
      %5286 = vmatpush1.msra.mxu0 %v5248
      %5287 = vmatprep.subr.mxu0 0.0
      %5288 = vmatpush1.msra.mxu0 %v5247
      %5289 = vmatprep.subr.mxu0 0.0
      %5290 = vmatpush1.msra.mxu0 %v5246
      %5291 = vmatprep.subr.mxu0 0.0
      %5292 = vmatpush1.msra.mxu0 %v5245
      %5293 = vmatprep.subr.mxu0 0.0
      %5294 = vmatpush2.msra.mxu0 0.0
      %5295 = vmatprep.subr.mxu0 0.0
      %5296 = vmatpush2.msra.mxu0 0.0
      %5297 = vmatprep.subr.mxu0 0.0
      %5298 = vmatpush2.msra.mxu0 0.0
      %5299 = vmatprep.subr.mxu0 0.0
      %5300 = vmatpush2.msra.mxu0 0.0
      %5301 = vmatprep.subr.mxu0 0.0
      %5302 = vmatpush2.msra.mxu0 0.0
      %5303 = vmatprep.subr.mxu0 0.0
      %5304 = vmatpush2.msra.mxu0 0.0
      %5305 = vmatprep.subr.mxu0 0.0
      %5306 = vmatpush2.msra.mxu0 0.0
      %5307 = vmatprep.subr.mxu0 0.0
      %5308 = vmatpush2.msra.mxu0 0.0
      %5309 = vmatprep.subr.mxu0 0.0
      %5310 = vmatpush2.msra.mxu0 0.0
      %5311 = vmatprep.subr.mxu0 0.0
      %5312 = vmatpush2.msra.mxu0 0.0
      %5313 = vmatprep.subr.mxu0 0.0
      %5314 = vmatpush2.msra.mxu0 0.0
      %5315 = vmatprep.subr.mxu0 0.0
      %5316 = vmatpush2.msra.mxu0 0.0
      %5317 = vmatprep.subr.mxu0 0.0
      %5318 = vmatpush2.msra.mxu0 0.0
      %5319 = vmatprep.subr.mxu0 0.0
      %5320 = vmatpush2.msra.mxu0 0.0
      %5321 = vmatprep.subr.mxu0 0.0
      %5322 = vmatpush2.msra.mxu0 0.0
      %5323 = vmatprep.subr.mxu0 0.0
      %5324 = vmatpush2.msra.mxu0 0.0
      %5325 = vmatprep.mubr.f32.mxu0 0.0
      %5326 = vmatmul.mubr.f32.gmra.mxu0 %v5077
      %v5327 = vpop.f32.mrf.mxu0
      %v5328 = vadd.f32 0.0, %v5327
      %v5329 = vpop.f32.mrf.mxu0
      %5330 = vmatprep.mubr.f32.mxu0 0.0
      %5331 = vmatmul.mubr.f32.gmra.mxu0 %v5145
      %v5332 = vpop.f32.mrf.mxu0
      %v5333 = vadd.f32 0.0, %v5332
      %v5334 = vpop.f32.mrf.mxu0
      %5335 = vmatprep.mubr.f32.mxu0 0.0
      %5336 = vmatmul.mubr.f32.gmra.mxu0 %v5213
      %v5337 = vpop.f32.mrf.mxu0
      %v5338 = vadd.f32 0.0, %v5337
      %v5339 = vpop.f32.mrf.mxu0
      %5340 = vmatprep.mubr.f32.mxu0 0.0
      %5341 = vmatmul.mubr.f32.gmra.mxu0 %v5079
      %v5342 = vpop.f32.mrf.mxu0
      %v5343 = vadd.f32 0.0, %v5342
      %v5344 = vpop.f32.mrf.mxu0
      %5345 = vmatprep.mubr.f32.mxu0 0.0
      %5346 = vmatmul.mubr.f32.gmra.mxu0 %v5147
      %v5347 = vpop.f32.mrf.mxu0
      %v5348 = vadd.f32 0.0, %v5347
      %v5349 = vpop.f32.mrf.mxu0
      %5350 = vmatprep.mubr.f32.mxu0 0.0
      %5351 = vmatmul.mubr.f32.gmra.mxu0 %v5215
      %v5352 = vpop.f32.mrf.mxu0
      %v5353 = vadd.f32 0.0, %v5352
      %v5354 = vpop.f32.mrf.mxu0
      %5355 = vmatprep.mubr.f32.mxu0 0.0
      %5356 = vmatmul.mubr.f32.gmra.mxu0 %v5078
      %v5357 = vpop.f32.mrf.mxu0
      %v5358 = vadd.f32 0.0, %v5357
      %v5359 = vpop.f32.mrf.mxu0
      %5360 = vmatprep.mubr.f32.mxu0 0.0
      %5361 = vmatmul.mubr.f32.gmra.mxu0 %v5146
      %v5362 = vpop.f32.mrf.mxu0
      %v5363 = vadd.f32 0.0, %v5362
      %v5364 = vpop.f32.mrf.mxu0
      %5365 = vmatprep.mubr.f32.mxu0 0.0
      %5366 = vmatmul.mubr.f32.gmra.mxu0 %v5214
      %v5367 = vpop.f32.mrf.mxu0
      %v5368 = vadd.f32 0.0, %v5367
      %v5369 = vpop.f32.mrf.mxu0
      %5370 = vmatprep.mubr.f32.mxu0 0.0
      %5371 = vmatmul.mubr.f32.gmra.mxu0 %v5080
      %v5372 = vpop.f32.mrf.mxu0
      %v5373 = vadd.f32 0.0, %v5372
      %v5374 = vpop.f32.mrf.mxu0
      %5375 = vmatprep.mubr.f32.mxu0 0.0
      %5376 = vmatmul.mubr.f32.gmra.mxu0 %v5148
      %v5377 = vpop.f32.mrf.mxu0
      %v5378 = vadd.f32 0.0, %v5377
      %v5379 = vpop.f32.mrf.mxu0
      %5380 = vmatprep.mubr.f32.mxu0 0.0
      %5381 = vmatmul.mubr.f32.gmra.mxu0 %v5216
      %v5382 = vpop.f32.mrf.mxu0
      %v5383 = vadd.f32 0.0, %v5382
      %v5384 = vpop.f32.mrf.mxu0
      %5385 = vdwg.mxu0
      %5386 = vmatprep.subr.mxu0 0.0
      %5387 = vmatpush1.msra.mxu0 %v5244
      %5388 = vmatprep.subr.mxu0 0.0
      %5389 = vmatpush1.msra.mxu0 %v5243
      %5390 = vmatprep.subr.mxu0 0.0
      %5391 = vmatpush1.msra.mxu0 %v5242
      %5392 = vmatprep.subr.mxu0 0.0
      %5393 = vmatpush1.msra.mxu0 %v5241
      %5394 = vmatprep.subr.mxu0 0.0
      %5395 = vmatpush1.msra.mxu0 %v5240
      %5396 = vmatprep.subr.mxu0 0.0
      %5397 = vmatpush1.msra.mxu0 %v5239
      %5398 = vmatprep.subr.mxu0 0.0
      %5399 = vmatpush1.msra.mxu0 %v5238
      %5400 = vmatprep.subr.mxu0 0.0
      %5401 = vmatpush1.msra.mxu0 %v5237
      %5402 = vmatprep.subr.mxu0 0.0
      %5403 = vmatpush1.msra.mxu0 %v5236
      %5404 = vmatprep.subr.mxu0 0.0
      %5405 = vmatpush1.msra.mxu0 %v5235
      %5406 = vmatprep.subr.mxu0 0.0
      %5407 = vmatpush1.msra.mxu0 %v5234
      %5408 = vmatprep.subr.mxu0 0.0
      %5409 = vmatpush1.msra.mxu0 %v5233
      %5410 = vmatprep.subr.mxu0 0.0
      %5411 = vmatpush1.msra.mxu0 %v5232
      %5412 = vmatprep.subr.mxu0 0.0
      %5413 = vmatpush1.msra.mxu0 %v5231
      %5414 = vmatprep.subr.mxu0 0.0
      %5415 = vmatpush1.msra.mxu0 %v5230
      %5416 = vmatprep.subr.mxu0 0.0
      %5417 = vmatpush1.msra.mxu0 %v5229
      %5418 = vmatprep.subr.mxu0 0.0
      %5419 = vmatpush2.msra.mxu0 0.0
      %5420 = vmatprep.subr.mxu0 0.0
      %5421 = vmatpush2.msra.mxu0 0.0
      %5422 = vmatprep.subr.mxu0 0.0
      %5423 = vmatpush2.msra.mxu0 0.0
      %5424 = vmatprep.subr.mxu0 0.0
      %5425 = vmatpush2.msra.mxu0 0.0
      %5426 = vmatprep.subr.mxu0 0.0
      %5427 = vmatpush2.msra.mxu0 0.0
      %5428 = vmatprep.subr.mxu0 0.0
      %5429 = vmatpush2.msra.mxu0 0.0
      %5430 = vmatprep.subr.mxu0 0.0
      %5431 = vmatpush2.msra.mxu0 0.0
      %5432 = vmatprep.subr.mxu0 0.0
      %5433 = vmatpush2.msra.mxu0 0.0
      %5434 = vmatprep.subr.mxu0 0.0
      %5435 = vmatpush2.msra.mxu0 0.0
      %5436 = vmatprep.subr.mxu0 0.0
      %5437 = vmatpush2.msra.mxu0 0.0
      %5438 = vmatprep.subr.mxu0 0.0
      %5439 = vmatpush2.msra.mxu0 0.0
      %5440 = vmatprep.subr.mxu0 0.0
      %5441 = vmatpush2.msra.mxu0 0.0
      %5442 = vmatprep.subr.mxu0 0.0
      %5443 = vmatpush2.msra.mxu0 0.0
      %5444 = vmatprep.subr.mxu0 0.0
      %5445 = vmatpush2.msra.mxu0 0.0
      %5446 = vmatprep.subr.mxu0 0.0
      %5447 = vmatpush2.msra.mxu0 0.0
      %5448 = vmatprep.subr.mxu0 0.0
      %5449 = vmatpush2.msra.mxu0 0.0
      %5450 = vmatprep.mubr.f32.mxu0 0.0
      %5451 = vmatmul.mubr.f32.gmra.mxu0 %v4837
      %v5452 = vpop.f32.mrf.mxu0
      %v5453 = vadd.f32 %v5328, %v5452
      %v5454 = vpop.f32.mrf.mxu0
      %5455 = vmatprep.mubr.f32.mxu0 0.0
      %5456 = vmatmul.mubr.f32.gmra.mxu0 %v4905
      %v5457 = vpop.f32.mrf.mxu0
      %v5458 = vadd.f32 %v5333, %v5457
      %v5459 = vpop.f32.mrf.mxu0
      %5460 = vmatprep.mubr.f32.mxu0 0.0
      %5461 = vmatmul.mubr.f32.gmra.mxu0 %v4973
      %v5462 = vpop.f32.mrf.mxu0
      %v5463 = vadd.f32 %v5338, %v5462
      %v5464 = vpop.f32.mrf.mxu0
      %5465 = vmatprep.mubr.f32.mxu0 0.0
      %5466 = vmatmul.mubr.f32.gmra.mxu0 %v4839
      %v5467 = vpop.f32.mrf.mxu0
      %v5468 = vadd.f32 %v5343, %v5467
      %v5469 = vpop.f32.mrf.mxu0
      %5470 = vmatprep.mubr.f32.mxu0 0.0
      %5471 = vmatmul.mubr.f32.gmra.mxu0 %v4907
      %v5472 = vpop.f32.mrf.mxu0
      %v5473 = vadd.f32 %v5348, %v5472
      %v5474 = vpop.f32.mrf.mxu0
      %5475 = vmatprep.mubr.f32.mxu0 0.0
      %5476 = vmatmul.mubr.f32.gmra.mxu0 %v4975
      %v5477 = vpop.f32.mrf.mxu0
      %v5478 = vadd.f32 %v5353, %v5477
      %v5479 = vpop.f32.mrf.mxu0
      %5480 = vmatprep.mubr.f32.mxu0 0.0
      %5481 = vmatmul.mubr.f32.gmra.mxu0 %v4838
      %v5482 = vpop.f32.mrf.mxu0
      %v5483 = vadd.f32 %v5358, %v5482
      %v5484 = vpop.f32.mrf.mxu0
      %5485 = vmatprep.mubr.f32.mxu0 0.0
      %5486 = vmatmul.mubr.f32.gmra.mxu0 %v4906
      %v5487 = vpop.f32.mrf.mxu0
      %v5488 = vadd.f32 %v5363, %v5487
      %v5489 = vpop.f32.mrf.mxu0
      %5490 = vmatprep.mubr.f32.mxu0 0.0
      %5491 = vmatmul.mubr.f32.gmra.mxu0 %v4974
      %v5492 = vpop.f32.mrf.mxu0
      %v5493 = vadd.f32 %v5368, %v5492
      %v5494 = vpop.f32.mrf.mxu0
      %5495 = vmatprep.mubr.f32.mxu0 0.0
      %5496 = vmatmul.mubr.f32.gmra.mxu0 %v4840
      %v5497 = vpop.f32.mrf.mxu0
      %v5498 = vadd.f32 %v5373, %v5497
      %v5499 = vpop.f32.mrf.mxu0
      %5500 = vmatprep.mubr.f32.mxu0 0.0
      %5501 = vmatmul.mubr.f32.gmra.mxu0 %v4908
      %v5502 = vpop.f32.mrf.mxu0
      %v5503 = vadd.f32 %v5378, %v5502
      %v5504 = vpop.f32.mrf.mxu0
      %5505 = vmatprep.mubr.f32.mxu0 0.0
      %5506 = vmatmul.mubr.f32.gmra.mxu0 %v4976
      %v5507 = vpop.f32.mrf.mxu0
      %v5508 = vadd.f32 %v5383, %v5507
      %v5509 = vpop.f32.mrf.mxu0
      %5510 = vdwg.mxu0
      %5511 = vst.msk [vmem:[%s356] sm:$0xff] %vm378, %v5453
      %5512 = vst.msk [vmem:[%s356 + $0x8] sm:$0xff] %vm378, %v5458
      %5513 = vst.msk [vmem:[%s356 + $0x10] sm:$0xff] %vm378, %v5463
      %5514 = vst.msk [vmem:[%s356 + $0x18] sm:$0xff] %vm378, %v5468
      %5515 = vst.msk [vmem:[%s356 + $0x20] sm:$0xff] %vm378, %v5473
      %5516 = vst.msk [vmem:[%s356 + $0x28] sm:$0xff] %vm378, %v5478
      %5517 = vst.msk [vmem:[%s356 + $0x30] sm:$0xff] %vm378, %v5483
      %5518 = vst.msk [vmem:[%s356 + $0x38] sm:$0xff] %vm378, %v5488
      %5519 = vst.msk [vmem:[%s356 + $0x40] sm:$0xff] %vm378, %v5493
      %5520 = vst.msk [vmem:[%s356 + $0x48] sm:$0xff] %vm378, %v5498
      %5521 = vst.msk [vmem:[%s356 + $0x50] sm:$0xff] %vm378, %v5503
      %5522 = vst.msk [vmem:[%s356 + $0x58] sm:$0xff] %vm378, %v5508
      %s5523 = smul.u32 3, %s22
      %p5524 = scmp.lt.s32.totalorder %s23, 1
      %s5525 = scalar_select %p5524, %s23, 1
      %p5526 = scmp.lt.s32.totalorder %s5523, 2
      %s5527 = scalar_select %p5526, %s5523, 2
      %s5528 = smul.addr %s5525, 12
      %s5529 = sadd.s32 %s5527, %s5528
      %s5530 = smul.addr %s5529, 8
      %s5531 = scalar_lea.vmem %s7, %s5530
      // Predicated region
      $region49: #{spectral_transform.4} parent=47 // pred_check
        %p5532 = pneg %p214
      $region50: #{spectral_transform.4} parent=47 // pred_check_branch
        %5534 = sbr.rel (%p5532) target = $region52
      $region51: #{spectral_transform.4} parent=47 // pred_region
        %s5535 = smul.u32 3, %s22
      $region52: #{spectral_transform.4} parent=47 // pred_fallthru
        _
    $region48: #{spectral_transform.4} parent=5 // pred_fallthru
      _
    %p5536 = scmp.le.s32.totalorder 2, %s13
    // Predicated region
    $region53: #{spectral_transform.4} parent=5 // pred_check
      %p5537 = pneg %p5536
    $region54: #{spectral_transform.4} parent=5 // pred_check_branch
      %5539 = sbr.rel (%p5537) target = $region56
    $region55: #{spectral_transform.4} parent=5 // pred_region
      %s5540 = ssub.s32 %s13, 2
      // Predicated region
      $region57: #{spectral_transform.4} parent=55 // pred_check
        %p5541 = pneg %p220
      $region58: #{spectral_transform.4} parent=55 // pred_check_branch
        %5543 = sbr.rel (%p5541) target = $region60
      $region59: #{spectral_transform.4} parent=55 // pred_region
        %s5544 = smul.u32 3, %s24
        %p5545 = scmp.lt.s32.totalorder %s25, 1
        %s5546 = scalar_select %p5545, %s25, 1
        %p5547 = scmp.lt.s32.totalorder %s5544, 2
        %s5548 = scalar_select %p5547, %s5544, 2
        %s5549 = smul.addr %s5546, 12
        %s5550 = sadd.s32 %s5548, %s5549
        %s5551 = smul.addr %s5550, 8
        %s5552 = scalar_lea.vmem %s7, %s5551
      $region60: #{spectral_transform.4} parent=55 // pred_fallthru
        _
    $region56: #{spectral_transform.4} parent=5 // pred_fallthru
      _
  $region6: #{spectral_transform.4} parent=0 // loop_footer
    %s17 = sadd.s32 1, %s13
  $region7: #{spectral_transform.4} parent=0 // loop_footer_branch
    %12 = sbr.rel target = $region3
  $region8: #{spectral_transform.4} parent=0 // loop_exit
    _

// kernel: spectral_transform.5
$region0: #{spectral_transform.5}
  #allocation0 [shape = 'u32[]', space=smem, size = 0x4, offset = 0x4, fixed_abs, tag = 'smem constant byte address 0x4 - core index']
  #allocation1 [shape = 'u32[144,128]{1,0:T(1,128)}', space=vmem, size = 0x12000, scoped, tag = 'internal scratch']
  %s0 = inlined_call_operand.vmem [shape: f32[2,4,128], index: 0, kind: input, shape index: {}]
  %s1 = inlined_call_operand.vmem [shape: f32[2,4,128], index: 1, kind: input, shape index: {}]
  %s2 = inlined_call_operand.vmem [shape: f32[8,4], index: 2, kind: input, shape index: {}]
  %s3 = inlined_call_operand.hbm [shape: f32[2,8,128], index: 3, kind: output, shape index: {}]
  %s4 = sld [smem:[#allocation0]]
  $region45: #{spectral_transform.5} parent=0
    _
  %s6 = ssub.s32 1, %s4
  %s7 = scalar_select 0, %s6, %s4
  $region1: #{spectral_transform.5} parent=0
    #allocation2 [shape = 'u8[8192]{0}', space=vmem, size = 0x2000, scoped, tag = 'output window, operand 0']
    #allocation3 [shape = 's32[2]{0}', space=sflag, size = 0x8, scoped, tag = 'scoped memory for spectral_transform.5']
    %8 = vsyncpa [#allocation3], 0
    %s9 = scalar_lea.sflag [#allocation3], 1
    %10 = vsyncpa %s9, 0
    loop: start=0, step=1, limit=4
    $region2: #{spectral_transform.5} parent=1 // loop_pre_header
      _
    $region3: #{spectral_transform.5} parent=1 // loop_header
      %s12 = sphi 0, %s16
      %p13 = scmp.ge.s32.totalorder %s12, 4
      %s19 = sphi 0, %s31
      %s20 = sphi 0, %s27
      %s21 = sphi 0, %s19
      %s22 = sphi 0, %s20
      %s23 = sphi 0, %s21
      %s24 = sphi 0, %s22
      %s36 = sphi 0, %s38
      %s39 = sphi 0, %s36
      %s40 = sphi 0, %s39
      %s56 = sphi 0, %s40
      %s64 = sphi 0, %s66
      %s67 = sphi 0, %s64
      %s68 = sphi 0, %s67
      %s84 = sphi 0, %s68
      %s88 = sphi 0, %s88
      %s90 = sphi 0, %s88
      %s91 = sphi 0, %s90
      %s105 = sphi 0, %s91
      %s113 = sphi 0, %s115
      %s116 = sphi 0, %s113
      %s117 = sphi 0, %s116
      %s133 = sphi 0, %s117
    $region4: #{spectral_transform.5} parent=1 // loop_header_branch
      %15 = sbr.rel (%p13) target = $region8
    $region5: #{spectral_transform.5} parent=1 // loop_body
      %s17 = ssub.s32 %s12, 1
      %s18 = ssub.s32 %s12, 2
      %s25 = sadd.s32 1, %s20
      %p26 = scmp.ge.s32.totalorder %s25, 2
      %s27 = scalar_select %p26, 0, %s25
      %s28 = sadd.s32 1, %s19
      %s29 = scalar_select %p26, %s28, %s19
      %p30 = scmp.ge.s32.totalorder %s29, 1
      %s31 = scalar_select %p30, 0, %s29
      %s32 = ssub.s32 %s20, %s27
      %s33 = ssub.s32 %s19, %s31
      %s34 = sor.u32 %s32, %s33
      %p35 = scmp.eq.s32.totalorder %s34, 0
      %s37 = sadd.s32 %s36, 1
      %s38 = scalar_select %p35, %s36, %s37
      %p41 = pneg %p35
      %p42 = scmp.eq.s32.totalorder %s12, 1
      %p43 = por %p41, %p42
      %p44 = scmp.ne.s32.totalorder %s36, %s39
      %p45 = scmp.eq.s32.totalorder %s12, 0
      %p46 = por %p44, %p45
      %p47 = scmp.ne.s32.totalorder %s36, %s39
      %p48 = scmp.eq.s32.totalorder %s17, 1
      %p49 = por %p47, %p48
      %p50 = scmp.ne.s32.totalorder %s39, %s40
      %p51 = scmp.eq.s32.totalorder %s17, 0
      %p52 = por %p50, %p51
      %p53 = scmp.ne.s32.totalorder %s39, %s40
      %p54 = scmp.eq.s32.totalorder %s18, 1
      %p55 = por %p53, %p54
      %p57 = scmp.ne.s32.totalorder %s40, %s56
      %p58 = scmp.eq.s32.totalorder %s18, 0
      %p59 = por %p57, %p58
      %s60 = ssub.s32 %s20, %s27
      %s61 = ssub.s32 %s19, %s31
      %s62 = sor.u32 %s60, %s61
      %p63 = scmp.eq.s32.totalorder %s62, 0
      %s65 = sadd.s32 %s64, 1
      %s66 = scalar_select %p63, %s64, %s65
      %p69 = pneg %p63
      %p70 = scmp.eq.s32.totalorder %s12, 1
      %p71 = por %p69, %p70
      %p72 = scmp.ne.s32.totalorder %s64, %s67
      %p73 = scmp.eq.s32.totalorder %s12, 0
      %p74 = por %p72, %p73
      %p75 = scmp.ne.s32.totalorder %s64, %s67
      %p76 = scmp.eq.s32.totalorder %s17, 1
      %p77 = por %p75, %p76
      %p78 = scmp.ne.s32.totalorder %s67, %s68
      %p79 = scmp.eq.s32.totalorder %s17, 0
      %p80 = por %p78, %p79
      %p81 = scmp.ne.s32.totalorder %s67, %s68
      %p82 = scmp.eq.s32.totalorder %s18, 1
      %p83 = por %p81, %p82
      %p85 = scmp.ne.s32.totalorder %s68, %s84
      %p86 = scmp.eq.s32.totalorder %s18, 0
      %p87 = por %p85, %p86
      %s89 = sadd.s32 %s88, 1
      %p92 = scmp.eq.s32.totalorder %s12, 1
      %p93 = scmp.ne.s32.totalorder %s88, %s90
      %p94 = scmp.eq.s32.totalorder %s12, 0
      %p95 = por %p93, %p94
      %p96 = scmp.ne.s32.totalorder %s88, %s90
      %p97 = scmp.eq.s32.totalorder %s17, 1
      %p98 = por %p96, %p97
      %p99 = scmp.ne.s32.totalorder %s90, %s91
      %p100 = scmp.eq.s32.totalorder %s17, 0
      %p101 = por %p99, %p100
      %p102 = scmp.ne.s32.totalorder %s90, %s91
      %p103 = scmp.eq.s32.totalorder %s18, 1
      %p104 = por %p102, %p103
      %p106 = scmp.ne.s32.totalorder %s91, %s105
      %p107 = scmp.eq.s32.totalorder %s18, 0
      %p108 = por %p106, %p107
      %s109 = ssub.s32 %s20, %s27
      %s110 = ssub.s32 %s19, %s31
      %s111 = sor.u32 %s109, %s110
      %p112 = scmp.eq.s32.totalorder %s111, 0
      %s114 = sadd.s32 %s113, 1
      %s115 = scalar_select %p112, %s113, %s114
      %p118 = pneg %p112
      %p119 = scmp.eq.s32.totalorder %s12, 1
      %p120 = por %p118, %p119
      %p121 = scmp.ne.s32.totalorder %s113, %s116
      %p122 = scmp.eq.s32.totalorder %s12, 0
      %p123 = por %p121, %p122
      %p124 = scmp.ne.s32.totalorder %s113, %s116
      %p125 = scmp.eq.s32.totalorder %s17, 1
      %p126 = por %p124, %p125
      %p127 = scmp.ne.s32.totalorder %s116, %s117
      %p128 = scmp.eq.s32.totalorder %s17, 0
      %p129 = por %p127, %p128
      %p130 = scmp.ne.s32.totalorder %s116, %s117
      %p131 = scmp.eq.s32.totalorder %s18, 1
      %p132 = por %p130, %p131
      %p134 = scmp.ne.s32.totalorder %s117, %s133
      %p135 = scmp.eq.s32.totalorder %s18, 0
      %p136 = por %p134, %p135
      %p137 = scmp.le.s32.totalorder 1, %s12
      %p138 = scmp.lt.s32.totalorder %s12, 3
      %p139 = pnand %p137, %p138
      %p140 = pneg %p139
      // Predicated region
      $region9: #{spectral_transform.5} parent=5 // pred_check
        _
      $region10: #{spectral_transform.5} parent=5 // pred_check_branch
        %142 = sbr.rel (%p139) target = $region12
      $region11: #{spectral_transform.5} parent=5 // pred_region
        %s143 = ssub.s32 %s12, 1
        // Predicated region
        $region13: #{spectral_transform.5} parent=11 // pred_check
          %p144 = pneg %p101
        $region14: #{spectral_transform.5} parent=11 // pred_check_branch
          %146 = sbr.rel (%p144) target = $region16
        $region15: #{spectral_transform.5} parent=11 // pred_region
          _
        $region16: #{spectral_transform.5} parent=11 // pred_fallthru
          _
      $region12: #{spectral_transform.5} parent=5 // pred_fallthru
        _
      %p147 = scmp.lt.s32.totalorder %s12, 2
      // Predicated region
      $region17: #{spectral_transform.5} parent=5 // pred_check
        %p148 = pneg %p147
      $region18: #{spectral_transform.5} parent=5 // pred_check_branch
        %150 = sbr.rel (%p148) target = $region20
      $region19: #{spectral_transform.5} parent=5 // pred_region
        // Predicated region
        $region21: #{spectral_transform.5} parent=19 // pred_check
          %p151 = pneg %p46
        $region22: #{spectral_transform.5} parent=19 // pred_check_branch
          %153 = sbr.rel (%p151) target = $region24
        $region23: #{spectral_transform.5} parent=19 // pred_region
          %p154 = scmp.lt.s32.totalorder %s20, 1
          %s155 = scalar_select %p154, %s20, 1
          %p156 = scmp.lt.s32.totalorder %s19, 0
          %s157 = scalar_select %p156, %s19, 0
          %s158 = sadd.s32 %s157, %s155
          %s159 = smul.addr %s158, 4
          %s160 = scalar_lea.vmem %s0, %s159
        $region24: #{spectral_transform.5} parent=19 // pred_fallthru
          _
        // Predicated region
        $region25: #{spectral_transform.5} parent=19 // pred_check
          %p161 = pneg %p74
        $region26: #{spectral_transform.5} parent=19 // pred_check_branch
          %163 = sbr.rel (%p161) target = $region28
        $region27: #{spectral_transform.5} parent=19 // pred_region
          %p164 = scmp.lt.s32.totalorder %s20, 1
          %s165 = scalar_select %p164, %s20, 1
          %p166 = scmp.lt.s32.totalorder %s19, 0
          %s167 = scalar_select %p166, %s19, 0
          %s168 = sadd.s32 %s167, %s165
          %s169 = smul.addr %s168, 4
          %s170 = scalar_lea.vmem %s1, %s169
        $region28: #{spectral_transform.5} parent=19 // pred_fallthru
          _
      $region20: #{spectral_transform.5} parent=5 // pred_fallthru
        _
      %p171 = scmp.le.s32.totalorder 1, %s12
      %p172 = scmp.lt.s32.totalorder %s12, 3
      %p173 = pnand %p171, %p172
      %p174 = pneg %p173
      // Predicated region
      $region29: #{spectral_transform.5} parent=5 // pred_check
        _
      $region30: #{spectral_transform.5} parent=5 // pred_check_branch
        %176 = sbr.rel (%p173) target = $region32
      $region31: #{spectral_transform.5} parent=5 // pred_region
        %s177 = ssub.s32 %s12, 1
        %p178 = scmp.lt.s32.totalorder %s22, 1
        %s179 = scalar_select %p178, %s22, 1
        %p180 = scmp.lt.s32.totalorder %s21, 0
        %s181 = scalar_select %p180, %s21, 0
        %s182 = sadd.s32 %s181, %s179
        %s183 = smul.addr %s182, 4
        %s184 = scalar_lea.vmem %s0, %s183
        %p185 = pneg %p52
        %p186 = pneg %p49
        %p187 = scmp.lt.s32.totalorder %s22, 1
        %s188 = scalar_select %p187, %s22, 1
        %p189 = scmp.lt.s32.totalorder %s21, 0
        %s190 = scalar_select %p189, %s21, 0
        %s191 = sadd.s32 %s190, %s188
        %s192 = smul.addr %s191, 4
        %s193 = scalar_lea.vmem %s1, %s192
        %p194 = pneg %p80
        %p195 = pneg %p77
        %p196 = pneg %p101
        %p197 = pneg %p98
        %p198 = pneg %p129
        %p199 = pneg %p126
        %s200 = sand.u32 %s116, 1
        %s201 = scalar_lea.sflag [#allocation3], %s200
        %s202 = sand.u32 %s116, 1
        %s203 = smul.addr %s202, 8
        %s204 = scalar_lea.vmem [#allocation2], %s203
        %p205 = scmp.lt.s32.totalorder %s22, 1
        %s206 = scalar_select %p205, %s22, 1
        %p207 = scmp.lt.s32.totalorder %s21, 0
        %s208 = scalar_select %p207, %s21, 0
        %s209 = sadd.s32 %s208, %s206
        %s210 = smul.addr %s209, 4
        %s211 = scalar_lea.vmem %s0, %s210
        %p212 = scmp.lt.s32.totalorder %s22, 1
        %s213 = scalar_select %p212, %s22, 1
        %p214 = scmp.lt.s32.totalorder %s21, 0
        %s215 = scalar_select %p214, %s21, 0
        %s216 = sadd.s32 %s215, %s213
        %s217 = smul.addr %s216, 4
        %s218 = scalar_lea.vmem %s1, %s217
        %v219 = vld [vmem:[%s2] sm:$0xff]
        %v220 = vld [vmem:[%s211] sm:$0xf]
        %v221 = vld [vmem:[%s218] sm:$0xf]
        %v222 = vadd.f32 %v220, %v221
        %vm223 = vcmask 31744
        %v225 = vsel %vm223, %v219, 0
        %vm227 = vcmask 1043456
        %v229 = vsel %vm227, %v222, 0
        %231 = vmatprep.subr.mxu0 0.0
        %232 = vmatpush1.msra.mxu0 0.0
        %233 = vmatprep.subr.mxu0 0.0
        %234 = vmatpush1.msra.mxu0 0.0
        %235 = vmatprep.subr.mxu0 0.0
        %236 = vmatpush1.msra.mxu0 0.0
        %237 = vmatprep.subr.mxu0 0.0
        %238 = vmatpush1.msra.mxu0 0.0
        %239 = vmatprep.subr.mxu0 0.0
        %240 = vmatpush1.msra.mxu0 0.0
        %241 = vmatprep.subr.mxu0 0.0
        %242 = vmatpush1.msra.mxu0 0.0
        %243 = vmatprep.subr.mxu0 0.0
        %244 = vmatpush1.msra.mxu0 0.0
        %245 = vmatprep.subr.mxu0 0.0
        %246 = vmatpush1.msra.mxu0 0.0
        %247 = vmatprep.subr.mxu0 0.0
        %248 = vmatpush1.msra.mxu0 0.0
        %249 = vmatprep.subr.mxu0 0.0
        %250 = vmatpush1.msra.mxu0 0.0
        %251 = vmatprep.subr.mxu0 0.0
        %252 = vmatpush1.msra.mxu0 0.0
        %253 = vmatprep.subr.mxu0 0.0
        %254 = vmatpush1.msra.mxu0 0.0
        %255 = vmatprep.subr.mxu0 0.0
        %256 = vmatpush1.msra.mxu0 0.0
        %257 = vmatprep.subr.mxu0 0.0
        %258 = vmatpush1.msra.mxu0 0.0
        %259 = vmatprep.subr.mxu0 0.0
        %260 = vmatpush1.msra.mxu0 0.0
        %261 = vmatprep.subr.mxu0 0.0
        %262 = vmatpush1.msra.mxu0 %v229
        %263 = vmatprep.subr.mxu0 0.0
        %264 = vmatpush2.msra.mxu0 0.0
        %265 = vmatprep.subr.mxu0 0.0
        %266 = vmatpush2.msra.mxu0 0.0
        %267 = vmatprep.subr.mxu0 0.0
        %268 = vmatpush2.msra.mxu0 0.0
        %269 = vmatprep.subr.mxu0 0.0
        %270 = vmatpush2.msra.mxu0 0.0
        %271 = vmatprep.subr.mxu0 0.0
        %272 = vmatpush2.msra.mxu0 0.0
        %273 = vmatprep.subr.mxu0 0.0
        %274 = vmatpush2.msra.mxu0 0.0
        %275 = vmatprep.subr.mxu0 0.0
        %276 = vmatpush2.msra.mxu0 0.0
        %277 = vmatprep.subr.mxu0 0.0
        %278 = vmatpush2.msra.mxu0 0.0
        %279 = vmatprep.subr.mxu0 0.0
        %280 = vmatpush2.msra.mxu0 0.0
        %281 = vmatprep.subr.mxu0 0.0
        %282 = vmatpush2.msra.mxu0 0.0
        %283 = vmatprep.subr.mxu0 0.0
        %284 = vmatpush2.msra.mxu0 0.0
        %285 = vmatprep.subr.mxu0 0.0
        %286 = vmatpush2.msra.mxu0 0.0
        %287 = vmatprep.subr.mxu0 0.0
        %288 = vmatpush2.msra.mxu0 0.0
        %289 = vmatprep.subr.mxu0 0.0
        %290 = vmatpush2.msra.mxu0 0.0
        %291 = vmatprep.subr.mxu0 0.0
        %292 = vmatpush2.msra.mxu0 0.0
        %293 = vmatprep.subr.mxu0 0.0
        %294 = vmatpush2.msra.mxu0 0.0
        %295 = vmatprep.mubr.f32.mxu0 0.0
        %296 = vmatmul.mubr.f32.gmra.mxu0 %v225
        %v297 = vpop.f32.mrf.mxu0
        %v298 = vadd.f32 0.0, %v297
        %v299 = vpop.f32.mrf.mxu0
        %300 = vdwg.mxu0
        %301 = vst [vmem:[%s204] sm:$0xff] %v298
        %s302 = sand.u32 %s116, 1
        %s303 = scalar_lea.sflag [#allocation3], %s302
        %s304 = sand.u32 %s116, 1
        %s305 = smul.addr %s304, 8
        %s306 = scalar_lea.vmem [#allocation2], %s305
        // Predicated region
        $region33: #{spectral_transform.5} parent=31 // pred_check
          %p307 = pneg %p126
        $region34: #{spectral_transform.5} parent=31 // pred_check_branch
          %309 = sbr.rel (%p307) target = $region36
        $region35: #{spectral_transform.5} parent=31 // pred_region
          %s311 = ssub.s32 128, 128
          %312 = vsyncadd %s303, %s311
          %s313 = sadd.s32 %s21, %s22
          %s314 = smul.addr %s313, 128
          %s315 = scalar_lea.hbm %s3, %s314
          %s317 = sshll.u32 %s306, 4
          %s318 = int_to_ptr.vmem [resolvable:$true] %s317
          %320 = dma.vmem_to_hbm [thread:$0]  %s318, 128, %s315, %s303
        $region36: #{spectral_transform.5} parent=31 // pred_fallthru
          _
      $region32: #{spectral_transform.5} parent=5 // pred_fallthru
        _
      %p321 = scmp.le.s32.totalorder 2, %s12
      // Predicated region
      $region37: #{spectral_transform.5} parent=5 // pred_check
        %p322 = pneg %p321
      $region38: #{spectral_transform.5} parent=5 // pred_check_branch
        %324 = sbr.rel (%p322) target = $region40
      $region39: #{spectral_transform.5} parent=5 // pred_region
        %s325 = ssub.s32 %s12, 2
        // Predicated region
        $region41: #{spectral_transform.5} parent=39 // pred_check
          %p326 = pneg %p132
        $region42: #{spectral_transform.5} parent=39 // pred_check_branch
          %328 = sbr.rel (%p326) target = $region44
        $region43: #{spectral_transform.5} parent=39 // pred_region
          %s329 = sand.u32 %s117, 1
          %s330 = scalar_lea.sflag [#allocation3], %s329
          %s331 = sand.u32 %s117, 1
          %s332 = smul.addr %s331, 8
          %s333 = scalar_lea.vmem [#allocation2], %s332
          %334 = dma.done %s330, 128
        $region44: #{spectral_transform.5} parent=39 // pred_fallthru
          _
      $region40: #{spectral_transform.5} parent=5 // pred_fallthru
        _
    $region6: #{spectral_transform.5} parent=1 // loop_footer
      %s16 = sadd.s32 1, %s12
    $region7: #{spectral_transform.5} parent=1 // loop_footer_branch
      %11 = sbr.rel target = $region3
    $region8: #{spectral_transform.5} parent=1 // loop_exit
      _
    %335 = vsyncpa [#allocation3], 1
    %s336 = scalar_lea.sflag [#allocation3], 1
    %337 = vsyncpa %s336, 1

</llo_original>
